<compile_context>
chip_gen: v7x
topology: tpu7x:2x2x1
jax: 0.10.0
libtpu: 0.0.40
codegen_flags: <defaults>
</compile_context>

<pallas_src>
import functools

import jax
import jax.numpy as jnp
import numpy as np
from jax.experimental import pallas as pl
from jax.experimental.pallas import tpu as pltpu

IN_DIM = 768
HIDDEN = 128
NOUT_PAD = 128       # output classes padded to one full lane width
B_TILE_MAX = 128     # max batch rows per grid tile
T_TILE_MAX = 32      # max timesteps per pipelined chunk
SUB = 8              # stage-1 sub-chunk (tile-aligned sublane group)


def _round_up(n, m):
    return (n + m - 1) // m * m


def _entity_cls_kernel(x_ref, w1_ref, b1_ref, wih_ref, whh_ref, bl_ref,
                       wout_ref, bout_ref, out_ref,
                       gx_scr, h_scr, c_scr, hmax_scr,
                       *, t_real, t_tile, b_tile):
    """Grid = (batch_tiles, time_chunks).

    x_ref    : (Bt, Tt, 768) f32    native-layout chunk (cast to bf16 here)
    w1_ref   : (768, 128)  bf16     Linear1 weight^T
    b1_ref   : (1, 128)    f32
    wih_ref  : (128, 512)  bf16     LSTM W_ih^T (gate order i,f,g,o)
    whh_ref  : (128, 512)  bf16     LSTM W_hh^T
    bl_ref   : (1, 512)    f32      b_ih + b_hh
    wout_ref : (128, 128)  f32      output weight^T, zero-padded columns
    bout_ref : (1, 128)    f32      output bias, -1e30 padded columns
    out_ref  : (Bt, 128)   f32      softmax probabilities (padded classes ~ 0)
    gx_scr   : (Bt, Tt, 512) f32    x-path gate pre-activations (batch-major)
    h_scr    : (Bt, 128)   bf16     carried hidden state
    c_scr    : (Bt, 128)   f32      carried cell state
    hmax_scr : (Bt, 128)   f32      running max over time (AdaptiveMaxPool1d)
    """
    H = HIDDEN
    t_idx = pl.program_id(1)

    # ---- init carried state at the first time chunk of each batch tile ----
    @pl.when(t_idx == 0)
    def _init():
        h_scr[...] = jnp.zeros_like(h_scr)
        c_scr[...] = jnp.zeros_like(c_scr)
        hmax_scr[...] = jnp.full_like(hmax_scr, -jnp.inf)

    # ---- stage 1: batched MXU projections for the whole chunk --------------
    # 8-timestep sub-chunks keep every slice / reshape tile-aligned (free) and
    # bound intermediate value sizes.
    w1 = w1_ref[...]
    wih = wih_ref[...]
    b1 = b1_ref[...]
    bl = bl_ref[...]
    for ts in range(0, t_tile, SUB):
        xs = x_ref[:, ts:ts + SUB, :].astype(jnp.bfloat16)        # (Bt,8,768)
        xs2 = xs.reshape(b_tile * SUB, IN_DIM)
        h0 = jnp.dot(xs2, w1, preferred_element_type=jnp.float32)
        h0 = jnp.maximum(h0 + b1, 0.0).astype(jnp.bfloat16)       # ReLU
        g = jnp.dot(h0, wih, preferred_element_type=jnp.float32) + bl
        gx_scr[:, ts:ts + SUB, :] = g.reshape(b_tile, SUB, 4 * H)

    # ---- stage 2: sequential LSTM recurrence (only h @ W_hh per step) ------
    whh = whh_ref[...]                      # hoisted, loop-invariant (bf16)
    h = h_scr[...]                          # bf16 carry
    c = c_scr[...]                          # f32 carry
    hmax = hmax_scr[...]                    # f32 running max
    needs_mask = (t_real % t_tile) != 0     # static: padded tail timesteps?
    t0 = t_idx * t_tile
    for tl in range(t_tile):                # static unroll
        g = gx_scr[:, tl, :] + jnp.dot(h, whh,
                                       preferred_element_type=jnp.float32)
        # sigmoid(x) == 0.5*tanh(0.5*x) + 0.5  (one EUP pass per gate)
        i_g = 0.5 * jnp.tanh(0.5 * g[:, 0 * H:1 * H]) + 0.5
        f_g = 0.5 * jnp.tanh(0.5 * g[:, 1 * H:2 * H]) + 0.5
        g_g = jnp.tanh(g[:, 2 * H:3 * H])
        o_g = 0.5 * jnp.tanh(0.5 * g[:, 3 * H:4 * H]) + 0.5
        c = f_g * c + i_g * g_g
        h_f = o_g * jnp.tanh(c)
        hmax_new = jnp.maximum(hmax, h_f)       # AdaptiveMaxPool1d over time
        if needs_mask:
            # Padded steps exist only at the very end of the sequence, so h/c
            # corruption never reaches valid work; only the pooled max needs
            # protection (one select per step).
            valid = (t0 + tl) < t_real
            hmax = jnp.where(valid, hmax_new, hmax)
        else:
            hmax = hmax_new
        h = h_f.astype(jnp.bfloat16)
    h_scr[...] = h
    c_scr[...] = c
    hmax_scr[...] = hmax

    # ---- stage 3: pooled head + softmax (lane-dense, last chunk only) ------
    @pl.when(t_idx == pl.num_programs(1) - 1)
    def _final():
        logits = (jnp.dot(hmax_scr[...], wout_ref[...],
                          preferred_element_type=jnp.float32) + bout_ref[...])
        m = jnp.max(logits, axis=1, keepdims=True)
        e = jnp.exp(logits - m)          # padded classes: exp(-huge) == 0
        out_ref[...] = e / jnp.sum(e, axis=1, keepdims=True)


@jax.jit
def entity_classification_forward(x, params):
    """x: (B, T, 768) float32 -> (B, num_out) softmax probabilities."""
    B, T, D = x.shape
    assert D == IN_DIM
    num_out = params["wout_t"].shape[1]
    assert num_out <= NOUT_PAD

    # ---- static tiling choices ----
    if B > B_TILE_MAX:
        b_tile = B_TILE_MAX
    elif B >= 32:
        # Split the batch into >= 2 tiles so the "parallel" grid axis can be
        # sharded across TensorCores (v7x megacore); cheap elsewhere.
        b_tile = _round_up(pl.cdiv(B, 2), 8)
    else:
        b_tile = B                       # block == full dim (small batches)
    t_tile = min(T_TILE_MAX, _round_up(T, SUB))
    grid = (pl.cdiv(B, b_tile), pl.cdiv(T, t_tile))
    b_pad = grid[0] * b_tile

    # ---- parameters (weights are tiny; pinned in VMEM via constant maps) ---
    w1 = params["w1"].astype(jnp.bfloat16)
    b1 = params["b1"].astype(jnp.float32)
    wih = params["wih_t"].astype(jnp.bfloat16)
    whh = params["whh_t"].astype(jnp.bfloat16)
    bl = params["b_lstm"].astype(jnp.float32)
    wout = jnp.zeros((HIDDEN, NOUT_PAD), jnp.float32)
    wout = wout.at[:, :num_out].set(params["wout_t"].astype(jnp.float32))
    bout = jnp.full((1, NOUT_PAD), -1e30, jnp.float32)
    bout = bout.at[:, :num_out].set(
        params["bout"].astype(jnp.float32).reshape(1, num_out))

    kernel = functools.partial(_entity_cls_kernel,
                               t_real=T, t_tile=t_tile, b_tile=b_tile)

    out = pl.pallas_call(
        kernel,
        out_shape=jax.ShapeDtypeStruct((b_pad, NOUT_PAD), jnp.float32),
        grid_spec=pltpu.PrefetchScalarGridSpec(
            num_scalar_prefetch=0,
            grid=grid,
            in_specs=[
                pl.BlockSpec((b_tile, t_tile, IN_DIM), lambda b, t: (b, t, 0)),
                pl.BlockSpec((IN_DIM, HIDDEN), lambda b, t: (0, 0)),
                pl.BlockSpec((1, HIDDEN), lambda b, t: (0, 0)),
                pl.BlockSpec((HIDDEN, 4 * HIDDEN), lambda b, t: (0, 0)),
                pl.BlockSpec((HIDDEN, 4 * HIDDEN), lambda b, t: (0, 0)),
                pl.BlockSpec((1, 4 * HIDDEN), lambda b, t: (0, 0)),
                pl.BlockSpec((HIDDEN, NOUT_PAD), lambda b, t: (0, 0)),
                pl.BlockSpec((1, NOUT_PAD), lambda b, t: (0, 0)),
            ],
            out_specs=pl.BlockSpec((b_tile, NOUT_PAD), lambda b, t: (b, 0)),
            scratch_shapes=[
                pltpu.VMEM((b_tile, t_tile, 4 * HIDDEN), jnp.float32),  # gx
                pltpu.VMEM((b_tile, HIDDEN), jnp.bfloat16),             # h
                pltpu.VMEM((b_tile, HIDDEN), jnp.float32),              # c
                pltpu.VMEM((b_tile, HIDDEN), jnp.float32),              # max
            ]),
        compiler_params=pltpu.CompilerParams(
            dimension_semantics=("parallel", "arbitrary"),
            vmem_limit_bytes=48 * 1024 * 1024),
    )(x, w1, b1, wih, whh, bl, wout, bout)

    return out[:B, :num_out]


def init_params(key, num_entities):
    """Deterministic synthetic parameters matching the PyTorch module shapes."""
    num_out = num_entities - 1
    ks = jax.random.split(key, 8)
    s = 0.05
    # nn.Linear(768, 128): weight (128, 768) -> stored transposed
    w1 = (jax.random.normal(ks[0], (HIDDEN, IN_DIM), jnp.float32) * s).T
    b1 = (jax.random.normal(ks[1], (HIDDEN,), jnp.float32) * s).reshape(1, HIDDEN)
    # nn.LSTM(128, 128): weight_ih_l0 (512,128), weight_hh_l0 (512,128), biases (512,)
    wih = jax.random.normal(ks[2], (4 * HIDDEN, HIDDEN), jnp.float32) * s
    whh = jax.random.normal(ks[3], (4 * HIDDEN, HIDDEN), jnp.float32) * s
    b_ih = jax.random.normal(ks[4], (4 * HIDDEN,), jnp.float32) * s
    b_hh = jax.random.normal(ks[5], (4 * HIDDEN,), jnp.float32) * s
    # nn.Linear(128, num_entities - 1)
    wout = jax.random.normal(ks[6], (num_out, HIDDEN), jnp.float32) * s
    bout = jax.random.normal(ks[7], (num_out,), jnp.float32) * s
    return {
        "w1": w1,
        "b1": b1,
        "wih_t": wih.T,
        "whh_t": whh.T,
        "b_lstm": (b_ih + b_hh).reshape(1, 4 * HIDDEN),
        "wout_t": wout.T,
        "bout": bout.reshape(1, num_out),
    }


def reference_forward(x, params):
    """Pure-JAX float32 reference mirroring the PyTorch semantics."""
    h0 = jax.nn.relu(x @ params["w1"] + params["b1"])          # (B, T, 128)
    B, T, _ = h0.shape

    def step(carry, xt):
        h, c = carry
        gates = xt @ params["wih_t"] + h @ params["whh_t"] + params["b_lstm"]
        i = jax.nn.sigmoid(gates[:, 0 * HIDDEN:1 * HIDDEN])
        f = jax.nn.sigmoid(gates[:, 1 * HIDDEN:2 * HIDDEN])
        g = jnp.tanh(gates[:, 2 * HIDDEN:3 * HIDDEN])
        o = jax.nn.sigmoid(gates[:, 3 * HIDDEN:4 * HIDDEN])
        c = f * c + i * g
        h = o * jnp.tanh(c)
        return (h, c), h

    init = (jnp.zeros((B, HIDDEN), jnp.float32), jnp.zeros((B, HIDDEN), jnp.float32))
    _, hs = jax.lax.scan(step, init, jnp.transpose(h0, (1, 0, 2)))   # (T, B, 128)
    pooled = jnp.max(hs, axis=0)                                     # (B, 128)
    logits = pooled @ params["wout_t"] + params["bout"]
    return jax.nn.softmax(logits, axis=1)


if __name__ == "__main__":
    B, T = 2, 8
    num_entities = 5          # -> 4 output classes
    num_out = num_entities - 1

    key = jax.random.PRNGKey(0)
    kx, kp = jax.random.split(key)
    x = jax.random.normal(kx, (B, T, IN_DIM), jnp.float32)
    params = init_params(kp, num_entities)

    out = jax.block_until_ready(entity_classification_forward(x, params))
    ref = jax.block_until_ready(reference_forward(x, params))

    assert out.shape == (B, num_out)
    # bf16 matmul operands in the kernel vs f32 reference -> modest tolerance.
    np.testing.assert_allclose(np.asarray(out), np.asarray(ref), atol=1e-2, rtol=1e-2)
    assert np.allclose(np.asarray(out).sum(axis=1), 1.0, atol=1e-4)

    print("KERNEL_OK")
</pallas_src>

<mosaic_0001>
module attributes {stable_mosaic.version = 11 : i64} {
  func.func @_entity_cls_kernel(%arg0: i32, %arg1: i32, %arg2: memref<2x8x768xf32, #tpu.memory_space<vmem>>, %arg3: memref<768x128xbf16, #tpu.memory_space<vmem>>, %arg4: memref<1x128xf32, #tpu.memory_space<vmem>>, %arg5: memref<128x512xbf16, #tpu.memory_space<vmem>>, %arg6: memref<128x512xbf16, #tpu.memory_space<vmem>>, %arg7: memref<1x512xf32, #tpu.memory_space<vmem>>, %arg8: memref<128x128xf32, #tpu.memory_space<vmem>>, %arg9: memref<1x128xf32, #tpu.memory_space<vmem>>, %arg10: memref<2x128xf32, #tpu.memory_space<vmem>>, %arg11: memref<2x8x512xf32, #tpu.memory_space<vmem>>, %arg12: memref<2x128xbf16, #tpu.memory_space<vmem>>, %arg13: memref<2x128xf32, #tpu.memory_space<vmem>>, %arg14: memref<2x128xf32, #tpu.memory_space<vmem>>) attributes {dimension_semantics = [#tpu.dimension_semantics<parallel>, #tpu.dimension_semantics<arbitrary>], iteration_bounds = array<i64: 1, 1>, scalar_prefetch = 0 : i64, scratch_operands = 4 : i64, tpu.core_type = #tpu.core_type<tc>, window_params = [{transform_indices = @transform_0, window_bounds = array<i64: 2, 8, 768>}, {pipeline_mode = #tpu.pipeline_mode<synchronous>, transform_indices = @transform_1, window_bounds = array<i64: 768, 128>}, {pipeline_mode = #tpu.pipeline_mode<synchronous>, transform_indices = @transform_2, window_bounds = array<i64: 1, 128>}, {pipeline_mode = #tpu.pipeline_mode<synchronous>, transform_indices = @transform_3, window_bounds = array<i64: 128, 512>}, {pipeline_mode = #tpu.pipeline_mode<synchronous>, transform_indices = @transform_4, window_bounds = array<i64: 128, 512>}, {pipeline_mode = #tpu.pipeline_mode<synchronous>, transform_indices = @transform_5, window_bounds = array<i64: 1, 512>}, {pipeline_mode = #tpu.pipeline_mode<synchronous>, transform_indices = @transform_6, window_bounds = array<i64: 128, 128>}, {pipeline_mode = #tpu.pipeline_mode<synchronous>, transform_indices = @transform_7, window_bounds = array<i64: 1, 128>}, {transform_indices = @transform_8, window_bounds = array<i64: 2, 128>}]} {
    %c0_i32 = arith.constant 0 : i32
    %0 = arith.cmpi eq, %arg1, %c0_i32 : i32
    %1 = arith.extui %0 : i1 to i32
    %c0_i32_0 = arith.constant 0 : i32
    %2 = arith.cmpi ne, %1, %c0_i32_0 : i32
    scf.if %2 {
      %cst_129 = arith.constant 0.000000e+00 : bf16
      %327 = vector.broadcast %cst_129 : bf16 to vector<2x128xbf16>
      %c0_130 = arith.constant 0 : index
      %c0_131 = arith.constant 0 : index
      %328 = vector.load %arg12[%c0_130, %c0_131] : memref<2x128xbf16, #tpu.memory_space<vmem>>, vector<2x128xbf16>
      tpu.vector_store %arg12[%c0_130, %c0_131], %327 {strides = array<i32>} : memref<2x128xbf16, #tpu.memory_space<vmem>>, vector<2x128xbf16>,
      %cst_132 = arith.constant 0.000000e+00 : f32
      %329 = vector.broadcast %cst_132 : f32 to vector<2x128xf32>
      %c0_133 = arith.constant 0 : index
      %c0_134 = arith.constant 0 : index
      %330 = vector.load %arg13[%c0_133, %c0_134] : memref<2x128xf32, #tpu.memory_space<vmem>>, vector<2x128xf32>
      tpu.vector_store %arg13[%c0_133, %c0_134], %329 {strides = array<i32>} : memref<2x128xf32, #tpu.memory_space<vmem>>, vector<2x128xf32>,
      %cst_135 = arith.constant 0xFF800000 : f32
      %331 = vector.broadcast %cst_135 : f32 to vector<2x128xf32>
      %c0_136 = arith.constant 0 : index
      %c0_137 = arith.constant 0 : index
      %332 = vector.load %arg14[%c0_136, %c0_137] : memref<2x128xf32, #tpu.memory_space<vmem>>, vector<2x128xf32>
      tpu.vector_store %arg14[%c0_136, %c0_137], %331 {strides = array<i32>} : memref<2x128xf32, #tpu.memory_space<vmem>>, vector<2x128xf32>,
    } else {
    }
    %c0 = arith.constant 0 : index
    %c0_1 = arith.constant 0 : index
    %3 = vector.load %arg3[%c0, %c0_1] : memref<768x128xbf16, #tpu.memory_space<vmem>>, vector<768x128xbf16>
    %c0_2 = arith.constant 0 : index
    %c0_3 = arith.constant 0 : index
    %4 = vector.load %arg5[%c0_2, %c0_3] : memref<128x512xbf16, #tpu.memory_space<vmem>>, vector<128x512xbf16>
    %c0_4 = arith.constant 0 : index
    %c0_5 = arith.constant 0 : index
    %5 = vector.load %arg4[%c0_4, %c0_5] : memref<1x128xf32, #tpu.memory_space<vmem>>, vector<1x128xf32>
    %c0_6 = arith.constant 0 : index
    %c0_7 = arith.constant 0 : index
    %6 = vector.load %arg7[%c0_6, %c0_7] : memref<1x512xf32, #tpu.memory_space<vmem>>, vector<1x512xf32>
    %c0_8 = arith.constant 0 : index
    %c0_9 = arith.constant 0 : index
    %c0_10 = arith.constant 0 : index
    %7 = vector.load %arg2[%c0_8, %c0_9, %c0_10] : memref<2x8x768xf32, #tpu.memory_space<vmem>>, vector<2x8x768xf32>
    %8 = arith.truncf %7 : vector<2x8x768xf32> to vector<2x8x768xbf16>
    %9 = vector.shape_cast %8 : vector<2x8x768xbf16> to vector<16x768xbf16>
    %cst = arith.constant dense<0.000000e+00> : vector<16x128xf32>
    %10 = tpu.matmul %9, %3, %cst {dimension_numbers = #tpu.dot_dimension_numbers<[1], [0], [0], [1], [0, 0, 1, 1], [], []>} : vector<16x768xbf16>, vector<768x128xbf16>, vector<16x128xf32> -> vector<16x128xf32>
    %11 = vector.broadcast %5 : vector<1x128xf32> to vector<16x128xf32>
    %12 = arith.addf %10, %11 : vector<16x128xf32>
    %cst_11 = arith.constant 0.000000e+00 : f32
    %13 = vector.broadcast %cst_11 : f32 to vector<16x128xf32>
    %14 = arith.maximumf %12, %13 : vector<16x128xf32>
    %15 = arith.truncf %14 : vector<16x128xf32> to vector<16x128xbf16>
    %cst_12 = arith.constant dense<0.000000e+00> : vector<16x512xf32>
    %16 = tpu.matmul %15, %4, %cst_12 {dimension_numbers = #tpu.dot_dimension_numbers<[1], [0], [0], [1], [0, 0, 1, 1], [], []>} : vector<16x128xbf16>, vector<128x512xbf16>, vector<16x512xf32> -> vector<16x512xf32>
    %17 = vector.broadcast %6 : vector<1x512xf32> to vector<16x512xf32>
    %18 = arith.addf %16, %17 : vector<16x512xf32>
    %19 = vector.shape_cast %18 : vector<16x512xf32> to vector<2x8x512xf32>
    %c0_13 = arith.constant 0 : index
    %c0_14 = arith.constant 0 : index
    %c0_15 = arith.constant 0 : index
    %20 = vector.load %arg11[%c0_13, %c0_14, %c0_15] : memref<2x8x512xf32, #tpu.memory_space<vmem>>, vector<2x8x512xf32>
    tpu.vector_store %arg11[%c0_13, %c0_14, %c0_15], %19 {strides = array<i32>} : memref<2x8x512xf32, #tpu.memory_space<vmem>>, vector<2x8x512xf32>,
    %c0_16 = arith.constant 0 : index
    %c0_17 = arith.constant 0 : index
    %21 = vector.load %arg6[%c0_16, %c0_17] : memref<128x512xbf16, #tpu.memory_space<vmem>>, vector<128x512xbf16>
    %c0_18 = arith.constant 0 : index
    %c0_19 = arith.constant 0 : index
    %22 = vector.load %arg12[%c0_18, %c0_19] : memref<2x128xbf16, #tpu.memory_space<vmem>>, vector<2x128xbf16>
    %c0_20 = arith.constant 0 : index
    %c0_21 = arith.constant 0 : index
    %23 = vector.load %arg13[%c0_20, %c0_21] : memref<2x128xf32, #tpu.memory_space<vmem>>, vector<2x128xf32>
    %c0_22 = arith.constant 0 : index
    %c0_23 = arith.constant 0 : index
    %24 = vector.load %arg14[%c0_22, %c0_23] : memref<2x128xf32, #tpu.memory_space<vmem>>, vector<2x128xf32>
    %c0_24 = arith.constant 0 : index
    %c0_25 = arith.constant 0 : index
    %c0_26 = arith.constant 0 : index
    %25 = vector.load %arg11[%c0_24, %c0_25, %c0_26] : memref<2x8x512xf32, #tpu.memory_space<vmem>>, vector<2x1x512xf32>
    %26 = vector.shape_cast %25 : vector<2x1x512xf32> to vector<2x512xf32>
    %cst_27 = arith.constant dense<0.000000e+00> : vector<2x512xf32>
    %27 = tpu.matmul %22, %21, %cst_27 {dimension_numbers = #tpu.dot_dimension_numbers<[1], [0], [0], [1], [0, 0, 1, 1], [], []>} : vector<2x128xbf16>, vector<128x512xbf16>, vector<2x512xf32> -> vector<2x512xf32>
    %28 = arith.addf %26, %27 : vector<2x512xf32>
    %29 = vector.extract_strided_slice %28 {offsets = [0, 0], sizes = [2, 128], strides = [1, 1]} : vector<2x512xf32> to vector<2x128xf32>
    %cst_28 = arith.constant 5.000000e-01 : f32
    %30 = vector.broadcast %cst_28 : f32 to vector<2x128xf32>
    %31 = arith.mulf %30, %29 : vector<2x128xf32>
    %32 = math.tanh %31 : vector<2x128xf32>
    %cst_29 = arith.constant 5.000000e-01 : f32
    %33 = vector.broadcast %cst_29 : f32 to vector<2x128xf32>
    %34 = arith.mulf %33, %32 : vector<2x128xf32>
    %cst_30 = arith.constant 5.000000e-01 : f32
    %35 = vector.broadcast %cst_30 : f32 to vector<2x128xf32>
    %36 = arith.addf %34, %35 : vector<2x128xf32>
    %37 = vector.extract_strided_slice %28 {offsets = [0, 128], sizes = [2, 128], strides = [1, 1]} : vector<2x512xf32> to vector<2x128xf32>
    %cst_31 = arith.constant 5.000000e-01 : f32
    %38 = vector.broadcast %cst_31 : f32 to vector<2x128xf32>
    %39 = arith.mulf %38, %37 : vector<2x128xf32>
    %40 = math.tanh %39 : vector<2x128xf32>
    %cst_32 = arith.constant 5.000000e-01 : f32
    %41 = vector.broadcast %cst_32 : f32 to vector<2x128xf32>
    %42 = arith.mulf %41, %40 : vector<2x128xf32>
    %cst_33 = arith.constant 5.000000e-01 : f32
    %43 = vector.broadcast %cst_33 : f32 to vector<2x128xf32>
    %44 = arith.addf %42, %43 : vector<2x128xf32>
    %45 = vector.extract_strided_slice %28 {offsets = [0, 256], sizes = [2, 128], strides = [1, 1]} : vector<2x512xf32> to vector<2x128xf32>
    %46 = math.tanh %45 : vector<2x128xf32>
    %47 = vector.extract_strided_slice %28 {offsets = [0, 384], sizes = [2, 128], strides = [1, 1]} : vector<2x512xf32> to vector<2x128xf32>
    %cst_34 = arith.constant 5.000000e-01 : f32
    %48 = vector.broadcast %cst_34 : f32 to vector<2x128xf32>
    %49 = arith.mulf %48, %47 : vector<2x128xf32>
    %50 = math.tanh %49 : vector<2x128xf32>
    %cst_35 = arith.constant 5.000000e-01 : f32
    %51 = vector.broadcast %cst_35 : f32 to vector<2x128xf32>
    %52 = arith.mulf %51, %50 : vector<2x128xf32>
    %cst_36 = arith.constant 5.000000e-01 : f32
    %53 = vector.broadcast %cst_36 : f32 to vector<2x128xf32>
    %54 = arith.addf %52, %53 : vector<2x128xf32>
    %55 = arith.mulf %44, %23 : vector<2x128xf32>
    %56 = arith.mulf %36, %46 : vector<2x128xf32>
    %57 = arith.addf %55, %56 : vector<2x128xf32>
    %58 = math.tanh %57 : vector<2x128xf32>
    %59 = arith.mulf %54, %58 : vector<2x128xf32>
    %60 = arith.maximumf %24, %59 : vector<2x128xf32>
    %61 = arith.truncf %59 : vector<2x128xf32> to vector<2x128xbf16>
    %c0_37 = arith.constant 0 : index
    %c1 = arith.constant 1 : index
    %c0_38 = arith.constant 0 : index
    %62 = vector.load %arg11[%c0_37, %c1, %c0_38] : memref<2x8x512xf32, #tpu.memory_space<vmem>>, vector<2x1x512xf32>
    %63 = vector.shape_cast %62 : vector<2x1x512xf32> to vector<2x512xf32>
    %cst_39 = arith.constant dense<0.000000e+00> : vector<2x512xf32>
    %64 = tpu.matmul %61, %21, %cst_39 {dimension_numbers = #tpu.dot_dimension_numbers<[1], [0], [0], [1], [0, 0, 1, 1], [], []>} : vector<2x128xbf16>, vector<128x512xbf16>, vector<2x512xf32> -> vector<2x512xf32>
    %65 = arith.addf %63, %64 : vector<2x512xf32>
    %66 = vector.extract_strided_slice %65 {offsets = [0, 0], sizes = [2, 128], strides = [1, 1]} : vector<2x512xf32> to vector<2x128xf32>
    %cst_40 = arith.constant 5.000000e-01 : f32
    %67 = vector.broadcast %cst_40 : f32 to vector<2x128xf32>
    %68 = arith.mulf %67, %66 : vector<2x128xf32>
    %69 = math.tanh %68 : vector<2x128xf32>
    %cst_41 = arith.constant 5.000000e-01 : f32
    %70 = vector.broadcast %cst_41 : f32 to vector<2x128xf32>
    %71 = arith.mulf %70, %69 : vector<2x128xf32>
    %cst_42 = arith.constant 5.000000e-01 : f32
    %72 = vector.broadcast %cst_42 : f32 to vector<2x128xf32>
    %73 = arith.addf %71, %72 : vector<2x128xf32>
    %74 = vector.extract_strided_slice %65 {offsets = [0, 128], sizes = [2, 128], strides = [1, 1]} : vector<2x512xf32> to vector<2x128xf32>
    %cst_43 = arith.constant 5.000000e-01 : f32
    %75 = vector.broadcast %cst_43 : f32 to vector<2x128xf32>
    %76 = arith.mulf %75, %74 : vector<2x128xf32>
    %77 = math.tanh %76 : vector<2x128xf32>
    %cst_44 = arith.constant 5.000000e-01 : f32
    %78 = vector.broadcast %cst_44 : f32 to vector<2x128xf32>
    %79 = arith.mulf %78, %77 : vector<2x128xf32>
    %cst_45 = arith.constant 5.000000e-01 : f32
    %80 = vector.broadcast %cst_45 : f32 to vector<2x128xf32>
    %81 = arith.addf %79, %80 : vector<2x128xf32>
    %82 = vector.extract_strided_slice %65 {offsets = [0, 256], sizes = [2, 128], strides = [1, 1]} : vector<2x512xf32> to vector<2x128xf32>
    %83 = math.tanh %82 : vector<2x128xf32>
    %84 = vector.extract_strided_slice %65 {offsets = [0, 384], sizes = [2, 128], strides = [1, 1]} : vector<2x512xf32> to vector<2x128xf32>
    %cst_46 = arith.constant 5.000000e-01 : f32
    %85 = vector.broadcast %cst_46 : f32 to vector<2x128xf32>
    %86 = arith.mulf %85, %84 : vector<2x128xf32>
    %87 = math.tanh %86 : vector<2x128xf32>
    %cst_47 = arith.constant 5.000000e-01 : f32
    %88 = vector.broadcast %cst_47 : f32 to vector<2x128xf32>
    %89 = arith.mulf %88, %87 : vector<2x128xf32>
    %cst_48 = arith.constant 5.000000e-01 : f32
    %90 = vector.broadcast %cst_48 : f32 to vector<2x128xf32>
    %91 = arith.addf %89, %90 : vector<2x128xf32>
    %92 = arith.mulf %81, %57 : vector<2x128xf32>
    %93 = arith.mulf %73, %83 : vector<2x128xf32>
    %94 = arith.addf %92, %93 : vector<2x128xf32>
    %95 = math.tanh %94 : vector<2x128xf32>
    %96 = arith.mulf %91, %95 : vector<2x128xf32>
    %97 = arith.maximumf %60, %96 : vector<2x128xf32>
    %98 = arith.truncf %96 : vector<2x128xf32> to vector<2x128xbf16>
    %c0_49 = arith.constant 0 : index
    %c2 = arith.constant 2 : index
    %c0_50 = arith.constant 0 : index
    %99 = vector.load %arg11[%c0_49, %c2, %c0_50] : memref<2x8x512xf32, #tpu.memory_space<vmem>>, vector<2x1x512xf32>
    %100 = vector.shape_cast %99 : vector<2x1x512xf32> to vector<2x512xf32>
    %cst_51 = arith.constant dense<0.000000e+00> : vector<2x512xf32>
    %101 = tpu.matmul %98, %21, %cst_51 {dimension_numbers = #tpu.dot_dimension_numbers<[1], [0], [0], [1], [0, 0, 1, 1], [], []>} : vector<2x128xbf16>, vector<128x512xbf16>, vector<2x512xf32> -> vector<2x512xf32>
    %102 = arith.addf %100, %101 : vector<2x512xf32>
    %103 = vector.extract_strided_slice %102 {offsets = [0, 0], sizes = [2, 128], strides = [1, 1]} : vector<2x512xf32> to vector<2x128xf32>
    %cst_52 = arith.constant 5.000000e-01 : f32
    %104 = vector.broadcast %cst_52 : f32 to vector<2x128xf32>
    %105 = arith.mulf %104, %103 : vector<2x128xf32>
    %106 = math.tanh %105 : vector<2x128xf32>
    %cst_53 = arith.constant 5.000000e-01 : f32
    %107 = vector.broadcast %cst_53 : f32 to vector<2x128xf32>
    %108 = arith.mulf %107, %106 : vector<2x128xf32>
    %cst_54 = arith.constant 5.000000e-01 : f32
    %109 = vector.broadcast %cst_54 : f32 to vector<2x128xf32>
    %110 = arith.addf %108, %109 : vector<2x128xf32>
    %111 = vector.extract_strided_slice %102 {offsets = [0, 128], sizes = [2, 128], strides = [1, 1]} : vector<2x512xf32> to vector<2x128xf32>
    %cst_55 = arith.constant 5.000000e-01 : f32
    %112 = vector.broadcast %cst_55 : f32 to vector<2x128xf32>
    %113 = arith.mulf %112, %111 : vector<2x128xf32>
    %114 = math.tanh %113 : vector<2x128xf32>
    %cst_56 = arith.constant 5.000000e-01 : f32
    %115 = vector.broadcast %cst_56 : f32 to vector<2x128xf32>
    %116 = arith.mulf %115, %114 : vector<2x128xf32>
    %cst_57 = arith.constant 5.000000e-01 : f32
    %117 = vector.broadcast %cst_57 : f32 to vector<2x128xf32>
    %118 = arith.addf %116, %117 : vector<2x128xf32>
    %119 = vector.extract_strided_slice %102 {offsets = [0, 256], sizes = [2, 128], strides = [1, 1]} : vector<2x512xf32> to vector<2x128xf32>
    %120 = math.tanh %119 : vector<2x128xf32>
    %121 = vector.extract_strided_slice %102 {offsets = [0, 384], sizes = [2, 128], strides = [1, 1]} : vector<2x512xf32> to vector<2x128xf32>
    %cst_58 = arith.constant 5.000000e-01 : f32
    %122 = vector.broadcast %cst_58 : f32 to vector<2x128xf32>
    %123 = arith.mulf %122, %121 : vector<2x128xf32>
    %124 = math.tanh %123 : vector<2x128xf32>
    %cst_59 = arith.constant 5.000000e-01 : f32
    %125 = vector.broadcast %cst_59 : f32 to vector<2x128xf32>
    %126 = arith.mulf %125, %124 : vector<2x128xf32>
    %cst_60 = arith.constant 5.000000e-01 : f32
    %127 = vector.broadcast %cst_60 : f32 to vector<2x128xf32>
    %128 = arith.addf %126, %127 : vector<2x128xf32>
    %129 = arith.mulf %118, %94 : vector<2x128xf32>
    %130 = arith.mulf %110, %120 : vector<2x128xf32>
    %131 = arith.addf %129, %130 : vector<2x128xf32>
    %132 = math.tanh %131 : vector<2x128xf32>
    %133 = arith.mulf %128, %132 : vector<2x128xf32>
    %134 = arith.maximumf %97, %133 : vector<2x128xf32>
    %135 = arith.truncf %133 : vector<2x128xf32> to vector<2x128xbf16>
    %c0_61 = arith.constant 0 : index
    %c3 = arith.constant 3 : index
    %c0_62 = arith.constant 0 : index
    %136 = vector.load %arg11[%c0_61, %c3, %c0_62] : memref<2x8x512xf32, #tpu.memory_space<vmem>>, vector<2x1x512xf32>
    %137 = vector.shape_cast %136 : vector<2x1x512xf32> to vector<2x512xf32>
    %cst_63 = arith.constant dense<0.000000e+00> : vector<2x512xf32>
    %138 = tpu.matmul %135, %21, %cst_63 {dimension_numbers = #tpu.dot_dimension_numbers<[1], [0], [0], [1], [0, 0, 1, 1], [], []>} : vector<2x128xbf16>, vector<128x512xbf16>, vector<2x512xf32> -> vector<2x512xf32>
    %139 = arith.addf %137, %138 : vector<2x512xf32>
    %140 = vector.extract_strided_slice %139 {offsets = [0, 0], sizes = [2, 128], strides = [1, 1]} : vector<2x512xf32> to vector<2x128xf32>
    %cst_64 = arith.constant 5.000000e-01 : f32
    %141 = vector.broadcast %cst_64 : f32 to vector<2x128xf32>
    %142 = arith.mulf %141, %140 : vector<2x128xf32>
    %143 = math.tanh %142 : vector<2x128xf32>
    %cst_65 = arith.constant 5.000000e-01 : f32
    %144 = vector.broadcast %cst_65 : f32 to vector<2x128xf32>
    %145 = arith.mulf %144, %143 : vector<2x128xf32>
    %cst_66 = arith.constant 5.000000e-01 : f32
    %146 = vector.broadcast %cst_66 : f32 to vector<2x128xf32>
    %147 = arith.addf %145, %146 : vector<2x128xf32>
    %148 = vector.extract_strided_slice %139 {offsets = [0, 128], sizes = [2, 128], strides = [1, 1]} : vector<2x512xf32> to vector<2x128xf32>
    %cst_67 = arith.constant 5.000000e-01 : f32
    %149 = vector.broadcast %cst_67 : f32 to vector<2x128xf32>
    %150 = arith.mulf %149, %148 : vector<2x128xf32>
    %151 = math.tanh %150 : vector<2x128xf32>
    %cst_68 = arith.constant 5.000000e-01 : f32
    %152 = vector.broadcast %cst_68 : f32 to vector<2x128xf32>
    %153 = arith.mulf %152, %151 : vector<2x128xf32>
    %cst_69 = arith.constant 5.000000e-01 : f32
    %154 = vector.broadcast %cst_69 : f32 to vector<2x128xf32>
    %155 = arith.addf %153, %154 : vector<2x128xf32>
    %156 = vector.extract_strided_slice %139 {offsets = [0, 256], sizes = [2, 128], strides = [1, 1]} : vector<2x512xf32> to vector<2x128xf32>
    %157 = math.tanh %156 : vector<2x128xf32>
    %158 = vector.extract_strided_slice %139 {offsets = [0, 384], sizes = [2, 128], strides = [1, 1]} : vector<2x512xf32> to vector<2x128xf32>
    %cst_70 = arith.constant 5.000000e-01 : f32
    %159 = vector.broadcast %cst_70 : f32 to vector<2x128xf32>
    %160 = arith.mulf %159, %158 : vector<2x128xf32>
    %161 = math.tanh %160 : vector<2x128xf32>
    %cst_71 = arith.constant 5.000000e-01 : f32
    %162 = vector.broadcast %cst_71 : f32 to vector<2x128xf32>
    %163 = arith.mulf %162, %161 : vector<2x128xf32>
    %cst_72 = arith.constant 5.000000e-01 : f32
    %164 = vector.broadcast %cst_72 : f32 to vector<2x128xf32>
    %165 = arith.addf %163, %164 : vector<2x128xf32>
    %166 = arith.mulf %155, %131 : vector<2x128xf32>
    %167 = arith.mulf %147, %157 : vector<2x128xf32>
    %168 = arith.addf %166, %167 : vector<2x128xf32>
    %169 = math.tanh %168 : vector<2x128xf32>
    %170 = arith.mulf %165, %169 : vector<2x128xf32>
    %171 = arith.maximumf %134, %170 : vector<2x128xf32>
    %172 = arith.truncf %170 : vector<2x128xf32> to vector<2x128xbf16>
    %c0_73 = arith.constant 0 : index
    %c4 = arith.constant 4 : index
    %c0_74 = arith.constant 0 : index
    %173 = vector.load %arg11[%c0_73, %c4, %c0_74] : memref<2x8x512xf32, #tpu.memory_space<vmem>>, vector<2x1x512xf32>
    %174 = vector.shape_cast %173 : vector<2x1x512xf32> to vector<2x512xf32>
    %cst_75 = arith.constant dense<0.000000e+00> : vector<2x512xf32>
    %175 = tpu.matmul %172, %21, %cst_75 {dimension_numbers = #tpu.dot_dimension_numbers<[1], [0], [0], [1], [0, 0, 1, 1], [], []>} : vector<2x128xbf16>, vector<128x512xbf16>, vector<2x512xf32> -> vector<2x512xf32>
    %176 = arith.addf %174, %175 : vector<2x512xf32>
    %177 = vector.extract_strided_slice %176 {offsets = [0, 0], sizes = [2, 128], strides = [1, 1]} : vector<2x512xf32> to vector<2x128xf32>
    %cst_76 = arith.constant 5.000000e-01 : f32
    %178 = vector.broadcast %cst_76 : f32 to vector<2x128xf32>
    %179 = arith.mulf %178, %177 : vector<2x128xf32>
    %180 = math.tanh %179 : vector<2x128xf32>
    %cst_77 = arith.constant 5.000000e-01 : f32
    %181 = vector.broadcast %cst_77 : f32 to vector<2x128xf32>
    %182 = arith.mulf %181, %180 : vector<2x128xf32>
    %cst_78 = arith.constant 5.000000e-01 : f32
    %183 = vector.broadcast %cst_78 : f32 to vector<2x128xf32>
    %184 = arith.addf %182, %183 : vector<2x128xf32>
    %185 = vector.extract_strided_slice %176 {offsets = [0, 128], sizes = [2, 128], strides = [1, 1]} : vector<2x512xf32> to vector<2x128xf32>
    %cst_79 = arith.constant 5.000000e-01 : f32
    %186 = vector.broadcast %cst_79 : f32 to vector<2x128xf32>
    %187 = arith.mulf %186, %185 : vector<2x128xf32>
    %188 = math.tanh %187 : vector<2x128xf32>
    %cst_80 = arith.constant 5.000000e-01 : f32
    %189 = vector.broadcast %cst_80 : f32 to vector<2x128xf32>
    %190 = arith.mulf %189, %188 : vector<2x128xf32>
    %cst_81 = arith.constant 5.000000e-01 : f32
    %191 = vector.broadcast %cst_81 : f32 to vector<2x128xf32>
    %192 = arith.addf %190, %191 : vector<2x128xf32>
    %193 = vector.extract_strided_slice %176 {offsets = [0, 256], sizes = [2, 128], strides = [1, 1]} : vector<2x512xf32> to vector<2x128xf32>
    %194 = math.tanh %193 : vector<2x128xf32>
    %195 = vector.extract_strided_slice %176 {offsets = [0, 384], sizes = [2, 128], strides = [1, 1]} : vector<2x512xf32> to vector<2x128xf32>
    %cst_82 = arith.constant 5.000000e-01 : f32
    %196 = vector.broadcast %cst_82 : f32 to vector<2x128xf32>
    %197 = arith.mulf %196, %195 : vector<2x128xf32>
    %198 = math.tanh %197 : vector<2x128xf32>
    %cst_83 = arith.constant 5.000000e-01 : f32
    %199 = vector.broadcast %cst_83 : f32 to vector<2x128xf32>
    %200 = arith.mulf %199, %198 : vector<2x128xf32>
    %cst_84 = arith.constant 5.000000e-01 : f32
    %201 = vector.broadcast %cst_84 : f32 to vector<2x128xf32>
    %202 = arith.addf %200, %201 : vector<2x128xf32>
    %203 = arith.mulf %192, %168 : vector<2x128xf32>
    %204 = arith.mulf %184, %194 : vector<2x128xf32>
    %205 = arith.addf %203, %204 : vector<2x128xf32>
    %206 = math.tanh %205 : vector<2x128xf32>
    %207 = arith.mulf %202, %206 : vector<2x128xf32>
    %208 = arith.maximumf %171, %207 : vector<2x128xf32>
    %209 = arith.truncf %207 : vector<2x128xf32> to vector<2x128xbf16>
    %c0_85 = arith.constant 0 : index
    %c5 = arith.constant 5 : index
    %c0_86 = arith.constant 0 : index
    %210 = vector.load %arg11[%c0_85, %c5, %c0_86] : memref<2x8x512xf32, #tpu.memory_space<vmem>>, vector<2x1x512xf32>
    %211 = vector.shape_cast %210 : vector<2x1x512xf32> to vector<2x512xf32>
    %cst_87 = arith.constant dense<0.000000e+00> : vector<2x512xf32>
    %212 = tpu.matmul %209, %21, %cst_87 {dimension_numbers = #tpu.dot_dimension_numbers<[1], [0], [0], [1], [0, 0, 1, 1], [], []>} : vector<2x128xbf16>, vector<128x512xbf16>, vector<2x512xf32> -> vector<2x512xf32>
    %213 = arith.addf %211, %212 : vector<2x512xf32>
    %214 = vector.extract_strided_slice %213 {offsets = [0, 0], sizes = [2, 128], strides = [1, 1]} : vector<2x512xf32> to vector<2x128xf32>
    %cst_88 = arith.constant 5.000000e-01 : f32
    %215 = vector.broadcast %cst_88 : f32 to vector<2x128xf32>
    %216 = arith.mulf %215, %214 : vector<2x128xf32>
    %217 = math.tanh %216 : vector<2x128xf32>
    %cst_89 = arith.constant 5.000000e-01 : f32
    %218 = vector.broadcast %cst_89 : f32 to vector<2x128xf32>
    %219 = arith.mulf %218, %217 : vector<2x128xf32>
    %cst_90 = arith.constant 5.000000e-01 : f32
    %220 = vector.broadcast %cst_90 : f32 to vector<2x128xf32>
    %221 = arith.addf %219, %220 : vector<2x128xf32>
    %222 = vector.extract_strided_slice %213 {offsets = [0, 128], sizes = [2, 128], strides = [1, 1]} : vector<2x512xf32> to vector<2x128xf32>
    %cst_91 = arith.constant 5.000000e-01 : f32
    %223 = vector.broadcast %cst_91 : f32 to vector<2x128xf32>
    %224 = arith.mulf %223, %222 : vector<2x128xf32>
    %225 = math.tanh %224 : vector<2x128xf32>
    %cst_92 = arith.constant 5.000000e-01 : f32
    %226 = vector.broadcast %cst_92 : f32 to vector<2x128xf32>
    %227 = arith.mulf %226, %225 : vector<2x128xf32>
    %cst_93 = arith.constant 5.000000e-01 : f32
    %228 = vector.broadcast %cst_93 : f32 to vector<2x128xf32>
    %229 = arith.addf %227, %228 : vector<2x128xf32>
    %230 = vector.extract_strided_slice %213 {offsets = [0, 256], sizes = [2, 128], strides = [1, 1]} : vector<2x512xf32> to vector<2x128xf32>
    %231 = math.tanh %230 : vector<2x128xf32>
    %232 = vector.extract_strided_slice %213 {offsets = [0, 384], sizes = [2, 128], strides = [1, 1]} : vector<2x512xf32> to vector<2x128xf32>
    %cst_94 = arith.constant 5.000000e-01 : f32
    %233 = vector.broadcast %cst_94 : f32 to vector<2x128xf32>
    %234 = arith.mulf %233, %232 : vector<2x128xf32>
    %235 = math.tanh %234 : vector<2x128xf32>
    %cst_95 = arith.constant 5.000000e-01 : f32
    %236 = vector.broadcast %cst_95 : f32 to vector<2x128xf32>
    %237 = arith.mulf %236, %235 : vector<2x128xf32>
    %cst_96 = arith.constant 5.000000e-01 : f32
    %238 = vector.broadcast %cst_96 : f32 to vector<2x128xf32>
    %239 = arith.addf %237, %238 : vector<2x128xf32>
    %240 = arith.mulf %229, %205 : vector<2x128xf32>
    %241 = arith.mulf %221, %231 : vector<2x128xf32>
    %242 = arith.addf %240, %241 : vector<2x128xf32>
    %243 = math.tanh %242 : vector<2x128xf32>
    %244 = arith.mulf %239, %243 : vector<2x128xf32>
    %245 = arith.maximumf %208, %244 : vector<2x128xf32>
    %246 = arith.truncf %244 : vector<2x128xf32> to vector<2x128xbf16>
    %c0_97 = arith.constant 0 : index
    %c6 = arith.constant 6 : index
    %c0_98 = arith.constant 0 : index
    %247 = vector.load %arg11[%c0_97, %c6, %c0_98] : memref<2x8x512xf32, #tpu.memory_space<vmem>>, vector<2x1x512xf32>
    %248 = vector.shape_cast %247 : vector<2x1x512xf32> to vector<2x512xf32>
    %cst_99 = arith.constant dense<0.000000e+00> : vector<2x512xf32>
    %249 = tpu.matmul %246, %21, %cst_99 {dimension_numbers = #tpu.dot_dimension_numbers<[1], [0], [0], [1], [0, 0, 1, 1], [], []>} : vector<2x128xbf16>, vector<128x512xbf16>, vector<2x512xf32> -> vector<2x512xf32>
    %250 = arith.addf %248, %249 : vector<2x512xf32>
    %251 = vector.extract_strided_slice %250 {offsets = [0, 0], sizes = [2, 128], strides = [1, 1]} : vector<2x512xf32> to vector<2x128xf32>
    %cst_100 = arith.constant 5.000000e-01 : f32
    %252 = vector.broadcast %cst_100 : f32 to vector<2x128xf32>
    %253 = arith.mulf %252, %251 : vector<2x128xf32>
    %254 = math.tanh %253 : vector<2x128xf32>
    %cst_101 = arith.constant 5.000000e-01 : f32
    %255 = vector.broadcast %cst_101 : f32 to vector<2x128xf32>
    %256 = arith.mulf %255, %254 : vector<2x128xf32>
    %cst_102 = arith.constant 5.000000e-01 : f32
    %257 = vector.broadcast %cst_102 : f32 to vector<2x128xf32>
    %258 = arith.addf %256, %257 : vector<2x128xf32>
    %259 = vector.extract_strided_slice %250 {offsets = [0, 128], sizes = [2, 128], strides = [1, 1]} : vector<2x512xf32> to vector<2x128xf32>
    %cst_103 = arith.constant 5.000000e-01 : f32
    %260 = vector.broadcast %cst_103 : f32 to vector<2x128xf32>
    %261 = arith.mulf %260, %259 : vector<2x128xf32>
    %262 = math.tanh %261 : vector<2x128xf32>
    %cst_104 = arith.constant 5.000000e-01 : f32
    %263 = vector.broadcast %cst_104 : f32 to vector<2x128xf32>
    %264 = arith.mulf %263, %262 : vector<2x128xf32>
    %cst_105 = arith.constant 5.000000e-01 : f32
    %265 = vector.broadcast %cst_105 : f32 to vector<2x128xf32>
    %266 = arith.addf %264, %265 : vector<2x128xf32>
    %267 = vector.extract_strided_slice %250 {offsets = [0, 256], sizes = [2, 128], strides = [1, 1]} : vector<2x512xf32> to vector<2x128xf32>
    %268 = math.tanh %267 : vector<2x128xf32>
    %269 = vector.extract_strided_slice %250 {offsets = [0, 384], sizes = [2, 128], strides = [1, 1]} : vector<2x512xf32> to vector<2x128xf32>
    %cst_106 = arith.constant 5.000000e-01 : f32
    %270 = vector.broadcast %cst_106 : f32 to vector<2x128xf32>
    %271 = arith.mulf %270, %269 : vector<2x128xf32>
    %272 = math.tanh %271 : vector<2x128xf32>
    %cst_107 = arith.constant 5.000000e-01 : f32
    %273 = vector.broadcast %cst_107 : f32 to vector<2x128xf32>
    %274 = arith.mulf %273, %272 : vector<2x128xf32>
    %cst_108 = arith.constant 5.000000e-01 : f32
    %275 = vector.broadcast %cst_108 : f32 to vector<2x128xf32>
    %276 = arith.addf %274, %275 : vector<2x128xf32>
    %277 = arith.mulf %266, %242 : vector<2x128xf32>
    %278 = arith.mulf %258, %268 : vector<2x128xf32>
    %279 = arith.addf %277, %278 : vector<2x128xf32>
    %280 = math.tanh %279 : vector<2x128xf32>
    %281 = arith.mulf %276, %280 : vector<2x128xf32>
    %282 = arith.maximumf %245, %281 : vector<2x128xf32>
    %283 = arith.truncf %281 : vector<2x128xf32> to vector<2x128xbf16>
    %c0_109 = arith.constant 0 : index
    %c7 = arith.constant 7 : index
    %c0_110 = arith.constant 0 : index
    %284 = vector.load %arg11[%c0_109, %c7, %c0_110] : memref<2x8x512xf32, #tpu.memory_space<vmem>>, vector<2x1x512xf32>
    %285 = vector.shape_cast %284 : vector<2x1x512xf32> to vector<2x512xf32>
    %cst_111 = arith.constant dense<0.000000e+00> : vector<2x512xf32>
    %286 = tpu.matmul %283, %21, %cst_111 {dimension_numbers = #tpu.dot_dimension_numbers<[1], [0], [0], [1], [0, 0, 1, 1], [], []>} : vector<2x128xbf16>, vector<128x512xbf16>, vector<2x512xf32> -> vector<2x512xf32>
    %287 = arith.addf %285, %286 : vector<2x512xf32>
    %288 = vector.extract_strided_slice %287 {offsets = [0, 0], sizes = [2, 128], strides = [1, 1]} : vector<2x512xf32> to vector<2x128xf32>
    %cst_112 = arith.constant 5.000000e-01 : f32
    %289 = vector.broadcast %cst_112 : f32 to vector<2x128xf32>
    %290 = arith.mulf %289, %288 : vector<2x128xf32>
    %291 = math.tanh %290 : vector<2x128xf32>
    %cst_113 = arith.constant 5.000000e-01 : f32
    %292 = vector.broadcast %cst_113 : f32 to vector<2x128xf32>
    %293 = arith.mulf %292, %291 : vector<2x128xf32>
    %cst_114 = arith.constant 5.000000e-01 : f32
    %294 = vector.broadcast %cst_114 : f32 to vector<2x128xf32>
    %295 = arith.addf %293, %294 : vector<2x128xf32>
    %296 = vector.extract_strided_slice %287 {offsets = [0, 128], sizes = [2, 128], strides = [1, 1]} : vector<2x512xf32> to vector<2x128xf32>
    %cst_115 = arith.constant 5.000000e-01 : f32
    %297 = vector.broadcast %cst_115 : f32 to vector<2x128xf32>
    %298 = arith.mulf %297, %296 : vector<2x128xf32>
    %299 = math.tanh %298 : vector<2x128xf32>
    %cst_116 = arith.constant 5.000000e-01 : f32
    %300 = vector.broadcast %cst_116 : f32 to vector<2x128xf32>
    %301 = arith.mulf %300, %299 : vector<2x128xf32>
    %cst_117 = arith.constant 5.000000e-01 : f32
    %302 = vector.broadcast %cst_117 : f32 to vector<2x128xf32>
    %303 = arith.addf %301, %302 : vector<2x128xf32>
    %304 = vector.extract_strided_slice %287 {offsets = [0, 256], sizes = [2, 128], strides = [1, 1]} : vector<2x512xf32> to vector<2x128xf32>
    %305 = math.tanh %304 : vector<2x128xf32>
    %306 = vector.extract_strided_slice %287 {offsets = [0, 384], sizes = [2, 128], strides = [1, 1]} : vector<2x512xf32> to vector<2x128xf32>
    %cst_118 = arith.constant 5.000000e-01 : f32
    %307 = vector.broadcast %cst_118 : f32 to vector<2x128xf32>
    %308 = arith.mulf %307, %306 : vector<2x128xf32>
    %309 = math.tanh %308 : vector<2x128xf32>
    %cst_119 = arith.constant 5.000000e-01 : f32
    %310 = vector.broadcast %cst_119 : f32 to vector<2x128xf32>
    %311 = arith.mulf %310, %309 : vector<2x128xf32>
    %cst_120 = arith.constant 5.000000e-01 : f32
    %312 = vector.broadcast %cst_120 : f32 to vector<2x128xf32>
    %313 = arith.addf %311, %312 : vector<2x128xf32>
    %314 = arith.mulf %303, %279 : vector<2x128xf32>
    %315 = arith.mulf %295, %305 : vector<2x128xf32>
    %316 = arith.addf %314, %315 : vector<2x128xf32>
    %317 = math.tanh %316 : vector<2x128xf32>
    %318 = arith.mulf %313, %317 : vector<2x128xf32>
    %319 = arith.maximumf %282, %318 : vector<2x128xf32>
    %320 = arith.truncf %318 : vector<2x128xf32> to vector<2x128xbf16>
    %c0_121 = arith.constant 0 : index
    %c0_122 = arith.constant 0 : index
    %321 = vector.load %arg12[%c0_121, %c0_122] : memref<2x128xbf16, #tpu.memory_space<vmem>>, vector<2x128xbf16>
    tpu.vector_store %arg12[%c0_121, %c0_122], %320 {strides = array<i32>} : memref<2x128xbf16, #tpu.memory_space<vmem>>, vector<2x128xbf16>,
    %c0_123 = arith.constant 0 : index
    %c0_124 = arith.constant 0 : index
    %322 = vector.load %arg13[%c0_123, %c0_124] : memref<2x128xf32, #tpu.memory_space<vmem>>, vector<2x128xf32>
    tpu.vector_store %arg13[%c0_123, %c0_124], %316 {strides = array<i32>} : memref<2x128xf32, #tpu.memory_space<vmem>>, vector<2x128xf32>,
    %c0_125 = arith.constant 0 : index
    %c0_126 = arith.constant 0 : index
    %323 = vector.load %arg14[%c0_125, %c0_126] : memref<2x128xf32, #tpu.memory_space<vmem>>, vector<2x128xf32>
    tpu.vector_store %arg14[%c0_125, %c0_126], %319 {strides = array<i32>} : memref<2x128xf32, #tpu.memory_space<vmem>>, vector<2x128xf32>,
    %c0_i32_127 = arith.constant 0 : i32
    %324 = arith.cmpi eq, %arg1, %c0_i32_127 : i32
    %325 = arith.extui %324 : i1 to i32
    %c0_i32_128 = arith.constant 0 : i32
    %326 = arith.cmpi ne, %325, %c0_i32_128 : i32
    scf.if %326 {
      %c0_129 = arith.constant 0 : index
      %c0_130 = arith.constant 0 : index
      %327 = vector.load %arg14[%c0_129, %c0_130] : memref<2x128xf32, #tpu.memory_space<vmem>>, vector<2x128xf32>
      %c0_131 = arith.constant 0 : index
      %c0_132 = arith.constant 0 : index
      %328 = vector.load %arg8[%c0_131, %c0_132] : memref<128x128xf32, #tpu.memory_space<vmem>>, vector<128x128xf32>
      %cst_133 = arith.constant dense<0.000000e+00> : vector<2x128xf32>
      %329 = tpu.matmul %327, %328, %cst_133 {dimension_numbers = #tpu.dot_dimension_numbers<[1], [0], [0], [1], [0, 0, 1, 1], [], []>} : vector<2x128xf32>, vector<128x128xf32>, vector<2x128xf32> -> vector<2x128xf32>
      %c0_134 = arith.constant 0 : index
      %c0_135 = arith.constant 0 : index
      %330 = vector.load %arg9[%c0_134, %c0_135] : memref<1x128xf32, #tpu.memory_space<vmem>>, vector<1x128xf32>
      %331 = vector.broadcast %330 : vector<1x128xf32> to vector<2x128xf32>
      %332 = arith.addf %329, %331 : vector<2x128xf32>
      %cst_136 = arith.constant dense<0xFF800000> : vector<2xf32>
      %333 = vector.multi_reduction <maximumf>, %332, %cst_136 [1] : vector<2x128xf32> to vector<2xf32>
      %334 = vector.shape_cast %333 : vector<2xf32> to vector<2x1xf32>
      %335 = vector.broadcast %334 : vector<2x1xf32> to vector<2x128xf32>
      %336 = arith.subf %332, %335 : vector<2x128xf32>
      %337 = math.exp %336 : vector<2x128xf32>
      %cst_137 = arith.constant dense<0.000000e+00> : vector<2xf32>
      %338 = vector.multi_reduction <add>, %337, %cst_137 [1] : vector<2x128xf32> to vector<2xf32>
      %339 = vector.shape_cast %338 : vector<2xf32> to vector<2x1xf32>
      %340 = vector.broadcast %339 : vector<2x1xf32> to vector<2x128xf32>
      %341 = arith.divf %337, %340 : vector<2x128xf32>
      %c0_138 = arith.constant 0 : index
      %c0_139 = arith.constant 0 : index
      %342 = vector.load %arg10[%c0_138, %c0_139] : memref<2x128xf32, #tpu.memory_space<vmem>>, vector<2x128xf32>
      tpu.vector_store %arg10[%c0_138, %c0_139], %341 {strides = array<i32>} : memref<2x128xf32, #tpu.memory_space<vmem>>, vector<2x128xf32>,
    } else {
    }
    return
  }
  func.func @transform_0(%arg0: i32, %arg1: i32) -> (i32, i32, i32) {
    %c0_i32 = arith.constant 0 : i32
    %c0_i32_0 = arith.constant 0 : i32
    return %arg0, %arg1, %c0_i32 : i32, i32, i32
  }
  func.func @transform_1(%arg0: i32, %arg1: i32) -> (i32, i32) {
    %c0_i32 = arith.constant 0 : i32
    %c0_i32_0 = arith.constant 0 : i32
    %c0_i32_1 = arith.constant 0 : i32
    return %c0_i32, %c0_i32_0 : i32, i32
  }
  func.func @transform_2(%arg0: i32, %arg1: i32) -> (i32, i32) {
    %c0_i32 = arith.constant 0 : i32
    %c0_i32_0 = arith.constant 0 : i32
    %c0_i32_1 = arith.constant 0 : i32
    return %c0_i32, %c0_i32_0 : i32, i32
  }
  func.func @transform_3(%arg0: i32, %arg1: i32) -> (i32, i32) {
    %c0_i32 = arith.constant 0 : i32
    %c0_i32_0 = arith.constant 0 : i32
    %c0_i32_1 = arith.constant 0 : i32
    return %c0_i32, %c0_i32_0 : i32, i32
  }
  func.func @transform_4(%arg0: i32, %arg1: i32) -> (i32, i32) {
    %c0_i32 = arith.constant 0 : i32
    %c0_i32_0 = arith.constant 0 : i32
    %c0_i32_1 = arith.constant 0 : i32
    return %c0_i32, %c0_i32_0 : i32, i32
  }
  func.func @transform_5(%arg0: i32, %arg1: i32) -> (i32, i32) {
    %c0_i32 = arith.constant 0 : i32
    %c0_i32_0 = arith.constant 0 : i32
    %c0_i32_1 = arith.constant 0 : i32
    return %c0_i32, %c0_i32_0 : i32, i32
  }
  func.func @transform_6(%arg0: i32, %arg1: i32) -> (i32, i32) {
    %c0_i32 = arith.constant 0 : i32
    %c0_i32_0 = arith.constant 0 : i32
    %c0_i32_1 = arith.constant 0 : i32
    return %c0_i32, %c0_i32_0 : i32, i32
  }
  func.func @transform_7(%arg0: i32, %arg1: i32) -> (i32, i32) {
    %c0_i32 = arith.constant 0 : i32
    %c0_i32_0 = arith.constant 0 : i32
    %c0_i32_1 = arith.constant 0 : i32
    return %c0_i32, %c0_i32_0 : i32, i32
  }
  func.func @transform_8(%arg0: i32, %arg1: i32) -> (i32, i32) {
    %c0_i32 = arith.constant 0 : i32
    %c0_i32_0 = arith.constant 0 : i32
    return %arg0, %c0_i32 : i32, i32
  }
}

</mosaic_0001>

<llo_original>
// kernel: entity_classification_forward.1
$region0: #{entity_classification_forward.1}
  #allocation0 [shape = 'u32[]', space=smem, size = 0x4, offset = 0x4, fixed_abs, tag = 'smem constant byte address 0x4 - core index']
  #allocation1 [shape = 'u32[144,128]{1,0:T(1,128)}', space=vmem, size = 0x12000, scoped, tag = 'internal scratch']
  #allocation2 [shape = 'f32[2,8,512]{2,1,0:T(8,128)}', space=vmem, size = 0x8000, scoped, tag = 'scratch operand']
  #allocation3 [shape = 'bf16[2,128]{1,0:T(2,128)(2,1)}', space=vmem, size = 0x200, scoped, tag = 'scratch operand']
  #allocation4 [shape = 'f32[2,128]{1,0:T(2,128)}', space=vmem, size = 0x400, scoped, tag = 'scratch operand']
  #allocation5 [shape = 'f32[2,128]{1,0:T(2,128)}', space=vmem, size = 0x400, scoped, tag = 'scratch operand']
  %s0 = inlined_call_operand.vmem [shape: f32[2,8,768], index: 0, kind: input, shape index: {}]
  %s1 = inlined_call_operand.vmem [shape: bf16[768,128], index: 1, kind: input, shape index: {}]
  %s2 = inlined_call_operand.vmem [shape: f32[1,128], index: 2, kind: input, shape index: {}]
  %s3 = inlined_call_operand.vmem [shape: bf16[128,512], index: 3, kind: input, shape index: {}]
  %s4 = inlined_call_operand.vmem [shape: bf16[128,512], index: 4, kind: input, shape index: {}]
  %s5 = inlined_call_operand.vmem [shape: f32[1,512], index: 5, kind: input, shape index: {}]
  %s6 = inlined_call_operand.vmem [shape: f32[128,128], index: 6, kind: input, shape index: {}]
  %s7 = inlined_call_operand.vmem [shape: f32[1,128], index: 7, kind: input, shape index: {}]
  %s8 = inlined_call_operand.hbm [shape: f32[2,128], index: 8, kind: output, shape index: {}]
  %s9 = sld [smem:[#allocation0]]
  $region50: #{entity_classification_forward.1} parent=0
    _
  %s11 = ssub.s32 1, %s9
  %s12 = scalar_select 0, %s11, %s9
  $region1: #{entity_classification_forward.1} parent=0
    #allocation6 [shape = 'u8[1024]{0}', space=vmem, size = 0x400, scoped, tag = 'output window, operand 0, single buffered']
    #allocation7 [shape = 's32[1]{0}', space=sflag, size = 0x4, scoped, tag = 'scoped memory for entity_classification_forward.1']
    %13 = vsyncpa [#allocation7], 0
    // Predicated region
    $region2: #{entity_classification_forward.1} parent=1 // pred_check
      _
    $region3: #{entity_classification_forward.1} parent=1 // pred_check_branch
      %15 = sbr.rel (0) target = $region5
    $region4: #{entity_classification_forward.1} parent=1 // pred_region
      _
    $region5: #{entity_classification_forward.1} parent=1 // pred_fallthru
      _
    // Predicated region
    $region6: #{entity_classification_forward.1} parent=1 // pred_check
      _
    $region7: #{entity_classification_forward.1} parent=1 // pred_check_branch
      %17 = sbr.rel (0) target = $region9
    $region8: #{entity_classification_forward.1} parent=1 // pred_region
      _
    $region9: #{entity_classification_forward.1} parent=1 // pred_fallthru
      _
    // Predicated region
    $region10: #{entity_classification_forward.1} parent=1 // pred_check
      _
    $region11: #{entity_classification_forward.1} parent=1 // pred_check_branch
      %19 = sbr.rel (0) target = $region13
    $region12: #{entity_classification_forward.1} parent=1 // pred_region
      _
    $region13: #{entity_classification_forward.1} parent=1 // pred_fallthru
      _
    // Predicated region
    $region14: #{entity_classification_forward.1} parent=1 // pred_check
      _
    $region15: #{entity_classification_forward.1} parent=1 // pred_check_branch
      %21 = sbr.rel (0) target = $region17
    $region16: #{entity_classification_forward.1} parent=1 // pred_region
      _
    $region17: #{entity_classification_forward.1} parent=1 // pred_fallthru
      _
    // Predicated region
    $region18: #{entity_classification_forward.1} parent=1 // pred_check
      _
    $region19: #{entity_classification_forward.1} parent=1 // pred_check_branch
      %23 = sbr.rel (0) target = $region21
    $region20: #{entity_classification_forward.1} parent=1 // pred_region
      _
    $region21: #{entity_classification_forward.1} parent=1 // pred_fallthru
      _
    // Predicated region
    $region22: #{entity_classification_forward.1} parent=1 // pred_check
      _
    $region23: #{entity_classification_forward.1} parent=1 // pred_check_branch
      %25 = sbr.rel (0) target = $region25
    $region24: #{entity_classification_forward.1} parent=1 // pred_region
      _
    $region25: #{entity_classification_forward.1} parent=1 // pred_fallthru
      _
    // Predicated region
    $region26: #{entity_classification_forward.1} parent=1 // pred_check
      _
    $region27: #{entity_classification_forward.1} parent=1 // pred_check_branch
      %27 = sbr.rel (0) target = $region29
    $region28: #{entity_classification_forward.1} parent=1 // pred_region
      _
    $region29: #{entity_classification_forward.1} parent=1 // pred_fallthru
      _
    // Predicated region
    $region30: #{entity_classification_forward.1} parent=1 // pred_check
      _
    $region31: #{entity_classification_forward.1} parent=1 // pred_check_branch
      %29 = sbr.rel (0) target = $region33
    $region32: #{entity_classification_forward.1} parent=1 // pred_region
      _
    $region33: #{entity_classification_forward.1} parent=1 // pred_fallthru
      _
    %p31 = scmp.eq.s32.totalorder 0, 0
    // Predicated region
    $region34: #{entity_classification_forward.1} parent=1 // pred_check
      %p32 = pneg %p31
    $region35: #{entity_classification_forward.1} parent=1 // pred_check_branch
      %34 = sbr.rel (%p32) target = $region37
    $region36: #{entity_classification_forward.1} parent=1 // pred_region
      %35 = vst [vmem:[#allocation3] sm:$0x1] 0
      %36 = vst [vmem:[#allocation4] sm:$0x3] 0.0
      %37 = vst [vmem:[#allocation5] sm:$0x3] -inf
    $region37: #{entity_classification_forward.1} parent=1 // pred_fallthru
      _
    %v38 = vld [vmem:[%s1] sm:$0xf]
    %v39 = vld [vmem:[%s1 + $0x4] sm:$0xf]
    %v40 = vld [vmem:[%s1 + $0x8] sm:$0xf]
    %v41 = vld [vmem:[%s1 + $0xc] sm:$0xf]
    %v42 = vld [vmem:[%s1 + $0x10] sm:$0xf]
    %v43 = vld [vmem:[%s1 + $0x14] sm:$0xf]
    %v44 = vld [vmem:[%s1 + $0x18] sm:$0xf]
    %v45 = vld [vmem:[%s1 + $0x1c] sm:$0xf]
    %v46 = vld [vmem:[%s1 + $0x20] sm:$0xf]
    %v47 = vld [vmem:[%s1 + $0x24] sm:$0xf]
    %v48 = vld [vmem:[%s1 + $0x28] sm:$0xf]
    %v49 = vld [vmem:[%s1 + $0x2c] sm:$0xf]
    %v50 = vld [vmem:[%s1 + $0x30] sm:$0xf]
    %v51 = vld [vmem:[%s1 + $0x34] sm:$0xf]
    %v52 = vld [vmem:[%s1 + $0x38] sm:$0xf]
    %v53 = vld [vmem:[%s1 + $0x3c] sm:$0xf]
    %v54 = vld [vmem:[%s1 + $0x40] sm:$0xf]
    %v55 = vld [vmem:[%s1 + $0x44] sm:$0xf]
    %v56 = vld [vmem:[%s1 + $0x48] sm:$0xf]
    %v57 = vld [vmem:[%s1 + $0x4c] sm:$0xf]
    %v58 = vld [vmem:[%s1 + $0x50] sm:$0xf]
    %v59 = vld [vmem:[%s1 + $0x54] sm:$0xf]
    %v60 = vld [vmem:[%s1 + $0x58] sm:$0xf]
    %v61 = vld [vmem:[%s1 + $0x5c] sm:$0xf]
    %v62 = vld [vmem:[%s1 + $0x60] sm:$0xf]
    %v63 = vld [vmem:[%s1 + $0x64] sm:$0xf]
    %v64 = vld [vmem:[%s1 + $0x68] sm:$0xf]
    %v65 = vld [vmem:[%s1 + $0x6c] sm:$0xf]
    %v66 = vld [vmem:[%s1 + $0x70] sm:$0xf]
    %v67 = vld [vmem:[%s1 + $0x74] sm:$0xf]
    %v68 = vld [vmem:[%s1 + $0x78] sm:$0xf]
    %v69 = vld [vmem:[%s1 + $0x7c] sm:$0xf]
    %v70 = vld [vmem:[%s1 + $0x80] sm:$0xf]
    %v71 = vld [vmem:[%s1 + $0x84] sm:$0xf]
    %v72 = vld [vmem:[%s1 + $0x88] sm:$0xf]
    %v73 = vld [vmem:[%s1 + $0x8c] sm:$0xf]
    %v74 = vld [vmem:[%s1 + $0x90] sm:$0xf]
    %v75 = vld [vmem:[%s1 + $0x94] sm:$0xf]
    %v76 = vld [vmem:[%s1 + $0x98] sm:$0xf]
    %v77 = vld [vmem:[%s1 + $0x9c] sm:$0xf]
    %v78 = vld [vmem:[%s1 + $0xa0] sm:$0xf]
    %v79 = vld [vmem:[%s1 + $0xa4] sm:$0xf]
    %v80 = vld [vmem:[%s1 + $0xa8] sm:$0xf]
    %v81 = vld [vmem:[%s1 + $0xac] sm:$0xf]
    %v82 = vld [vmem:[%s1 + $0xb0] sm:$0xf]
    %v83 = vld [vmem:[%s1 + $0xb4] sm:$0xf]
    %v84 = vld [vmem:[%s1 + $0xb8] sm:$0xf]
    %v85 = vld [vmem:[%s1 + $0xbc] sm:$0xf]
    %v86 = vld [vmem:[%s1 + $0xc0] sm:$0xf]
    %v87 = vld [vmem:[%s1 + $0xc4] sm:$0xf]
    %v88 = vld [vmem:[%s1 + $0xc8] sm:$0xf]
    %v89 = vld [vmem:[%s1 + $0xcc] sm:$0xf]
    %v90 = vld [vmem:[%s1 + $0xd0] sm:$0xf]
    %v91 = vld [vmem:[%s1 + $0xd4] sm:$0xf]
    %v92 = vld [vmem:[%s1 + $0xd8] sm:$0xf]
    %v93 = vld [vmem:[%s1 + $0xdc] sm:$0xf]
    %v94 = vld [vmem:[%s1 + $0xe0] sm:$0xf]
    %v95 = vld [vmem:[%s1 + $0xe4] sm:$0xf]
    %v96 = vld [vmem:[%s1 + $0xe8] sm:$0xf]
    %v97 = vld [vmem:[%s1 + $0xec] sm:$0xf]
    %v98 = vld [vmem:[%s1 + $0xf0] sm:$0xf]
    %v99 = vld [vmem:[%s1 + $0xf4] sm:$0xf]
    %v100 = vld [vmem:[%s1 + $0xf8] sm:$0xf]
    %v101 = vld [vmem:[%s1 + $0xfc] sm:$0xf]
    %v102 = vld [vmem:[%s1 + $0x100] sm:$0xf]
    %v103 = vld [vmem:[%s1 + $0x104] sm:$0xf]
    %v104 = vld [vmem:[%s1 + $0x108] sm:$0xf]
    %v105 = vld [vmem:[%s1 + $0x10c] sm:$0xf]
    %v106 = vld [vmem:[%s1 + $0x110] sm:$0xf]
    %v107 = vld [vmem:[%s1 + $0x114] sm:$0xf]
    %v108 = vld [vmem:[%s1 + $0x118] sm:$0xf]
    %v109 = vld [vmem:[%s1 + $0x11c] sm:$0xf]
    %v110 = vld [vmem:[%s1 + $0x120] sm:$0xf]
    %v111 = vld [vmem:[%s1 + $0x124] sm:$0xf]
    %v112 = vld [vmem:[%s1 + $0x128] sm:$0xf]
    %v113 = vld [vmem:[%s1 + $0x12c] sm:$0xf]
    %v114 = vld [vmem:[%s1 + $0x130] sm:$0xf]
    %v115 = vld [vmem:[%s1 + $0x134] sm:$0xf]
    %v116 = vld [vmem:[%s1 + $0x138] sm:$0xf]
    %v117 = vld [vmem:[%s1 + $0x13c] sm:$0xf]
    %v118 = vld [vmem:[%s1 + $0x140] sm:$0xf]
    %v119 = vld [vmem:[%s1 + $0x144] sm:$0xf]
    %v120 = vld [vmem:[%s1 + $0x148] sm:$0xf]
    %v121 = vld [vmem:[%s1 + $0x14c] sm:$0xf]
    %v122 = vld [vmem:[%s1 + $0x150] sm:$0xf]
    %v123 = vld [vmem:[%s1 + $0x154] sm:$0xf]
    %v124 = vld [vmem:[%s1 + $0x158] sm:$0xf]
    %v125 = vld [vmem:[%s1 + $0x15c] sm:$0xf]
    %v126 = vld [vmem:[%s1 + $0x160] sm:$0xf]
    %v127 = vld [vmem:[%s1 + $0x164] sm:$0xf]
    %v128 = vld [vmem:[%s1 + $0x168] sm:$0xf]
    %v129 = vld [vmem:[%s1 + $0x16c] sm:$0xf]
    %v130 = vld [vmem:[%s1 + $0x170] sm:$0xf]
    %v131 = vld [vmem:[%s1 + $0x174] sm:$0xf]
    %v132 = vld [vmem:[%s1 + $0x178] sm:$0xf]
    %v133 = vld [vmem:[%s1 + $0x17c] sm:$0xf]
    %v134 = vld [vmem:[%s3] sm:$0xff]
    %v135 = vld [vmem:[%s3 + $0x8] sm:$0xff]
    %v136 = vld [vmem:[%s3 + $0x10] sm:$0xff]
    %v137 = vld [vmem:[%s3 + $0x18] sm:$0xff]
    %v138 = vld [vmem:[%s3 + $0x20] sm:$0xff]
    %v139 = vld [vmem:[%s3 + $0x28] sm:$0xff]
    %v140 = vld [vmem:[%s3 + $0x30] sm:$0xff]
    %v141 = vld [vmem:[%s3 + $0x38] sm:$0xff]
    %v142 = vld [vmem:[%s3 + $0x40] sm:$0xff]
    %v143 = vld [vmem:[%s3 + $0x48] sm:$0xff]
    %v144 = vld [vmem:[%s3 + $0x50] sm:$0xff]
    %v145 = vld [vmem:[%s3 + $0x58] sm:$0xff]
    %v146 = vld [vmem:[%s3 + $0x60] sm:$0xff]
    %v147 = vld [vmem:[%s3 + $0x68] sm:$0xff]
    %v148 = vld [vmem:[%s3 + $0x70] sm:$0xff]
    %v149 = vld [vmem:[%s3 + $0x78] sm:$0xff]
    %v150 = vld [vmem:[%s3 + $0x80] sm:$0xff]
    %v151 = vld [vmem:[%s3 + $0x88] sm:$0xff]
    %v152 = vld [vmem:[%s3 + $0x90] sm:$0xff]
    %v153 = vld [vmem:[%s3 + $0x98] sm:$0xff]
    %v154 = vld [vmem:[%s3 + $0xa0] sm:$0xff]
    %v155 = vld [vmem:[%s3 + $0xa8] sm:$0xff]
    %v156 = vld [vmem:[%s3 + $0xb0] sm:$0xff]
    %v157 = vld [vmem:[%s3 + $0xb8] sm:$0xff]
    %v158 = vld [vmem:[%s3 + $0xc0] sm:$0xff]
    %v159 = vld [vmem:[%s3 + $0xc8] sm:$0xff]
    %v160 = vld [vmem:[%s3 + $0xd0] sm:$0xff]
    %v161 = vld [vmem:[%s3 + $0xd8] sm:$0xff]
    %v162 = vld [vmem:[%s3 + $0xe0] sm:$0xff]
    %v163 = vld [vmem:[%s3 + $0xe8] sm:$0xff]
    %v164 = vld [vmem:[%s3 + $0xf0] sm:$0xff]
    %v165 = vld [vmem:[%s3 + $0xf8] sm:$0xff]
    %v166 = vld [vmem:[%s2] sm:$0x1]
    %v167 = vld [vmem:[%s5] sm:$0xf]
    %v168 = vld [vmem:[%s0] sm:$0xff]
    %v169 = vld [vmem:[%s0 + $0x8] sm:$0xff]
    %v170 = vld [vmem:[%s0 + $0x10] sm:$0xff]
    %v171 = vld [vmem:[%s0 + $0x18] sm:$0xff]
    %v172 = vld [vmem:[%s0 + $0x20] sm:$0xff]
    %v173 = vld [vmem:[%s0 + $0x28] sm:$0xff]
    %v174 = vld [vmem:[%s0 + $0x30] sm:$0xff]
    %v175 = vld [vmem:[%s0 + $0x38] sm:$0xff]
    %v176 = vld [vmem:[%s0 + $0x40] sm:$0xff]
    %v177 = vld [vmem:[%s0 + $0x48] sm:$0xff]
    %v178 = vld [vmem:[%s0 + $0x50] sm:$0xff]
    %v179 = vld [vmem:[%s0 + $0x58] sm:$0xff]
    %v180 = vpack.c.bf16 %v168, %v168
    %v181 = vpack.c.bf16 %v169, %v169
    %v182 = vpack.c.bf16 %v170, %v170
    %v183 = vpack.c.bf16 %v171, %v171
    %v184 = vpack.c.bf16 %v172, %v172
    %v185 = vpack.c.bf16 %v173, %v173
    %v186 = vpack.c.bf16 %v174, %v174
    %v187 = vpack.c.bf16 %v175, %v175
    %v188 = vpack.c.bf16 %v176, %v176
    %v189 = vpack.c.bf16 %v177, %v177
    %v190 = vpack.c.bf16 %v178, %v178
    %v191 = vpack.c.bf16 %v179, %v179
    %v204 = vunpack.c.l.b16 %v180
    %v205 = vunpack.c.l.b16 %v181
    %v206 = vunpack.c.l.b16 %v182
    %v207 = vunpack.c.l.b16 %v183
    %v208 = vunpack.c.l.b16 %v184
    %v209 = vunpack.c.l.b16 %v185
    %v210 = vunpack.c.l.b16 %v186
    %v211 = vunpack.c.l.b16 %v187
    %v212 = vunpack.c.l.b16 %v188
    %v213 = vunpack.c.l.b16 %v189
    %v214 = vunpack.c.l.b16 %v190
    %v215 = vunpack.c.l.b16 %v191
    %v217 = vlaneseq
    %v218 = vshrl.u32 %v217, 7
    %v219 = vsub.s32 0, %v218
    %v220 = vrot.slane %v166, %v219
    %v222 = vpack.c.b16 %v210, %v204
    %v223 = vpack.c.b16 %v211, %v205
    %v224 = vpack.c.b16 %v212, %v206
    %v225 = vpack.c.b16 %v213, %v207
    %v226 = vpack.c.b16 %v214, %v208
    %v227 = vpack.c.b16 %v215, %v209
    %v330 = vunpack.c.l.b16 %v38
    %v331 = vunpack.c.l.b16 %v39
    %v332 = vunpack.c.l.b16 %v40
    %v333 = vunpack.c.l.b16 %v41
    %v334 = vunpack.c.l.b16 %v42
    %v335 = vunpack.c.l.b16 %v43
    %v336 = vunpack.c.l.b16 %v44
    %v337 = vunpack.c.l.b16 %v45
    %v338 = vunpack.c.l.b16 %v46
    %v339 = vunpack.c.l.b16 %v47
    %v340 = vunpack.c.l.b16 %v48
    %v341 = vunpack.c.l.b16 %v49
    %v342 = vunpack.c.l.b16 %v50
    %v343 = vunpack.c.l.b16 %v51
    %v344 = vunpack.c.l.b16 %v52
    %v345 = vunpack.c.l.b16 %v53
    %v346 = vunpack.c.l.b16 %v54
    %v347 = vunpack.c.l.b16 %v55
    %v348 = vunpack.c.l.b16 %v56
    %v349 = vunpack.c.l.b16 %v57
    %v350 = vunpack.c.l.b16 %v58
    %v351 = vunpack.c.l.b16 %v59
    %v352 = vunpack.c.l.b16 %v60
    %v353 = vunpack.c.l.b16 %v61
    %v354 = vunpack.c.l.b16 %v62
    %v355 = vunpack.c.l.b16 %v63
    %v356 = vunpack.c.l.b16 %v64
    %v357 = vunpack.c.l.b16 %v65
    %v358 = vunpack.c.l.b16 %v66
    %v359 = vunpack.c.l.b16 %v67
    %v360 = vunpack.c.l.b16 %v68
    %v361 = vunpack.c.l.b16 %v69
    %v362 = vunpack.c.l.b16 %v70
    %v363 = vunpack.c.l.b16 %v71
    %v364 = vunpack.c.l.b16 %v72
    %v365 = vunpack.c.l.b16 %v73
    %v366 = vunpack.c.l.b16 %v74
    %v367 = vunpack.c.l.b16 %v75
    %v368 = vunpack.c.l.b16 %v76
    %v369 = vunpack.c.l.b16 %v77
    %v370 = vunpack.c.l.b16 %v78
    %v371 = vunpack.c.l.b16 %v79
    %v372 = vunpack.c.l.b16 %v80
    %v373 = vunpack.c.l.b16 %v81
    %v374 = vunpack.c.l.b16 %v82
    %v375 = vunpack.c.l.b16 %v83
    %v376 = vunpack.c.l.b16 %v84
    %v377 = vunpack.c.l.b16 %v85
    %v378 = vunpack.c.l.b16 %v86
    %v379 = vunpack.c.l.b16 %v87
    %v380 = vunpack.c.l.b16 %v88
    %v381 = vunpack.c.l.b16 %v89
    %v382 = vunpack.c.l.b16 %v90
    %v383 = vunpack.c.l.b16 %v91
    %v384 = vunpack.c.l.b16 %v92
    %v385 = vunpack.c.l.b16 %v93
    %v386 = vunpack.c.l.b16 %v94
    %v387 = vunpack.c.l.b16 %v95
    %v388 = vunpack.c.l.b16 %v96
    %v389 = vunpack.c.l.b16 %v97
    %v390 = vunpack.c.l.b16 %v98
    %v391 = vunpack.c.l.b16 %v99
    %v392 = vunpack.c.l.b16 %v100
    %v393 = vunpack.c.l.b16 %v101
    %v394 = vunpack.c.l.b16 %v102
    %v395 = vunpack.c.l.b16 %v103
    %v396 = vunpack.c.l.b16 %v104
    %v397 = vunpack.c.l.b16 %v105
    %v398 = vunpack.c.l.b16 %v106
    %v399 = vunpack.c.l.b16 %v107
    %v400 = vunpack.c.l.b16 %v108
    %v401 = vunpack.c.l.b16 %v109
    %v402 = vunpack.c.l.b16 %v110
    %v403 = vunpack.c.l.b16 %v111
    %v404 = vunpack.c.l.b16 %v112
    %v405 = vunpack.c.l.b16 %v113
    %v406 = vunpack.c.l.b16 %v114
    %v407 = vunpack.c.l.b16 %v115
    %v408 = vunpack.c.l.b16 %v116
    %v409 = vunpack.c.l.b16 %v117
    %v410 = vunpack.c.l.b16 %v118
    %v411 = vunpack.c.l.b16 %v119
    %v412 = vunpack.c.l.b16 %v120
    %v413 = vunpack.c.l.b16 %v121
    %v414 = vunpack.c.l.b16 %v122
    %v415 = vunpack.c.l.b16 %v123
    %v416 = vunpack.c.l.b16 %v124
    %v417 = vunpack.c.l.b16 %v125
    %v418 = vunpack.c.l.b16 %v126
    %v419 = vunpack.c.l.b16 %v127
    %v420 = vunpack.c.l.b16 %v128
    %v421 = vunpack.c.l.b16 %v129
    %v422 = vunpack.c.l.b16 %v130
    %v423 = vunpack.c.l.b16 %v131
    %v424 = vunpack.c.l.b16 %v132
    %v425 = vunpack.c.l.b16 %v133
    %v426 = vpack.c.b16 %v331, %v330
    %v427 = vpack.c.b16 %v333, %v332
    %v428 = vpack.c.b16 %v335, %v334
    %v429 = vpack.c.b16 %v337, %v336
    %v430 = vpack.c.b16 %v339, %v338
    %v431 = vpack.c.b16 %v341, %v340
    %v432 = vpack.c.b16 %v343, %v342
    %v433 = vpack.c.b16 %v345, %v344
    %v434 = vpack.c.b16 %v347, %v346
    %v435 = vpack.c.b16 %v349, %v348
    %v436 = vpack.c.b16 %v351, %v350
    %v437 = vpack.c.b16 %v353, %v352
    %v438 = vpack.c.b16 %v355, %v354
    %v439 = vpack.c.b16 %v357, %v356
    %v440 = vpack.c.b16 %v359, %v358
    %v441 = vpack.c.b16 %v361, %v360
    %v442 = vpack.c.b16 %v363, %v362
    %v443 = vpack.c.b16 %v365, %v364
    %v444 = vpack.c.b16 %v367, %v366
    %v445 = vpack.c.b16 %v369, %v368
    %v446 = vpack.c.b16 %v371, %v370
    %v447 = vpack.c.b16 %v373, %v372
    %v448 = vpack.c.b16 %v375, %v374
    %v449 = vpack.c.b16 %v377, %v376
    %v450 = vpack.c.b16 %v379, %v378
    %v451 = vpack.c.b16 %v381, %v380
    %v452 = vpack.c.b16 %v383, %v382
    %v453 = vpack.c.b16 %v385, %v384
    %v454 = vpack.c.b16 %v387, %v386
    %v455 = vpack.c.b16 %v389, %v388
    %v456 = vpack.c.b16 %v391, %v390
    %v457 = vpack.c.b16 %v393, %v392
    %v458 = vpack.c.b16 %v395, %v394
    %v459 = vpack.c.b16 %v397, %v396
    %v460 = vpack.c.b16 %v399, %v398
    %v461 = vpack.c.b16 %v401, %v400
    %v462 = vpack.c.b16 %v403, %v402
    %v463 = vpack.c.b16 %v405, %v404
    %v464 = vpack.c.b16 %v407, %v406
    %v465 = vpack.c.b16 %v409, %v408
    %v466 = vpack.c.b16 %v411, %v410
    %v467 = vpack.c.b16 %v413, %v412
    %v468 = vpack.c.b16 %v415, %v414
    %v469 = vpack.c.b16 %v417, %v416
    %v470 = vpack.c.b16 %v419, %v418
    %v471 = vpack.c.b16 %v421, %v420
    %v472 = vpack.c.b16 %v423, %v422
    %v473 = vpack.c.b16 %v425, %v424
    %522 = vmatprep.subr.bf16.mxu0 0
    %523 = vmatpush1.bf16.msra.mxu0 %v426
    %524 = vmatprep.subr.bf16.mxu0 0
    %525 = vmatpush1.bf16.msra.mxu0 %v427
    %526 = vmatprep.subr.bf16.mxu0 0
    %527 = vmatpush1.bf16.msra.mxu0 %v428
    %528 = vmatprep.subr.bf16.mxu0 0
    %529 = vmatpush1.bf16.msra.mxu0 %v429
    %530 = vmatprep.subr.bf16.mxu0 0
    %531 = vmatpush1.bf16.msra.mxu0 %v430
    %532 = vmatprep.subr.bf16.mxu0 0
    %533 = vmatpush1.bf16.msra.mxu0 %v431
    %534 = vmatprep.subr.bf16.mxu0 0
    %535 = vmatpush1.bf16.msra.mxu0 %v432
    %536 = vmatprep.subr.bf16.mxu0 0
    %537 = vmatpush1.bf16.msra.mxu0 %v433
    %538 = vmatprep.subr.bf16.mxu0 0
    %539 = vmatpush1.bf16.msra.mxu0 %v434
    %540 = vmatprep.subr.bf16.mxu0 0
    %541 = vmatpush1.bf16.msra.mxu0 %v435
    %542 = vmatprep.subr.bf16.mxu0 0
    %543 = vmatpush1.bf16.msra.mxu0 %v436
    %544 = vmatprep.subr.bf16.mxu0 0
    %545 = vmatpush1.bf16.msra.mxu0 %v437
    %546 = vmatprep.subr.bf16.mxu0 0
    %547 = vmatpush1.bf16.msra.mxu0 %v438
    %548 = vmatprep.subr.bf16.mxu0 0
    %549 = vmatpush1.bf16.msra.mxu0 %v439
    %550 = vmatprep.subr.bf16.mxu0 0
    %551 = vmatpush1.bf16.msra.mxu0 %v440
    %552 = vmatprep.subr.bf16.mxu0 0
    %553 = vmatpush1.bf16.msra.mxu0 %v441
    %554 = vmatprep.mubr.bf16.mxu0 %v223
    %555 = vmatmul.mubr.bf16.gmra.mrb[0].mxu0 %v222
    %v556 = vpop.f32.mrb[0].mxu0
    %v557 = vadd.f32 %v220, %v556
    %v558 = vpop.f32.mrb[0].mxu0
    %v559 = vpop.f32.mrb[0].mxu0
    %v560 = vadd.f32 %v220, %v559
    %v561 = vpop.f32.mrb[0].mxu0
    %562 = vdwg.mxu0
    %563 = vmatprep.subr.bf16.mxu0 0
    %564 = vmatpush1.bf16.msra.mxu0 %v442
    %565 = vmatprep.subr.bf16.mxu0 0
    %566 = vmatpush1.bf16.msra.mxu0 %v443
    %567 = vmatprep.subr.bf16.mxu0 0
    %568 = vmatpush1.bf16.msra.mxu0 %v444
    %569 = vmatprep.subr.bf16.mxu0 0
    %570 = vmatpush1.bf16.msra.mxu0 %v445
    %571 = vmatprep.subr.bf16.mxu0 0
    %572 = vmatpush1.bf16.msra.mxu0 %v446
    %573 = vmatprep.subr.bf16.mxu0 0
    %574 = vmatpush1.bf16.msra.mxu0 %v447
    %575 = vmatprep.subr.bf16.mxu0 0
    %576 = vmatpush1.bf16.msra.mxu0 %v448
    %577 = vmatprep.subr.bf16.mxu0 0
    %578 = vmatpush1.bf16.msra.mxu0 %v449
    %579 = vmatprep.subr.bf16.mxu0 0
    %580 = vmatpush1.bf16.msra.mxu0 %v450
    %581 = vmatprep.subr.bf16.mxu0 0
    %582 = vmatpush1.bf16.msra.mxu0 %v451
    %583 = vmatprep.subr.bf16.mxu0 0
    %584 = vmatpush1.bf16.msra.mxu0 %v452
    %585 = vmatprep.subr.bf16.mxu0 0
    %586 = vmatpush1.bf16.msra.mxu0 %v453
    %587 = vmatprep.subr.bf16.mxu0 0
    %588 = vmatpush1.bf16.msra.mxu0 %v454
    %589 = vmatprep.subr.bf16.mxu0 0
    %590 = vmatpush1.bf16.msra.mxu0 %v455
    %591 = vmatprep.subr.bf16.mxu0 0
    %592 = vmatpush1.bf16.msra.mxu0 %v456
    %593 = vmatprep.subr.bf16.mxu0 0
    %594 = vmatpush1.bf16.msra.mxu0 %v457
    %595 = vmatprep.mubr.bf16.mxu0 %v225
    %596 = vmatmul.mubr.bf16.gmra.mrb[0].mxu0 %v224
    %v597 = vpop.f32.mrb[0].mxu0
    %v598 = vadd.f32 %v557, %v597
    %v599 = vpop.f32.mrb[0].mxu0
    %v600 = vpop.f32.mrb[0].mxu0
    %v601 = vadd.f32 %v560, %v600
    %v602 = vpop.f32.mrb[0].mxu0
    %603 = vdwg.mxu0
    %604 = vmatprep.subr.bf16.mxu0 0
    %605 = vmatpush1.bf16.msra.mxu0 %v458
    %606 = vmatprep.subr.bf16.mxu0 0
    %607 = vmatpush1.bf16.msra.mxu0 %v459
    %608 = vmatprep.subr.bf16.mxu0 0
    %609 = vmatpush1.bf16.msra.mxu0 %v460
    %610 = vmatprep.subr.bf16.mxu0 0
    %611 = vmatpush1.bf16.msra.mxu0 %v461
    %612 = vmatprep.subr.bf16.mxu0 0
    %613 = vmatpush1.bf16.msra.mxu0 %v462
    %614 = vmatprep.subr.bf16.mxu0 0
    %615 = vmatpush1.bf16.msra.mxu0 %v463
    %616 = vmatprep.subr.bf16.mxu0 0
    %617 = vmatpush1.bf16.msra.mxu0 %v464
    %618 = vmatprep.subr.bf16.mxu0 0
    %619 = vmatpush1.bf16.msra.mxu0 %v465
    %620 = vmatprep.subr.bf16.mxu0 0
    %621 = vmatpush1.bf16.msra.mxu0 %v466
    %622 = vmatprep.subr.bf16.mxu0 0
    %623 = vmatpush1.bf16.msra.mxu0 %v467
    %624 = vmatprep.subr.bf16.mxu0 0
    %625 = vmatpush1.bf16.msra.mxu0 %v468
    %626 = vmatprep.subr.bf16.mxu0 0
    %627 = vmatpush1.bf16.msra.mxu0 %v469
    %628 = vmatprep.subr.bf16.mxu0 0
    %629 = vmatpush1.bf16.msra.mxu0 %v470
    %630 = vmatprep.subr.bf16.mxu0 0
    %631 = vmatpush1.bf16.msra.mxu0 %v471
    %632 = vmatprep.subr.bf16.mxu0 0
    %633 = vmatpush1.bf16.msra.mxu0 %v472
    %634 = vmatprep.subr.bf16.mxu0 0
    %635 = vmatpush1.bf16.msra.mxu0 %v473
    %636 = vmatprep.mubr.bf16.mxu0 %v227
    %637 = vmatmul.mubr.bf16.gmra.mrb[0].mxu0 %v226
    %v638 = vpop.f32.mrb[0].mxu0
    %v639 = vadd.f32 %v598, %v638
    %v640 = vpop.f32.mrb[0].mxu0
    %v641 = vpop.f32.mrb[0].mxu0
    %v642 = vadd.f32 %v601, %v641
    %v643 = vpop.f32.mrb[0].mxu0
    %644 = vdwg.mxu0
    %v645 = vmax.f32 %v639, 0.0
    %v646 = vmax.f32 %v642, 0.0
    %v647 = vpack.c.bf16 %v646, %v645
    %v649 = vlaneseq
    %v650 = vshrl.u32 %v649, 7
    %v651 = vsub.s32 0, %v650
    %v652 = vrot.slane %v167, %v651
    %v653 = vlaneseq
    %v654 = vshrl.u32 %v653, 7
    %v655 = vsub.s32 1, %v654
    %v656 = vrot.slane %v167, %v655
    %v657 = vlaneseq
    %v658 = vshrl.u32 %v657, 7
    %v659 = vsub.s32 2, %v658
    %v660 = vrot.slane %v167, %v659
    %v661 = vlaneseq
    %v662 = vshrl.u32 %v661, 7
    %v663 = vsub.s32 3, %v662
    %v664 = vrot.slane %v167, %v663
    %v701 = vunpack.c.l.b16 %v134
    %v702 = vunpack.c.h.b16 %v134
    %v703 = vunpack.c.l.b16 %v135
    %v704 = vunpack.c.h.b16 %v135
    %v705 = vunpack.c.l.b16 %v136
    %v706 = vunpack.c.h.b16 %v136
    %v707 = vunpack.c.l.b16 %v137
    %v708 = vunpack.c.h.b16 %v137
    %v709 = vunpack.c.l.b16 %v138
    %v710 = vunpack.c.h.b16 %v138
    %v711 = vunpack.c.l.b16 %v139
    %v712 = vunpack.c.h.b16 %v139
    %v713 = vunpack.c.l.b16 %v140
    %v714 = vunpack.c.h.b16 %v140
    %v715 = vunpack.c.l.b16 %v141
    %v716 = vunpack.c.h.b16 %v141
    %v717 = vunpack.c.l.b16 %v142
    %v718 = vunpack.c.h.b16 %v142
    %v719 = vunpack.c.l.b16 %v143
    %v720 = vunpack.c.h.b16 %v143
    %v721 = vunpack.c.l.b16 %v144
    %v722 = vunpack.c.h.b16 %v144
    %v723 = vunpack.c.l.b16 %v145
    %v724 = vunpack.c.h.b16 %v145
    %v725 = vunpack.c.l.b16 %v146
    %v726 = vunpack.c.h.b16 %v146
    %v727 = vunpack.c.l.b16 %v147
    %v728 = vunpack.c.h.b16 %v147
    %v729 = vunpack.c.l.b16 %v148
    %v730 = vunpack.c.h.b16 %v148
    %v731 = vunpack.c.l.b16 %v149
    %v732 = vunpack.c.h.b16 %v149
    %v733 = vunpack.c.l.b16 %v150
    %v734 = vunpack.c.h.b16 %v150
    %v735 = vunpack.c.l.b16 %v151
    %v736 = vunpack.c.h.b16 %v151
    %v737 = vunpack.c.l.b16 %v152
    %v738 = vunpack.c.h.b16 %v152
    %v739 = vunpack.c.l.b16 %v153
    %v740 = vunpack.c.h.b16 %v153
    %v741 = vunpack.c.l.b16 %v154
    %v742 = vunpack.c.h.b16 %v154
    %v743 = vunpack.c.l.b16 %v155
    %v744 = vunpack.c.h.b16 %v155
    %v745 = vunpack.c.l.b16 %v156
    %v746 = vunpack.c.h.b16 %v156
    %v747 = vunpack.c.l.b16 %v157
    %v748 = vunpack.c.h.b16 %v157
    %v749 = vunpack.c.l.b16 %v158
    %v750 = vunpack.c.h.b16 %v158
    %v751 = vunpack.c.l.b16 %v159
    %v752 = vunpack.c.h.b16 %v159
    %v753 = vunpack.c.l.b16 %v160
    %v754 = vunpack.c.h.b16 %v160
    %v755 = vunpack.c.l.b16 %v161
    %v756 = vunpack.c.h.b16 %v161
    %v757 = vunpack.c.l.b16 %v162
    %v758 = vunpack.c.h.b16 %v162
    %v759 = vunpack.c.l.b16 %v163
    %v760 = vunpack.c.h.b16 %v163
    %v761 = vunpack.c.l.b16 %v164
    %v762 = vunpack.c.h.b16 %v164
    %v763 = vunpack.c.l.b16 %v165
    %v764 = vunpack.c.h.b16 %v165
    %v765 = vpack.c.b16 %v705, %v701
    %v766 = vpack.c.b16 %v706, %v702
    %v767 = vpack.c.b16 %v707, %v703
    %v768 = vpack.c.b16 %v708, %v704
    %v769 = vpack.c.b16 %v713, %v709
    %v770 = vpack.c.b16 %v714, %v710
    %v771 = vpack.c.b16 %v715, %v711
    %v772 = vpack.c.b16 %v716, %v712
    %v773 = vpack.c.b16 %v721, %v717
    %v774 = vpack.c.b16 %v722, %v718
    %v775 = vpack.c.b16 %v723, %v719
    %v776 = vpack.c.b16 %v724, %v720
    %v777 = vpack.c.b16 %v729, %v725
    %v778 = vpack.c.b16 %v730, %v726
    %v779 = vpack.c.b16 %v731, %v727
    %v780 = vpack.c.b16 %v732, %v728
    %v781 = vpack.c.b16 %v737, %v733
    %v782 = vpack.c.b16 %v738, %v734
    %v783 = vpack.c.b16 %v739, %v735
    %v784 = vpack.c.b16 %v740, %v736
    %v785 = vpack.c.b16 %v745, %v741
    %v786 = vpack.c.b16 %v746, %v742
    %v787 = vpack.c.b16 %v747, %v743
    %v788 = vpack.c.b16 %v748, %v744
    %v789 = vpack.c.b16 %v753, %v749
    %v790 = vpack.c.b16 %v754, %v750
    %v791 = vpack.c.b16 %v755, %v751
    %v792 = vpack.c.b16 %v756, %v752
    %v793 = vpack.c.b16 %v761, %v757
    %v794 = vpack.c.b16 %v762, %v758
    %v795 = vpack.c.b16 %v763, %v759
    %v796 = vpack.c.b16 %v764, %v760
    %829 = vmatprep.subr.bf16.mxu0 %v766
    %830 = vmatpush1.bf16.msra.mxu0 %v765
    %831 = vmatprep.subr.bf16.mxu0 %v770
    %832 = vmatpush1.bf16.msra.mxu0 %v769
    %833 = vmatprep.subr.bf16.mxu0 %v774
    %834 = vmatpush1.bf16.msra.mxu0 %v773
    %835 = vmatprep.subr.bf16.mxu0 %v778
    %836 = vmatpush1.bf16.msra.mxu0 %v777
    %837 = vmatprep.subr.bf16.mxu0 %v782
    %838 = vmatpush1.bf16.msra.mxu0 %v781
    %839 = vmatprep.subr.bf16.mxu0 %v786
    %840 = vmatpush1.bf16.msra.mxu0 %v785
    %841 = vmatprep.subr.bf16.mxu0 %v790
    %842 = vmatpush1.bf16.msra.mxu0 %v789
    %843 = vmatprep.subr.bf16.mxu0 %v794
    %844 = vmatpush1.bf16.msra.mxu0 %v793
    %845 = vmatprep.subr.bf16.mxu0 0
    %846 = vmatpush1.bf16.msra.mxu0 0
    %847 = vmatprep.subr.bf16.mxu0 0
    %848 = vmatpush1.bf16.msra.mxu0 0
    %849 = vmatprep.subr.bf16.mxu0 0
    %850 = vmatpush1.bf16.msra.mxu0 0
    %851 = vmatprep.subr.bf16.mxu0 0
    %852 = vmatpush1.bf16.msra.mxu0 0
    %853 = vmatprep.subr.bf16.mxu0 0
    %854 = vmatpush1.bf16.msra.mxu0 0
    %855 = vmatprep.subr.bf16.mxu0 0
    %856 = vmatpush1.bf16.msra.mxu0 0
    %857 = vmatprep.subr.bf16.mxu0 0
    %858 = vmatpush1.bf16.msra.mxu0 0
    %859 = vmatprep.subr.bf16.mxu0 0
    %860 = vmatpush1.bf16.msra.mxu0 0
    %861 = vmatprep.mubr.bf16.mxu0 0
    %862 = vmatmul.mubr.bf16.gmra.mrb[0].mxu0 %v647
    %v863 = vpop.f32.mrb[0].mxu0
    %v864 = vadd.f32 %v652, %v863
    %v865 = vpop.f32.mrb[0].mxu0
    %v866 = vadd.f32 %v656, %v865
    %v867 = vpop.f32.mrb[0].mxu0
    %v868 = vadd.f32 %v652, %v867
    %v869 = vpop.f32.mrb[0].mxu0
    %v870 = vadd.f32 %v656, %v869
    %871 = vdwg.mxu0
    %872 = vmatprep.subr.bf16.mxu0 %v768
    %873 = vmatpush1.bf16.msra.mxu0 %v767
    %874 = vmatprep.subr.bf16.mxu0 %v772
    %875 = vmatpush1.bf16.msra.mxu0 %v771
    %876 = vmatprep.subr.bf16.mxu0 %v776
    %877 = vmatpush1.bf16.msra.mxu0 %v775
    %878 = vmatprep.subr.bf16.mxu0 %v780
    %879 = vmatpush1.bf16.msra.mxu0 %v779
    %880 = vmatprep.subr.bf16.mxu0 %v784
    %881 = vmatpush1.bf16.msra.mxu0 %v783
    %882 = vmatprep.subr.bf16.mxu0 %v788
    %883 = vmatpush1.bf16.msra.mxu0 %v787
    %884 = vmatprep.subr.bf16.mxu0 %v792
    %885 = vmatpush1.bf16.msra.mxu0 %v791
    %886 = vmatprep.subr.bf16.mxu0 %v796
    %887 = vmatpush1.bf16.msra.mxu0 %v795
    %888 = vmatprep.subr.bf16.mxu0 0
    %889 = vmatpush1.bf16.msra.mxu0 0
    %890 = vmatprep.subr.bf16.mxu0 0
    %891 = vmatpush1.bf16.msra.mxu0 0
    %892 = vmatprep.subr.bf16.mxu0 0
    %893 = vmatpush1.bf16.msra.mxu0 0
    %894 = vmatprep.subr.bf16.mxu0 0
    %895 = vmatpush1.bf16.msra.mxu0 0
    %896 = vmatprep.subr.bf16.mxu0 0
    %897 = vmatpush1.bf16.msra.mxu0 0
    %898 = vmatprep.subr.bf16.mxu0 0
    %899 = vmatpush1.bf16.msra.mxu0 0
    %900 = vmatprep.subr.bf16.mxu0 0
    %901 = vmatpush1.bf16.msra.mxu0 0
    %902 = vmatprep.subr.bf16.mxu0 0
    %903 = vmatpush1.bf16.msra.mxu0 0
    %904 = vmatprep.mubr.bf16.mxu0 0
    %905 = vmatmul.mubr.bf16.gmra.mrb[0].mxu0 %v647
    %v906 = vpop.f32.mrb[0].mxu0
    %v907 = vadd.f32 %v660, %v906
    %v908 = vpop.f32.mrb[0].mxu0
    %v909 = vadd.f32 %v664, %v908
    %v910 = vpop.f32.mrb[0].mxu0
    %v911 = vadd.f32 %v660, %v910
    %v912 = vpop.f32.mrb[0].mxu0
    %v913 = vadd.f32 %v664, %v912
    %914 = vdwg.mxu0
    %915 = vst [vmem:[#allocation2] sm:$0xff] %v864
    %916 = vst [vmem:[#allocation2 + $0x8] sm:$0xff] %v866
    %917 = vst [vmem:[#allocation2 + $0x10] sm:$0xff] %v907
    %918 = vst [vmem:[#allocation2 + $0x18] sm:$0xff] %v909
    %919 = vst [vmem:[#allocation2 + $0x20] sm:$0xff] %v868
    %920 = vst [vmem:[#allocation2 + $0x28] sm:$0xff] %v870
    %921 = vst [vmem:[#allocation2 + $0x30] sm:$0xff] %v911
    %922 = vst [vmem:[#allocation2 + $0x38] sm:$0xff] %v913
    %v923 = vld [vmem:[%s4] sm:$0xff]
    %v924 = vld [vmem:[%s4 + $0x8] sm:$0xff]
    %v925 = vld [vmem:[%s4 + $0x10] sm:$0xff]
    %v926 = vld [vmem:[%s4 + $0x18] sm:$0xff]
    %v927 = vld [vmem:[%s4 + $0x20] sm:$0xff]
    %v928 = vld [vmem:[%s4 + $0x28] sm:$0xff]
    %v929 = vld [vmem:[%s4 + $0x30] sm:$0xff]
    %v930 = vld [vmem:[%s4 + $0x38] sm:$0xff]
    %v931 = vld [vmem:[%s4 + $0x40] sm:$0xff]
    %v932 = vld [vmem:[%s4 + $0x48] sm:$0xff]
    %v933 = vld [vmem:[%s4 + $0x50] sm:$0xff]
    %v934 = vld [vmem:[%s4 + $0x58] sm:$0xff]
    %v935 = vld [vmem:[%s4 + $0x60] sm:$0xff]
    %v936 = vld [vmem:[%s4 + $0x68] sm:$0xff]
    %v937 = vld [vmem:[%s4 + $0x70] sm:$0xff]
    %v938 = vld [vmem:[%s4 + $0x78] sm:$0xff]
    %v939 = vld [vmem:[%s4 + $0x80] sm:$0xff]
    %v940 = vld [vmem:[%s4 + $0x88] sm:$0xff]
    %v941 = vld [vmem:[%s4 + $0x90] sm:$0xff]
    %v942 = vld [vmem:[%s4 + $0x98] sm:$0xff]
    %v943 = vld [vmem:[%s4 + $0xa0] sm:$0xff]
    %v944 = vld [vmem:[%s4 + $0xa8] sm:$0xff]
    %v945 = vld [vmem:[%s4 + $0xb0] sm:$0xff]
    %v946 = vld [vmem:[%s4 + $0xb8] sm:$0xff]
    %v947 = vld [vmem:[%s4 + $0xc0] sm:$0xff]
    %v948 = vld [vmem:[%s4 + $0xc8] sm:$0xff]
    %v949 = vld [vmem:[%s4 + $0xd0] sm:$0xff]
    %v950 = vld [vmem:[%s4 + $0xd8] sm:$0xff]
    %v951 = vld [vmem:[%s4 + $0xe0] sm:$0xff]
    %v952 = vld [vmem:[%s4 + $0xe8] sm:$0xff]
    %v953 = vld [vmem:[%s4 + $0xf0] sm:$0xff]
    %v954 = vld [vmem:[%s4 + $0xf8] sm:$0xff]
    %v955 = vld [vmem:[#allocation3] sm:$0x1]
    %v956 = vld [vmem:[#allocation4] sm:$0x3]
    %v957 = vld [vmem:[#allocation5] sm:$0x3]
    %v958 = vld [vmem:[#allocation2] ss:$8 sm:$0xf]
    %s959 = scalar_lea.vmem [#allocation2], 32
    %v960 = vld [vmem:[%s959] ss:$8 sm:$0xf]
    %v993 = vunpack.c.l.b16 %v923
    %v994 = vunpack.c.h.b16 %v923
    %v995 = vunpack.c.l.b16 %v924
    %v996 = vunpack.c.h.b16 %v924
    %v997 = vunpack.c.l.b16 %v925
    %v998 = vunpack.c.h.b16 %v925
    %v999 = vunpack.c.l.b16 %v926
    %v1000 = vunpack.c.h.b16 %v926
    %v1001 = vunpack.c.l.b16 %v927
    %v1002 = vunpack.c.h.b16 %v927
    %v1003 = vunpack.c.l.b16 %v928
    %v1004 = vunpack.c.h.b16 %v928
    %v1005 = vunpack.c.l.b16 %v929
    %v1006 = vunpack.c.h.b16 %v929
    %v1007 = vunpack.c.l.b16 %v930
    %v1008 = vunpack.c.h.b16 %v930
    %v1009 = vunpack.c.l.b16 %v931
    %v1010 = vunpack.c.h.b16 %v931
    %v1011 = vunpack.c.l.b16 %v932
    %v1012 = vunpack.c.h.b16 %v932
    %v1013 = vunpack.c.l.b16 %v933
    %v1014 = vunpack.c.h.b16 %v933
    %v1015 = vunpack.c.l.b16 %v934
    %v1016 = vunpack.c.h.b16 %v934
    %v1017 = vunpack.c.l.b16 %v935
    %v1018 = vunpack.c.h.b16 %v935
    %v1019 = vunpack.c.l.b16 %v936
    %v1020 = vunpack.c.h.b16 %v936
    %v1021 = vunpack.c.l.b16 %v937
    %v1022 = vunpack.c.h.b16 %v937
    %v1023 = vunpack.c.l.b16 %v938
    %v1024 = vunpack.c.h.b16 %v938
    %v1025 = vunpack.c.l.b16 %v939
    %v1026 = vunpack.c.h.b16 %v939
    %v1027 = vunpack.c.l.b16 %v940
    %v1028 = vunpack.c.h.b16 %v940
    %v1029 = vunpack.c.l.b16 %v941
    %v1030 = vunpack.c.h.b16 %v941
    %v1031 = vunpack.c.l.b16 %v942
    %v1032 = vunpack.c.h.b16 %v942
    %v1033 = vunpack.c.l.b16 %v943
    %v1034 = vunpack.c.h.b16 %v943
    %v1035 = vunpack.c.l.b16 %v944
    %v1036 = vunpack.c.h.b16 %v944
    %v1037 = vunpack.c.l.b16 %v945
    %v1038 = vunpack.c.h.b16 %v945
    %v1039 = vunpack.c.l.b16 %v946
    %v1040 = vunpack.c.h.b16 %v946
    %v1041 = vunpack.c.l.b16 %v947
    %v1042 = vunpack.c.h.b16 %v947
    %v1043 = vunpack.c.l.b16 %v948
    %v1044 = vunpack.c.h.b16 %v948
    %v1045 = vunpack.c.l.b16 %v949
    %v1046 = vunpack.c.h.b16 %v949
    %v1047 = vunpack.c.l.b16 %v950
    %v1048 = vunpack.c.h.b16 %v950
    %v1049 = vunpack.c.l.b16 %v951
    %v1050 = vunpack.c.h.b16 %v951
    %v1051 = vunpack.c.l.b16 %v952
    %v1052 = vunpack.c.h.b16 %v952
    %v1053 = vunpack.c.l.b16 %v953
    %v1054 = vunpack.c.h.b16 %v953
    %v1055 = vunpack.c.l.b16 %v954
    %v1056 = vunpack.c.h.b16 %v954
    %v1057 = vpack.c.b16 %v997, %v993
    %v1058 = vpack.c.b16 %v998, %v994
    %v1059 = vpack.c.b16 %v999, %v995
    %v1060 = vpack.c.b16 %v1000, %v996
    %v1061 = vpack.c.b16 %v1005, %v1001
    %v1062 = vpack.c.b16 %v1006, %v1002
    %v1063 = vpack.c.b16 %v1007, %v1003
    %v1064 = vpack.c.b16 %v1008, %v1004
    %v1065 = vpack.c.b16 %v1013, %v1009
    %v1066 = vpack.c.b16 %v1014, %v1010
    %v1067 = vpack.c.b16 %v1015, %v1011
    %v1068 = vpack.c.b16 %v1016, %v1012
    %v1069 = vpack.c.b16 %v1021, %v1017
    %v1070 = vpack.c.b16 %v1022, %v1018
    %v1071 = vpack.c.b16 %v1023, %v1019
    %v1072 = vpack.c.b16 %v1024, %v1020
    %v1073 = vpack.c.b16 %v1029, %v1025
    %v1074 = vpack.c.b16 %v1030, %v1026
    %v1075 = vpack.c.b16 %v1031, %v1027
    %v1076 = vpack.c.b16 %v1032, %v1028
    %v1077 = vpack.c.b16 %v1037, %v1033
    %v1078 = vpack.c.b16 %v1038, %v1034
    %v1079 = vpack.c.b16 %v1039, %v1035
    %v1080 = vpack.c.b16 %v1040, %v1036
    %v1081 = vpack.c.b16 %v1045, %v1041
    %v1082 = vpack.c.b16 %v1046, %v1042
    %v1083 = vpack.c.b16 %v1047, %v1043
    %v1084 = vpack.c.b16 %v1048, %v1044
    %v1085 = vpack.c.b16 %v1053, %v1049
    %v1086 = vpack.c.b16 %v1054, %v1050
    %v1087 = vpack.c.b16 %v1055, %v1051
    %v1088 = vpack.c.b16 %v1056, %v1052
    %1121 = vmatprep.subr.bf16.mxu0 %v1058
    %1122 = vmatpush1.bf16.msra.mxu0 %v1057
    %1123 = vmatprep.subr.bf16.mxu0 %v1062
    %1124 = vmatpush1.bf16.msra.mxu0 %v1061
    %1125 = vmatprep.subr.bf16.mxu0 %v1066
    %1126 = vmatpush1.bf16.msra.mxu0 %v1065
    %1127 = vmatprep.subr.bf16.mxu0 %v1070
    %1128 = vmatpush1.bf16.msra.mxu0 %v1069
    %1129 = vmatprep.subr.bf16.mxu0 %v1074
    %1130 = vmatpush1.bf16.msra.mxu0 %v1073
    %1131 = vmatprep.subr.bf16.mxu0 %v1078
    %1132 = vmatpush1.bf16.msra.mxu0 %v1077
    %1133 = vmatprep.subr.bf16.mxu0 %v1082
    %1134 = vmatpush1.bf16.msra.mxu0 %v1081
    %1135 = vmatprep.subr.bf16.mxu0 %v1086
    %1136 = vmatpush1.bf16.msra.mxu0 %v1085
    %1137 = vmatprep.subr.bf16.mxu0 0
    %1138 = vmatpush1.bf16.msra.mxu0 0
    %1139 = vmatprep.subr.bf16.mxu0 0
    %1140 = vmatpush1.bf16.msra.mxu0 0
    %1141 = vmatprep.subr.bf16.mxu0 0
    %1142 = vmatpush1.bf16.msra.mxu0 0
    %1143 = vmatprep.subr.bf16.mxu0 0
    %1144 = vmatpush1.bf16.msra.mxu0 0
    %1145 = vmatprep.subr.bf16.mxu0 0
    %1146 = vmatpush1.bf16.msra.mxu0 0
    %1147 = vmatprep.subr.bf16.mxu0 0
    %1148 = vmatpush1.bf16.msra.mxu0 0
    %1149 = vmatprep.subr.bf16.mxu0 0
    %1150 = vmatpush1.bf16.msra.mxu0 0
    %1151 = vmatprep.subr.bf16.mxu0 0
    %1152 = vmatpush1.bf16.msra.mxu0 0
    %1153 = vmatprep.mubr.bf16.mxu0 0
    %1154 = vmatmul.mubr.bf16.gmra.mrb[0].mxu0 %v955
    %v1155 = vpop.f32.mrb[0].mxu0
    %v1156 = vadd.f32 0.0, %v1155
    %v1157 = vpop.f32.mrb[0].mxu0
    %v1158 = vadd.f32 0.0, %v1157
    %v1159 = vpop.f32.mrb[0].mxu0
    %v1160 = vpop.f32.mrb[0].mxu0
    %1161 = vdwg.mxu0
    %1162 = vmatprep.subr.bf16.mxu0 %v1060
    %1163 = vmatpush1.bf16.msra.mxu0 %v1059
    %1164 = vmatprep.subr.bf16.mxu0 %v1064
    %1165 = vmatpush1.bf16.msra.mxu0 %v1063
    %1166 = vmatprep.subr.bf16.mxu0 %v1068
    %1167 = vmatpush1.bf16.msra.mxu0 %v1067
    %1168 = vmatprep.subr.bf16.mxu0 %v1072
    %1169 = vmatpush1.bf16.msra.mxu0 %v1071
    %1170 = vmatprep.subr.bf16.mxu0 %v1076
    %1171 = vmatpush1.bf16.msra.mxu0 %v1075
    %1172 = vmatprep.subr.bf16.mxu0 %v1080
    %1173 = vmatpush1.bf16.msra.mxu0 %v1079
    %1174 = vmatprep.subr.bf16.mxu0 %v1084
    %1175 = vmatpush1.bf16.msra.mxu0 %v1083
    %1176 = vmatprep.subr.bf16.mxu0 %v1088
    %1177 = vmatpush1.bf16.msra.mxu0 %v1087
    %1178 = vmatprep.subr.bf16.mxu0 0
    %1179 = vmatpush1.bf16.msra.mxu0 0
    %1180 = vmatprep.subr.bf16.mxu0 0
    %1181 = vmatpush1.bf16.msra.mxu0 0
    %1182 = vmatprep.subr.bf16.mxu0 0
    %1183 = vmatpush1.bf16.msra.mxu0 0
    %1184 = vmatprep.subr.bf16.mxu0 0
    %1185 = vmatpush1.bf16.msra.mxu0 0
    %1186 = vmatprep.subr.bf16.mxu0 0
    %1187 = vmatpush1.bf16.msra.mxu0 0
    %1188 = vmatprep.subr.bf16.mxu0 0
    %1189 = vmatpush1.bf16.msra.mxu0 0
    %1190 = vmatprep.subr.bf16.mxu0 0
    %1191 = vmatpush1.bf16.msra.mxu0 0
    %1192 = vmatprep.subr.bf16.mxu0 0
    %1193 = vmatpush1.bf16.msra.mxu0 0
    %1194 = vmatprep.mubr.bf16.mxu0 0
    %1195 = vmatmul.mubr.bf16.gmra.mrb[0].mxu0 %v955
    %v1196 = vpop.f32.mrb[0].mxu0
    %v1197 = vadd.f32 0.0, %v1196
    %v1198 = vpop.f32.mrb[0].mxu0
    %v1199 = vadd.f32 0.0, %v1198
    %v1200 = vpop.f32.mrb[0].mxu0
    %v1201 = vpop.f32.mrb[0].mxu0
    %1202 = vdwg.mxu0
    %v1207 = vcombine.low %v1156, %v1158
    %v1208 = vcombine.low %v1197, %v1199
    %v1210 = vunpack.c.l.s4 1966171168
    %v1211 = vunpack.c.0.s8 %v1210
    %v1212 = vlaneseq
    %v1213 = vshrl.u32 %v1212, 7
    %v1214 = vsub.s32 %v1211, %v1213
    %v1215 = vrot.slane %v1207, %v1214
    %v1217 = vunpack.c.l.s4 1966171168
    %v1218 = vunpack.c.0.s8 %v1217
    %v1219 = vlaneseq
    %v1220 = vshrl.u32 %v1219, 7
    %v1221 = vsub.s32 %v1218, %v1220
    %v1222 = vrot.slane %v1208, %v1221
    %v1223 = vcombine.low %v1215, %v1222
    %v1224 = vcombine.high %v1215, %v1222
    %v1226 = vunpack.c.l.s4 1966171168
    %v1227 = vunpack.c.0.s8 %v1226
    %v1228 = vlaneseq
    %v1229 = vshrl.u32 %v1228, 7
    %v1230 = vsub.s32 %v1227, %v1229
    %v1231 = vrot.slane %v1223, %v1230
    %v1233 = vunpack.c.l.s4 1966171168
    %v1234 = vunpack.c.0.s8 %v1233
    %v1235 = vlaneseq
    %v1236 = vshrl.u32 %v1235, 7
    %v1237 = vsub.s32 %v1234, %v1236
    %v1238 = vrot.slane %v1224, %v1237
    %v1241 = vadd.f32 %v958, %v1231
    %v1242 = vadd.f32 %v960, %v1238
    %v1243 = vmul.f32 %v1241, 0.5
    %v1244 = vmul.f32 %v1242, 0.5
    %v1245 = vtanh.pop %v1243
    %v1246 = vtanh.pop %v1244
    %v1247 = vmul.f32 %v1245, 0.5
    %v1248 = vmul.f32 %v1246, 0.5
    %v1249 = vadd.f32 %v1247, 0.5
    %v1250 = vadd.f32 %v1248, 0.5
    %v1253 = vrot.slane %v1241, 1
    %v1254 = vrot.slane %v1242, 1
    %v1257 = vmul.f32 %v1253, 0.5
    %v1258 = vmul.f32 %v1254, 0.5
    %v1259 = vtanh.pop %v1257
    %v1260 = vtanh.pop %v1258
    %v1261 = vmul.f32 %v1259, 0.5
    %v1262 = vmul.f32 %v1260, 0.5
    %v1263 = vadd.f32 %v1261, 0.5
    %v1264 = vadd.f32 %v1262, 0.5
    %v1265 = vrot.slane %v1241, 2
    %v1266 = vrot.slane %v1242, 2
    %v1269 = vtanh.pop %v1265
    %v1270 = vtanh.pop %v1266
    %v1271 = vrot.slane %v1241, 3
    %v1272 = vrot.slane %v1242, 3
    %v1275 = vmul.f32 %v1271, 0.5
    %v1276 = vmul.f32 %v1272, 0.5
    %v1277 = vtanh.pop %v1275
    %v1278 = vtanh.pop %v1276
    %v1279 = vmul.f32 %v1277, 0.5
    %v1280 = vmul.f32 %v1278, 0.5
    %v1281 = vadd.f32 %v1279, 0.5
    %v1282 = vadd.f32 %v1280, 0.5
    %v1285 = vunpack.c.l.s4 1966171168
    %v1286 = vunpack.c.0.s8 %v1285
    %v1287 = vlaneseq
    %v1288 = vshrl.u32 %v1287, 7
    %v1289 = vsub.s32 %v1286, %v1288
    %v1290 = vrot.slane %v956, %v1289
    %v1291 = vcombine.high %v1290, %v1290
    %v1293 = vunpack.c.l.s4 1966171168
    %v1294 = vunpack.c.0.s8 %v1293
    %v1295 = vlaneseq
    %v1296 = vshrl.u32 %v1295, 7
    %v1297 = vsub.s32 %v1294, %v1296
    %v1298 = vrot.slane %v1290, %v1297
    %v1300 = vunpack.c.l.s4 1966171168
    %v1301 = vunpack.c.0.s8 %v1300
    %v1302 = vlaneseq
    %v1303 = vshrl.u32 %v1302, 7
    %v1304 = vsub.s32 %v1301, %v1303
    %v1305 = vrot.slane %v1291, %v1304
    %v1308 = vmul.f32 %v1263, %v1298
    %v1309 = vmul.f32 %v1264, %v1305
    %v1310 = vmul.f32 %v1249, %v1269
    %v1311 = vmul.f32 %v1250, %v1270
    %v1312 = vadd.f32 %v1308, %v1310
    %v1313 = vadd.f32 %v1309, %v1311
    %v1314 = vtanh.pop %v1312
    %v1315 = vtanh.pop %v1313
    %v1316 = vmul.f32 %v1281, %v1314
    %v1317 = vmul.f32 %v1282, %v1315
    %v1320 = vcombine.low %v1316, %v1317
    %v1322 = vunpack.c.l.s4 1966171168
    %v1323 = vunpack.c.0.s8 %v1322
    %v1324 = vlaneseq
    %v1325 = vshrl.u32 %v1324, 7
    %v1326 = vsub.s32 %v1323, %v1325
    %v1327 = vrot.slane %v1320, %v1326
    %v1329 = vunpack.c.l.s4 1966171168
    %v1330 = vunpack.c.0.s8 %v1329
    %v1331 = vlaneseq
    %v1332 = vshrl.u32 %v1331, 7
    %v1333 = vsub.s32 %v1330, %v1332
    %v1334 = vrot.slane %v1327, %v1333
    %v1336 = vmax.f32 %v957, %v1334
    %v1337 = vpack.c.bf16 %v1316, %v1316
    %v1338 = vpack.c.bf16 %v1317, %v1317
    %s1339 = scalar_lea.vmem [#allocation2], 1
    %v1340 = vld [vmem:[%s1339] ss:$8 sm:$0xf]
    %s1341 = scalar_lea.vmem [#allocation2], 33
    %v1342 = vld [vmem:[%s1341] ss:$8 sm:$0xf]
    %v1345 = vunpack.c.l.b16 %v1337
    %v1346 = vunpack.c.l.b16 %v1338
    %v1347 = vrot.slane %v1346, 7
    %vm1348 = vcmask 1041409
    %v1349 = vsel %vm1348, %v1347, %v1345
    %v1350 = vpack.c.b16 %v1349, %v1349
    %1352 = vmatprep.subr.bf16.mxu0 %v1058
    %1353 = vmatpush1.bf16.msra.mxu0 %v1057
    %1354 = vmatprep.subr.bf16.mxu0 %v1062
    %1355 = vmatpush1.bf16.msra.mxu0 %v1061
    %1356 = vmatprep.subr.bf16.mxu0 %v1066
    %1357 = vmatpush1.bf16.msra.mxu0 %v1065
    %1358 = vmatprep.subr.bf16.mxu0 %v1070
    %1359 = vmatpush1.bf16.msra.mxu0 %v1069
    %1360 = vmatprep.subr.bf16.mxu0 %v1074
    %1361 = vmatpush1.bf16.msra.mxu0 %v1073
    %1362 = vmatprep.subr.bf16.mxu0 %v1078
    %1363 = vmatpush1.bf16.msra.mxu0 %v1077
    %1364 = vmatprep.subr.bf16.mxu0 %v1082
    %1365 = vmatpush1.bf16.msra.mxu0 %v1081
    %1366 = vmatprep.subr.bf16.mxu0 %v1086
    %1367 = vmatpush1.bf16.msra.mxu0 %v1085
    %1368 = vmatprep.subr.bf16.mxu0 0
    %1369 = vmatpush1.bf16.msra.mxu0 0
    %1370 = vmatprep.subr.bf16.mxu0 0
    %1371 = vmatpush1.bf16.msra.mxu0 0
    %1372 = vmatprep.subr.bf16.mxu0 0
    %1373 = vmatpush1.bf16.msra.mxu0 0
    %1374 = vmatprep.subr.bf16.mxu0 0
    %1375 = vmatpush1.bf16.msra.mxu0 0
    %1376 = vmatprep.subr.bf16.mxu0 0
    %1377 = vmatpush1.bf16.msra.mxu0 0
    %1378 = vmatprep.subr.bf16.mxu0 0
    %1379 = vmatpush1.bf16.msra.mxu0 0
    %1380 = vmatprep.subr.bf16.mxu0 0
    %1381 = vmatpush1.bf16.msra.mxu0 0
    %1382 = vmatprep.subr.bf16.mxu0 0
    %1383 = vmatpush1.bf16.msra.mxu0 0
    %1384 = vmatprep.mubr.bf16.mxu0 0
    %1385 = vmatmul.mubr.bf16.gmra.mrb[0].mxu0 %v1350
    %v1386 = vpop.f32.mrb[0].mxu0
    %v1387 = vadd.f32 0.0, %v1386
    %v1388 = vpop.f32.mrb[0].mxu0
    %v1389 = vadd.f32 0.0, %v1388
    %v1390 = vpop.f32.mrb[0].mxu0
    %v1391 = vpop.f32.mrb[0].mxu0
    %1392 = vdwg.mxu0
    %1393 = vmatprep.subr.bf16.mxu0 %v1060
    %1394 = vmatpush1.bf16.msra.mxu0 %v1059
    %1395 = vmatprep.subr.bf16.mxu0 %v1064
    %1396 = vmatpush1.bf16.msra.mxu0 %v1063
    %1397 = vmatprep.subr.bf16.mxu0 %v1068
    %1398 = vmatpush1.bf16.msra.mxu0 %v1067
    %1399 = vmatprep.subr.bf16.mxu0 %v1072
    %1400 = vmatpush1.bf16.msra.mxu0 %v1071
    %1401 = vmatprep.subr.bf16.mxu0 %v1076
    %1402 = vmatpush1.bf16.msra.mxu0 %v1075
    %1403 = vmatprep.subr.bf16.mxu0 %v1080
    %1404 = vmatpush1.bf16.msra.mxu0 %v1079
    %1405 = vmatprep.subr.bf16.mxu0 %v1084
    %1406 = vmatpush1.bf16.msra.mxu0 %v1083
    %1407 = vmatprep.subr.bf16.mxu0 %v1088
    %1408 = vmatpush1.bf16.msra.mxu0 %v1087
    %1409 = vmatprep.subr.bf16.mxu0 0
    %1410 = vmatpush1.bf16.msra.mxu0 0
    %1411 = vmatprep.subr.bf16.mxu0 0
    %1412 = vmatpush1.bf16.msra.mxu0 0
    %1413 = vmatprep.subr.bf16.mxu0 0
    %1414 = vmatpush1.bf16.msra.mxu0 0
    %1415 = vmatprep.subr.bf16.mxu0 0
    %1416 = vmatpush1.bf16.msra.mxu0 0
    %1417 = vmatprep.subr.bf16.mxu0 0
    %1418 = vmatpush1.bf16.msra.mxu0 0
    %1419 = vmatprep.subr.bf16.mxu0 0
    %1420 = vmatpush1.bf16.msra.mxu0 0
    %1421 = vmatprep.subr.bf16.mxu0 0
    %1422 = vmatpush1.bf16.msra.mxu0 0
    %1423 = vmatprep.subr.bf16.mxu0 0
    %1424 = vmatpush1.bf16.msra.mxu0 0
    %1425 = vmatprep.mubr.bf16.mxu0 0
    %1426 = vmatmul.mubr.bf16.gmra.mrb[0].mxu0 %v1350
    %v1427 = vpop.f32.mrb[0].mxu0
    %v1428 = vadd.f32 0.0, %v1427
    %v1429 = vpop.f32.mrb[0].mxu0
    %v1430 = vadd.f32 0.0, %v1429
    %v1431 = vpop.f32.mrb[0].mxu0
    %v1432 = vpop.f32.mrb[0].mxu0
    %1433 = vdwg.mxu0
    %v1438 = vcombine.low %v1387, %v1389
    %v1439 = vcombine.low %v1428, %v1430
    %v1441 = vunpack.c.l.s4 1966171168
    %v1442 = vunpack.c.0.s8 %v1441
    %v1443 = vlaneseq
    %v1444 = vshrl.u32 %v1443, 7
    %v1445 = vsub.s32 %v1442, %v1444
    %v1446 = vrot.slane %v1438, %v1445
    %v1448 = vunpack.c.l.s4 1966171168
    %v1449 = vunpack.c.0.s8 %v1448
    %v1450 = vlaneseq
    %v1451 = vshrl.u32 %v1450, 7
    %v1452 = vsub.s32 %v1449, %v1451
    %v1453 = vrot.slane %v1439, %v1452
    %v1454 = vcombine.low %v1446, %v1453
    %v1455 = vcombine.high %v1446, %v1453
    %v1457 = vunpack.c.l.s4 1966171168
    %v1458 = vunpack.c.0.s8 %v1457
    %v1459 = vlaneseq
    %v1460 = vshrl.u32 %v1459, 7
    %v1461 = vsub.s32 %v1458, %v1460
    %v1462 = vrot.slane %v1454, %v1461
    %v1464 = vunpack.c.l.s4 1966171168
    %v1465 = vunpack.c.0.s8 %v1464
    %v1466 = vlaneseq
    %v1467 = vshrl.u32 %v1466, 7
    %v1468 = vsub.s32 %v1465, %v1467
    %v1469 = vrot.slane %v1455, %v1468
    %v1472 = vadd.f32 %v1340, %v1462
    %v1473 = vadd.f32 %v1342, %v1469
    %v1474 = vmul.f32 %v1472, 0.5
    %v1475 = vmul.f32 %v1473, 0.5
    %v1476 = vtanh.pop %v1474
    %v1477 = vtanh.pop %v1475
    %v1478 = vmul.f32 %v1476, 0.5
    %v1479 = vmul.f32 %v1477, 0.5
    %v1480 = vadd.f32 %v1478, 0.5
    %v1481 = vadd.f32 %v1479, 0.5
    %v1484 = vrot.slane %v1472, 1
    %v1485 = vrot.slane %v1473, 1
    %v1488 = vmul.f32 %v1484, 0.5
    %v1489 = vmul.f32 %v1485, 0.5
    %v1490 = vtanh.pop %v1488
    %v1491 = vtanh.pop %v1489
    %v1492 = vmul.f32 %v1490, 0.5
    %v1493 = vmul.f32 %v1491, 0.5
    %v1494 = vadd.f32 %v1492, 0.5
    %v1495 = vadd.f32 %v1493, 0.5
    %v1496 = vrot.slane %v1472, 2
    %v1497 = vrot.slane %v1473, 2
    %v1500 = vtanh.pop %v1496
    %v1501 = vtanh.pop %v1497
    %v1502 = vrot.slane %v1472, 3
    %v1503 = vrot.slane %v1473, 3
    %v1506 = vmul.f32 %v1502, 0.5
    %v1507 = vmul.f32 %v1503, 0.5
    %v1508 = vtanh.pop %v1506
    %v1509 = vtanh.pop %v1507
    %v1510 = vmul.f32 %v1508, 0.5
    %v1511 = vmul.f32 %v1509, 0.5
    %v1512 = vadd.f32 %v1510, 0.5
    %v1513 = vadd.f32 %v1511, 0.5
    %v1514 = vmul.f32 %v1494, %v1312
    %v1515 = vmul.f32 %v1495, %v1313
    %v1516 = vmul.f32 %v1480, %v1500
    %v1517 = vmul.f32 %v1481, %v1501
    %v1518 = vadd.f32 %v1514, %v1516
    %v1519 = vadd.f32 %v1515, %v1517
    %v1520 = vtanh.pop %v1518
    %v1521 = vtanh.pop %v1519
    %v1522 = vmul.f32 %v1512, %v1520
    %v1523 = vmul.f32 %v1513, %v1521
    %v1526 = vcombine.low %v1522, %v1523
    %v1528 = vunpack.c.l.s4 1966171168
    %v1529 = vunpack.c.0.s8 %v1528
    %v1530 = vlaneseq
    %v1531 = vshrl.u32 %v1530, 7
    %v1532 = vsub.s32 %v1529, %v1531
    %v1533 = vrot.slane %v1526, %v1532
    %v1535 = vunpack.c.l.s4 1966171168
    %v1536 = vunpack.c.0.s8 %v1535
    %v1537 = vlaneseq
    %v1538 = vshrl.u32 %v1537, 7
    %v1539 = vsub.s32 %v1536, %v1538
    %v1540 = vrot.slane %v1533, %v1539
    %v1542 = vmax.f32 %v1336, %v1540
    %v1543 = vpack.c.bf16 %v1522, %v1522
    %v1544 = vpack.c.bf16 %v1523, %v1523
    %s1545 = scalar_lea.vmem [#allocation2], 2
    %v1546 = vld [vmem:[%s1545] ss:$8 sm:$0xf]
    %s1547 = scalar_lea.vmem [#allocation2], 34
    %v1548 = vld [vmem:[%s1547] ss:$8 sm:$0xf]
    %v1551 = vunpack.c.l.b16 %v1543
    %v1552 = vunpack.c.l.b16 %v1544
    %v1553 = vrot.slane %v1552, 7
    %v1554 = vsel %vm1348, %v1553, %v1551
    %v1555 = vpack.c.b16 %v1554, %v1554
    %1557 = vmatprep.subr.bf16.mxu0 %v1058
    %1558 = vmatpush1.bf16.msra.mxu0 %v1057
    %1559 = vmatprep.subr.bf16.mxu0 %v1062
    %1560 = vmatpush1.bf16.msra.mxu0 %v1061
    %1561 = vmatprep.subr.bf16.mxu0 %v1066
    %1562 = vmatpush1.bf16.msra.mxu0 %v1065
    %1563 = vmatprep.subr.bf16.mxu0 %v1070
    %1564 = vmatpush1.bf16.msra.mxu0 %v1069
    %1565 = vmatprep.subr.bf16.mxu0 %v1074
    %1566 = vmatpush1.bf16.msra.mxu0 %v1073
    %1567 = vmatprep.subr.bf16.mxu0 %v1078
    %1568 = vmatpush1.bf16.msra.mxu0 %v1077
    %1569 = vmatprep.subr.bf16.mxu0 %v1082
    %1570 = vmatpush1.bf16.msra.mxu0 %v1081
    %1571 = vmatprep.subr.bf16.mxu0 %v1086
    %1572 = vmatpush1.bf16.msra.mxu0 %v1085
    %1573 = vmatprep.subr.bf16.mxu0 0
    %1574 = vmatpush1.bf16.msra.mxu0 0
    %1575 = vmatprep.subr.bf16.mxu0 0
    %1576 = vmatpush1.bf16.msra.mxu0 0
    %1577 = vmatprep.subr.bf16.mxu0 0
    %1578 = vmatpush1.bf16.msra.mxu0 0
    %1579 = vmatprep.subr.bf16.mxu0 0
    %1580 = vmatpush1.bf16.msra.mxu0 0
    %1581 = vmatprep.subr.bf16.mxu0 0
    %1582 = vmatpush1.bf16.msra.mxu0 0
    %1583 = vmatprep.subr.bf16.mxu0 0
    %1584 = vmatpush1.bf16.msra.mxu0 0
    %1585 = vmatprep.subr.bf16.mxu0 0
    %1586 = vmatpush1.bf16.msra.mxu0 0
    %1587 = vmatprep.subr.bf16.mxu0 0
    %1588 = vmatpush1.bf16.msra.mxu0 0
    %1589 = vmatprep.mubr.bf16.mxu0 0
    %1590 = vmatmul.mubr.bf16.gmra.mrb[0].mxu0 %v1555
    %v1591 = vpop.f32.mrb[0].mxu0
    %v1592 = vadd.f32 0.0, %v1591
    %v1593 = vpop.f32.mrb[0].mxu0
    %v1594 = vadd.f32 0.0, %v1593
    %v1595 = vpop.f32.mrb[0].mxu0
    %v1596 = vpop.f32.mrb[0].mxu0
    %1597 = vdwg.mxu0
    %1598 = vmatprep.subr.bf16.mxu0 %v1060
    %1599 = vmatpush1.bf16.msra.mxu0 %v1059
    %1600 = vmatprep.subr.bf16.mxu0 %v1064
    %1601 = vmatpush1.bf16.msra.mxu0 %v1063
    %1602 = vmatprep.subr.bf16.mxu0 %v1068
    %1603 = vmatpush1.bf16.msra.mxu0 %v1067
    %1604 = vmatprep.subr.bf16.mxu0 %v1072
    %1605 = vmatpush1.bf16.msra.mxu0 %v1071
    %1606 = vmatprep.subr.bf16.mxu0 %v1076
    %1607 = vmatpush1.bf16.msra.mxu0 %v1075
    %1608 = vmatprep.subr.bf16.mxu0 %v1080
    %1609 = vmatpush1.bf16.msra.mxu0 %v1079
    %1610 = vmatprep.subr.bf16.mxu0 %v1084
    %1611 = vmatpush1.bf16.msra.mxu0 %v1083
    %1612 = vmatprep.subr.bf16.mxu0 %v1088
    %1613 = vmatpush1.bf16.msra.mxu0 %v1087
    %1614 = vmatprep.subr.bf16.mxu0 0
    %1615 = vmatpush1.bf16.msra.mxu0 0
    %1616 = vmatprep.subr.bf16.mxu0 0
    %1617 = vmatpush1.bf16.msra.mxu0 0
    %1618 = vmatprep.subr.bf16.mxu0 0
    %1619 = vmatpush1.bf16.msra.mxu0 0
    %1620 = vmatprep.subr.bf16.mxu0 0
    %1621 = vmatpush1.bf16.msra.mxu0 0
    %1622 = vmatprep.subr.bf16.mxu0 0
    %1623 = vmatpush1.bf16.msra.mxu0 0
    %1624 = vmatprep.subr.bf16.mxu0 0
    %1625 = vmatpush1.bf16.msra.mxu0 0
    %1626 = vmatprep.subr.bf16.mxu0 0
    %1627 = vmatpush1.bf16.msra.mxu0 0
    %1628 = vmatprep.subr.bf16.mxu0 0
    %1629 = vmatpush1.bf16.msra.mxu0 0
    %1630 = vmatprep.mubr.bf16.mxu0 0
    %1631 = vmatmul.mubr.bf16.gmra.mrb[0].mxu0 %v1555
    %v1632 = vpop.f32.mrb[0].mxu0
    %v1633 = vadd.f32 0.0, %v1632
    %v1634 = vpop.f32.mrb[0].mxu0
    %v1635 = vadd.f32 0.0, %v1634
    %v1636 = vpop.f32.mrb[0].mxu0
    %v1637 = vpop.f32.mrb[0].mxu0
    %1638 = vdwg.mxu0
    %v1643 = vcombine.low %v1592, %v1594
    %v1644 = vcombine.low %v1633, %v1635
    %v1646 = vunpack.c.l.s4 1966171168
    %v1647 = vunpack.c.0.s8 %v1646
    %v1648 = vlaneseq
    %v1649 = vshrl.u32 %v1648, 7
    %v1650 = vsub.s32 %v1647, %v1649
    %v1651 = vrot.slane %v1643, %v1650
    %v1653 = vunpack.c.l.s4 1966171168
    %v1654 = vunpack.c.0.s8 %v1653
    %v1655 = vlaneseq
    %v1656 = vshrl.u32 %v1655, 7
    %v1657 = vsub.s32 %v1654, %v1656
    %v1658 = vrot.slane %v1644, %v1657
    %v1659 = vcombine.low %v1651, %v1658
    %v1660 = vcombine.high %v1651, %v1658
    %v1662 = vunpack.c.l.s4 1966171168
    %v1663 = vunpack.c.0.s8 %v1662
    %v1664 = vlaneseq
    %v1665 = vshrl.u32 %v1664, 7
    %v1666 = vsub.s32 %v1663, %v1665
    %v1667 = vrot.slane %v1659, %v1666
    %v1669 = vunpack.c.l.s4 1966171168
    %v1670 = vunpack.c.0.s8 %v1669
    %v1671 = vlaneseq
    %v1672 = vshrl.u32 %v1671, 7
    %v1673 = vsub.s32 %v1670, %v1672
    %v1674 = vrot.slane %v1660, %v1673
    %v1677 = vadd.f32 %v1546, %v1667
    %v1678 = vadd.f32 %v1548, %v1674
    %v1679 = vmul.f32 %v1677, 0.5
    %v1680 = vmul.f32 %v1678, 0.5
    %v1681 = vtanh.pop %v1679
    %v1682 = vtanh.pop %v1680
    %v1683 = vmul.f32 %v1681, 0.5
    %v1684 = vmul.f32 %v1682, 0.5
    %v1685 = vadd.f32 %v1683, 0.5
    %v1686 = vadd.f32 %v1684, 0.5
    %v1689 = vrot.slane %v1677, 1
    %v1690 = vrot.slane %v1678, 1
    %v1693 = vmul.f32 %v1689, 0.5
    %v1694 = vmul.f32 %v1690, 0.5
    %v1695 = vtanh.pop %v1693
    %v1696 = vtanh.pop %v1694
    %v1697 = vmul.f32 %v1695, 0.5
    %v1698 = vmul.f32 %v1696, 0.5
    %v1699 = vadd.f32 %v1697, 0.5
    %v1700 = vadd.f32 %v1698, 0.5
    %v1701 = vrot.slane %v1677, 2
    %v1702 = vrot.slane %v1678, 2
    %v1705 = vtanh.pop %v1701
    %v1706 = vtanh.pop %v1702
    %v1707 = vrot.slane %v1677, 3
    %v1708 = vrot.slane %v1678, 3
    %v1711 = vmul.f32 %v1707, 0.5
    %v1712 = vmul.f32 %v1708, 0.5
    %v1713 = vtanh.pop %v1711
    %v1714 = vtanh.pop %v1712
    %v1715 = vmul.f32 %v1713, 0.5
    %v1716 = vmul.f32 %v1714, 0.5
    %v1717 = vadd.f32 %v1715, 0.5
    %v1718 = vadd.f32 %v1716, 0.5
    %v1719 = vmul.f32 %v1699, %v1518
    %v1720 = vmul.f32 %v1700, %v1519
    %v1721 = vmul.f32 %v1685, %v1705
    %v1722 = vmul.f32 %v1686, %v1706
    %v1723 = vadd.f32 %v1719, %v1721
    %v1724 = vadd.f32 %v1720, %v1722
    %v1725 = vtanh.pop %v1723
    %v1726 = vtanh.pop %v1724
    %v1727 = vmul.f32 %v1717, %v1725
    %v1728 = vmul.f32 %v1718, %v1726
    %v1731 = vcombine.low %v1727, %v1728
    %v1733 = vunpack.c.l.s4 1966171168
    %v1734 = vunpack.c.0.s8 %v1733
    %v1735 = vlaneseq
    %v1736 = vshrl.u32 %v1735, 7
    %v1737 = vsub.s32 %v1734, %v1736
    %v1738 = vrot.slane %v1731, %v1737
    %v1740 = vunpack.c.l.s4 1966171168
    %v1741 = vunpack.c.0.s8 %v1740
    %v1742 = vlaneseq
    %v1743 = vshrl.u32 %v1742, 7
    %v1744 = vsub.s32 %v1741, %v1743
    %v1745 = vrot.slane %v1738, %v1744
    %v1747 = vmax.f32 %v1542, %v1745
    %v1748 = vpack.c.bf16 %v1727, %v1727
    %v1749 = vpack.c.bf16 %v1728, %v1728
    %s1750 = scalar_lea.vmem [#allocation2], 3
    %v1751 = vld [vmem:[%s1750] ss:$8 sm:$0xf]
    %s1752 = scalar_lea.vmem [#allocation2], 35
    %v1753 = vld [vmem:[%s1752] ss:$8 sm:$0xf]
    %v1756 = vunpack.c.l.b16 %v1748
    %v1757 = vunpack.c.l.b16 %v1749
    %v1758 = vrot.slane %v1757, 7
    %v1759 = vsel %vm1348, %v1758, %v1756
    %v1760 = vpack.c.b16 %v1759, %v1759
    %1762 = vmatprep.subr.bf16.mxu0 %v1058
    %1763 = vmatpush1.bf16.msra.mxu0 %v1057
    %1764 = vmatprep.subr.bf16.mxu0 %v1062
    %1765 = vmatpush1.bf16.msra.mxu0 %v1061
    %1766 = vmatprep.subr.bf16.mxu0 %v1066
    %1767 = vmatpush1.bf16.msra.mxu0 %v1065
    %1768 = vmatprep.subr.bf16.mxu0 %v1070
    %1769 = vmatpush1.bf16.msra.mxu0 %v1069
    %1770 = vmatprep.subr.bf16.mxu0 %v1074
    %1771 = vmatpush1.bf16.msra.mxu0 %v1073
    %1772 = vmatprep.subr.bf16.mxu0 %v1078
    %1773 = vmatpush1.bf16.msra.mxu0 %v1077
    %1774 = vmatprep.subr.bf16.mxu0 %v1082
    %1775 = vmatpush1.bf16.msra.mxu0 %v1081
    %1776 = vmatprep.subr.bf16.mxu0 %v1086
    %1777 = vmatpush1.bf16.msra.mxu0 %v1085
    %1778 = vmatprep.subr.bf16.mxu0 0
    %1779 = vmatpush1.bf16.msra.mxu0 0
    %1780 = vmatprep.subr.bf16.mxu0 0
    %1781 = vmatpush1.bf16.msra.mxu0 0
    %1782 = vmatprep.subr.bf16.mxu0 0
    %1783 = vmatpush1.bf16.msra.mxu0 0
    %1784 = vmatprep.subr.bf16.mxu0 0
    %1785 = vmatpush1.bf16.msra.mxu0 0
    %1786 = vmatprep.subr.bf16.mxu0 0
    %1787 = vmatpush1.bf16.msra.mxu0 0
    %1788 = vmatprep.subr.bf16.mxu0 0
    %1789 = vmatpush1.bf16.msra.mxu0 0
    %1790 = vmatprep.subr.bf16.mxu0 0
    %1791 = vmatpush1.bf16.msra.mxu0 0
    %1792 = vmatprep.subr.bf16.mxu0 0
    %1793 = vmatpush1.bf16.msra.mxu0 0
    %1794 = vmatprep.mubr.bf16.mxu0 0
    %1795 = vmatmul.mubr.bf16.gmra.mrb[0].mxu0 %v1760
    %v1796 = vpop.f32.mrb[0].mxu0
    %v1797 = vadd.f32 0.0, %v1796
    %v1798 = vpop.f32.mrb[0].mxu0
    %v1799 = vadd.f32 0.0, %v1798
    %v1800 = vpop.f32.mrb[0].mxu0
    %v1801 = vpop.f32.mrb[0].mxu0
    %1802 = vdwg.mxu0
    %1803 = vmatprep.subr.bf16.mxu0 %v1060
    %1804 = vmatpush1.bf16.msra.mxu0 %v1059
    %1805 = vmatprep.subr.bf16.mxu0 %v1064
    %1806 = vmatpush1.bf16.msra.mxu0 %v1063
    %1807 = vmatprep.subr.bf16.mxu0 %v1068
    %1808 = vmatpush1.bf16.msra.mxu0 %v1067
    %1809 = vmatprep.subr.bf16.mxu0 %v1072
    %1810 = vmatpush1.bf16.msra.mxu0 %v1071
    %1811 = vmatprep.subr.bf16.mxu0 %v1076
    %1812 = vmatpush1.bf16.msra.mxu0 %v1075
    %1813 = vmatprep.subr.bf16.mxu0 %v1080
    %1814 = vmatpush1.bf16.msra.mxu0 %v1079
    %1815 = vmatprep.subr.bf16.mxu0 %v1084
    %1816 = vmatpush1.bf16.msra.mxu0 %v1083
    %1817 = vmatprep.subr.bf16.mxu0 %v1088
    %1818 = vmatpush1.bf16.msra.mxu0 %v1087
    %1819 = vmatprep.subr.bf16.mxu0 0
    %1820 = vmatpush1.bf16.msra.mxu0 0
    %1821 = vmatprep.subr.bf16.mxu0 0
    %1822 = vmatpush1.bf16.msra.mxu0 0
    %1823 = vmatprep.subr.bf16.mxu0 0
    %1824 = vmatpush1.bf16.msra.mxu0 0
    %1825 = vmatprep.subr.bf16.mxu0 0
    %1826 = vmatpush1.bf16.msra.mxu0 0
    %1827 = vmatprep.subr.bf16.mxu0 0
    %1828 = vmatpush1.bf16.msra.mxu0 0
    %1829 = vmatprep.subr.bf16.mxu0 0
    %1830 = vmatpush1.bf16.msra.mxu0 0
    %1831 = vmatprep.subr.bf16.mxu0 0
    %1832 = vmatpush1.bf16.msra.mxu0 0
    %1833 = vmatprep.subr.bf16.mxu0 0
    %1834 = vmatpush1.bf16.msra.mxu0 0
    %1835 = vmatprep.mubr.bf16.mxu0 0
    %1836 = vmatmul.mubr.bf16.gmra.mrb[0].mxu0 %v1760
    %v1837 = vpop.f32.mrb[0].mxu0
    %v1838 = vadd.f32 0.0, %v1837
    %v1839 = vpop.f32.mrb[0].mxu0
    %v1840 = vadd.f32 0.0, %v1839
    %v1841 = vpop.f32.mrb[0].mxu0
    %v1842 = vpop.f32.mrb[0].mxu0
    %1843 = vdwg.mxu0
    %v1848 = vcombine.low %v1797, %v1799
    %v1849 = vcombine.low %v1838, %v1840
    %v1851 = vunpack.c.l.s4 1966171168
    %v1852 = vunpack.c.0.s8 %v1851
    %v1853 = vlaneseq
    %v1854 = vshrl.u32 %v1853, 7
    %v1855 = vsub.s32 %v1852, %v1854
    %v1856 = vrot.slane %v1848, %v1855
    %v1858 = vunpack.c.l.s4 1966171168
    %v1859 = vunpack.c.0.s8 %v1858
    %v1860 = vlaneseq
    %v1861 = vshrl.u32 %v1860, 7
    %v1862 = vsub.s32 %v1859, %v1861
    %v1863 = vrot.slane %v1849, %v1862
    %v1864 = vcombine.low %v1856, %v1863
    %v1865 = vcombine.high %v1856, %v1863
    %v1867 = vunpack.c.l.s4 1966171168
    %v1868 = vunpack.c.0.s8 %v1867
    %v1869 = vlaneseq
    %v1870 = vshrl.u32 %v1869, 7
    %v1871 = vsub.s32 %v1868, %v1870
    %v1872 = vrot.slane %v1864, %v1871
    %v1874 = vunpack.c.l.s4 1966171168
    %v1875 = vunpack.c.0.s8 %v1874
    %v1876 = vlaneseq
    %v1877 = vshrl.u32 %v1876, 7
    %v1878 = vsub.s32 %v1875, %v1877
    %v1879 = vrot.slane %v1865, %v1878
    %v1882 = vadd.f32 %v1751, %v1872
    %v1883 = vadd.f32 %v1753, %v1879
    %v1884 = vmul.f32 %v1882, 0.5
    %v1885 = vmul.f32 %v1883, 0.5
    %v1886 = vtanh.pop %v1884
    %v1887 = vtanh.pop %v1885
    %v1888 = vmul.f32 %v1886, 0.5
    %v1889 = vmul.f32 %v1887, 0.5
    %v1890 = vadd.f32 %v1888, 0.5
    %v1891 = vadd.f32 %v1889, 0.5
    %v1894 = vrot.slane %v1882, 1
    %v1895 = vrot.slane %v1883, 1
    %v1898 = vmul.f32 %v1894, 0.5
    %v1899 = vmul.f32 %v1895, 0.5
    %v1900 = vtanh.pop %v1898
    %v1901 = vtanh.pop %v1899
    %v1902 = vmul.f32 %v1900, 0.5
    %v1903 = vmul.f32 %v1901, 0.5
    %v1904 = vadd.f32 %v1902, 0.5
    %v1905 = vadd.f32 %v1903, 0.5
    %v1906 = vrot.slane %v1882, 2
    %v1907 = vrot.slane %v1883, 2
    %v1910 = vtanh.pop %v1906
    %v1911 = vtanh.pop %v1907
    %v1912 = vrot.slane %v1882, 3
    %v1913 = vrot.slane %v1883, 3
    %v1916 = vmul.f32 %v1912, 0.5
    %v1917 = vmul.f32 %v1913, 0.5
    %v1918 = vtanh.pop %v1916
    %v1919 = vtanh.pop %v1917
    %v1920 = vmul.f32 %v1918, 0.5
    %v1921 = vmul.f32 %v1919, 0.5
    %v1922 = vadd.f32 %v1920, 0.5
    %v1923 = vadd.f32 %v1921, 0.5
    %v1924 = vmul.f32 %v1904, %v1723
    %v1925 = vmul.f32 %v1905, %v1724
    %v1926 = vmul.f32 %v1890, %v1910
    %v1927 = vmul.f32 %v1891, %v1911
    %v1928 = vadd.f32 %v1924, %v1926
    %v1929 = vadd.f32 %v1925, %v1927
    %v1930 = vtanh.pop %v1928
    %v1931 = vtanh.pop %v1929
    %v1932 = vmul.f32 %v1922, %v1930
    %v1933 = vmul.f32 %v1923, %v1931
    %v1936 = vcombine.low %v1932, %v1933
    %v1938 = vunpack.c.l.s4 1966171168
    %v1939 = vunpack.c.0.s8 %v1938
    %v1940 = vlaneseq
    %v1941 = vshrl.u32 %v1940, 7
    %v1942 = vsub.s32 %v1939, %v1941
    %v1943 = vrot.slane %v1936, %v1942
    %v1945 = vunpack.c.l.s4 1966171168
    %v1946 = vunpack.c.0.s8 %v1945
    %v1947 = vlaneseq
    %v1948 = vshrl.u32 %v1947, 7
    %v1949 = vsub.s32 %v1946, %v1948
    %v1950 = vrot.slane %v1943, %v1949
    %v1952 = vmax.f32 %v1747, %v1950
    %v1953 = vpack.c.bf16 %v1932, %v1932
    %v1954 = vpack.c.bf16 %v1933, %v1933
    %s1955 = scalar_lea.vmem [#allocation2], 4
    %v1956 = vld [vmem:[%s1955] ss:$8 sm:$0xf]
    %s1957 = scalar_lea.vmem [#allocation2], 36
    %v1958 = vld [vmem:[%s1957] ss:$8 sm:$0xf]
    %v1961 = vunpack.c.l.b16 %v1953
    %v1962 = vunpack.c.l.b16 %v1954
    %v1963 = vrot.slane %v1962, 7
    %v1964 = vsel %vm1348, %v1963, %v1961
    %v1965 = vpack.c.b16 %v1964, %v1964
    %1967 = vmatprep.subr.bf16.mxu0 %v1058
    %1968 = vmatpush1.bf16.msra.mxu0 %v1057
    %1969 = vmatprep.subr.bf16.mxu0 %v1062
    %1970 = vmatpush1.bf16.msra.mxu0 %v1061
    %1971 = vmatprep.subr.bf16.mxu0 %v1066
    %1972 = vmatpush1.bf16.msra.mxu0 %v1065
    %1973 = vmatprep.subr.bf16.mxu0 %v1070
    %1974 = vmatpush1.bf16.msra.mxu0 %v1069
    %1975 = vmatprep.subr.bf16.mxu0 %v1074
    %1976 = vmatpush1.bf16.msra.mxu0 %v1073
    %1977 = vmatprep.subr.bf16.mxu0 %v1078
    %1978 = vmatpush1.bf16.msra.mxu0 %v1077
    %1979 = vmatprep.subr.bf16.mxu0 %v1082
    %1980 = vmatpush1.bf16.msra.mxu0 %v1081
    %1981 = vmatprep.subr.bf16.mxu0 %v1086
    %1982 = vmatpush1.bf16.msra.mxu0 %v1085
    %1983 = vmatprep.subr.bf16.mxu0 0
    %1984 = vmatpush1.bf16.msra.mxu0 0
    %1985 = vmatprep.subr.bf16.mxu0 0
    %1986 = vmatpush1.bf16.msra.mxu0 0
    %1987 = vmatprep.subr.bf16.mxu0 0
    %1988 = vmatpush1.bf16.msra.mxu0 0
    %1989 = vmatprep.subr.bf16.mxu0 0
    %1990 = vmatpush1.bf16.msra.mxu0 0
    %1991 = vmatprep.subr.bf16.mxu0 0
    %1992 = vmatpush1.bf16.msra.mxu0 0
    %1993 = vmatprep.subr.bf16.mxu0 0
    %1994 = vmatpush1.bf16.msra.mxu0 0
    %1995 = vmatprep.subr.bf16.mxu0 0
    %1996 = vmatpush1.bf16.msra.mxu0 0
    %1997 = vmatprep.subr.bf16.mxu0 0
    %1998 = vmatpush1.bf16.msra.mxu0 0
    %1999 = vmatprep.mubr.bf16.mxu0 0
    %2000 = vmatmul.mubr.bf16.gmra.mrb[0].mxu0 %v1965
    %v2001 = vpop.f32.mrb[0].mxu0
    %v2002 = vadd.f32 0.0, %v2001
    %v2003 = vpop.f32.mrb[0].mxu0
    %v2004 = vadd.f32 0.0, %v2003
    %v2005 = vpop.f32.mrb[0].mxu0
    %v2006 = vpop.f32.mrb[0].mxu0
    %2007 = vdwg.mxu0
    %2008 = vmatprep.subr.bf16.mxu0 %v1060
    %2009 = vmatpush1.bf16.msra.mxu0 %v1059
    %2010 = vmatprep.subr.bf16.mxu0 %v1064
    %2011 = vmatpush1.bf16.msra.mxu0 %v1063
    %2012 = vmatprep.subr.bf16.mxu0 %v1068
    %2013 = vmatpush1.bf16.msra.mxu0 %v1067
    %2014 = vmatprep.subr.bf16.mxu0 %v1072
    %2015 = vmatpush1.bf16.msra.mxu0 %v1071
    %2016 = vmatprep.subr.bf16.mxu0 %v1076
    %2017 = vmatpush1.bf16.msra.mxu0 %v1075
    %2018 = vmatprep.subr.bf16.mxu0 %v1080
    %2019 = vmatpush1.bf16.msra.mxu0 %v1079
    %2020 = vmatprep.subr.bf16.mxu0 %v1084
    %2021 = vmatpush1.bf16.msra.mxu0 %v1083
    %2022 = vmatprep.subr.bf16.mxu0 %v1088
    %2023 = vmatpush1.bf16.msra.mxu0 %v1087
    %2024 = vmatprep.subr.bf16.mxu0 0
    %2025 = vmatpush1.bf16.msra.mxu0 0
    %2026 = vmatprep.subr.bf16.mxu0 0
    %2027 = vmatpush1.bf16.msra.mxu0 0
    %2028 = vmatprep.subr.bf16.mxu0 0
    %2029 = vmatpush1.bf16.msra.mxu0 0
    %2030 = vmatprep.subr.bf16.mxu0 0
    %2031 = vmatpush1.bf16.msra.mxu0 0
    %2032 = vmatprep.subr.bf16.mxu0 0
    %2033 = vmatpush1.bf16.msra.mxu0 0
    %2034 = vmatprep.subr.bf16.mxu0 0
    %2035 = vmatpush1.bf16.msra.mxu0 0
    %2036 = vmatprep.subr.bf16.mxu0 0
    %2037 = vmatpush1.bf16.msra.mxu0 0
    %2038 = vmatprep.subr.bf16.mxu0 0
    %2039 = vmatpush1.bf16.msra.mxu0 0
    %2040 = vmatprep.mubr.bf16.mxu0 0
    %2041 = vmatmul.mubr.bf16.gmra.mrb[0].mxu0 %v1965
    %v2042 = vpop.f32.mrb[0].mxu0
    %v2043 = vadd.f32 0.0, %v2042
    %v2044 = vpop.f32.mrb[0].mxu0
    %v2045 = vadd.f32 0.0, %v2044
    %v2046 = vpop.f32.mrb[0].mxu0
    %v2047 = vpop.f32.mrb[0].mxu0
    %2048 = vdwg.mxu0
    %v2053 = vcombine.low %v2002, %v2004
    %v2054 = vcombine.low %v2043, %v2045
    %v2056 = vunpack.c.l.s4 1966171168
    %v2057 = vunpack.c.0.s8 %v2056
    %v2058 = vlaneseq
    %v2059 = vshrl.u32 %v2058, 7
    %v2060 = vsub.s32 %v2057, %v2059
    %v2061 = vrot.slane %v2053, %v2060
    %v2063 = vunpack.c.l.s4 1966171168
    %v2064 = vunpack.c.0.s8 %v2063
    %v2065 = vlaneseq
    %v2066 = vshrl.u32 %v2065, 7
    %v2067 = vsub.s32 %v2064, %v2066
    %v2068 = vrot.slane %v2054, %v2067
    %v2069 = vcombine.low %v2061, %v2068
    %v2070 = vcombine.high %v2061, %v2068
    %v2072 = vunpack.c.l.s4 1966171168
    %v2073 = vunpack.c.0.s8 %v2072
    %v2074 = vlaneseq
    %v2075 = vshrl.u32 %v2074, 7
    %v2076 = vsub.s32 %v2073, %v2075
    %v2077 = vrot.slane %v2069, %v2076
    %v2079 = vunpack.c.l.s4 1966171168
    %v2080 = vunpack.c.0.s8 %v2079
    %v2081 = vlaneseq
    %v2082 = vshrl.u32 %v2081, 7
    %v2083 = vsub.s32 %v2080, %v2082
    %v2084 = vrot.slane %v2070, %v2083
    %v2087 = vadd.f32 %v1956, %v2077
    %v2088 = vadd.f32 %v1958, %v2084
    %v2089 = vmul.f32 %v2087, 0.5
    %v2090 = vmul.f32 %v2088, 0.5
    %v2091 = vtanh.pop %v2089
    %v2092 = vtanh.pop %v2090
    %v2093 = vmul.f32 %v2091, 0.5
    %v2094 = vmul.f32 %v2092, 0.5
    %v2095 = vadd.f32 %v2093, 0.5
    %v2096 = vadd.f32 %v2094, 0.5
    %v2099 = vrot.slane %v2087, 1
    %v2100 = vrot.slane %v2088, 1
    %v2103 = vmul.f32 %v2099, 0.5
    %v2104 = vmul.f32 %v2100, 0.5
    %v2105 = vtanh.pop %v2103
    %v2106 = vtanh.pop %v2104
    %v2107 = vmul.f32 %v2105, 0.5
    %v2108 = vmul.f32 %v2106, 0.5
    %v2109 = vadd.f32 %v2107, 0.5
    %v2110 = vadd.f32 %v2108, 0.5
    %v2111 = vrot.slane %v2087, 2
    %v2112 = vrot.slane %v2088, 2
    %v2115 = vtanh.pop %v2111
    %v2116 = vtanh.pop %v2112
    %v2117 = vrot.slane %v2087, 3
    %v2118 = vrot.slane %v2088, 3
    %v2121 = vmul.f32 %v2117, 0.5
    %v2122 = vmul.f32 %v2118, 0.5
    %v2123 = vtanh.pop %v2121
    %v2124 = vtanh.pop %v2122
    %v2125 = vmul.f32 %v2123, 0.5
    %v2126 = vmul.f32 %v2124, 0.5
    %v2127 = vadd.f32 %v2125, 0.5
    %v2128 = vadd.f32 %v2126, 0.5
    %v2129 = vmul.f32 %v2109, %v1928
    %v2130 = vmul.f32 %v2110, %v1929
    %v2131 = vmul.f32 %v2095, %v2115
    %v2132 = vmul.f32 %v2096, %v2116
    %v2133 = vadd.f32 %v2129, %v2131
    %v2134 = vadd.f32 %v2130, %v2132
    %v2135 = vtanh.pop %v2133
    %v2136 = vtanh.pop %v2134
    %v2137 = vmul.f32 %v2127, %v2135
    %v2138 = vmul.f32 %v2128, %v2136
    %v2141 = vcombine.low %v2137, %v2138
    %v2143 = vunpack.c.l.s4 1966171168
    %v2144 = vunpack.c.0.s8 %v2143
    %v2145 = vlaneseq
    %v2146 = vshrl.u32 %v2145, 7
    %v2147 = vsub.s32 %v2144, %v2146
    %v2148 = vrot.slane %v2141, %v2147
    %v2150 = vunpack.c.l.s4 1966171168
    %v2151 = vunpack.c.0.s8 %v2150
    %v2152 = vlaneseq
    %v2153 = vshrl.u32 %v2152, 7
    %v2154 = vsub.s32 %v2151, %v2153
    %v2155 = vrot.slane %v2148, %v2154
    %v2157 = vmax.f32 %v1952, %v2155
    %v2158 = vpack.c.bf16 %v2137, %v2137
    %v2159 = vpack.c.bf16 %v2138, %v2138
    %s2160 = scalar_lea.vmem [#allocation2], 5
    %v2161 = vld [vmem:[%s2160] ss:$8 sm:$0xf]
    %s2162 = scalar_lea.vmem [#allocation2], 37
    %v2163 = vld [vmem:[%s2162] ss:$8 sm:$0xf]
    %v2166 = vunpack.c.l.b16 %v2158
    %v2167 = vunpack.c.l.b16 %v2159
    %v2168 = vrot.slane %v2167, 7
    %v2169 = vsel %vm1348, %v2168, %v2166
    %v2170 = vpack.c.b16 %v2169, %v2169
    %2172 = vmatprep.subr.bf16.mxu0 %v1058
    %2173 = vmatpush1.bf16.msra.mxu0 %v1057
    %2174 = vmatprep.subr.bf16.mxu0 %v1062
    %2175 = vmatpush1.bf16.msra.mxu0 %v1061
    %2176 = vmatprep.subr.bf16.mxu0 %v1066
    %2177 = vmatpush1.bf16.msra.mxu0 %v1065
    %2178 = vmatprep.subr.bf16.mxu0 %v1070
    %2179 = vmatpush1.bf16.msra.mxu0 %v1069
    %2180 = vmatprep.subr.bf16.mxu0 %v1074
    %2181 = vmatpush1.bf16.msra.mxu0 %v1073
    %2182 = vmatprep.subr.bf16.mxu0 %v1078
    %2183 = vmatpush1.bf16.msra.mxu0 %v1077
    %2184 = vmatprep.subr.bf16.mxu0 %v1082
    %2185 = vmatpush1.bf16.msra.mxu0 %v1081
    %2186 = vmatprep.subr.bf16.mxu0 %v1086
    %2187 = vmatpush1.bf16.msra.mxu0 %v1085
    %2188 = vmatprep.subr.bf16.mxu0 0
    %2189 = vmatpush1.bf16.msra.mxu0 0
    %2190 = vmatprep.subr.bf16.mxu0 0
    %2191 = vmatpush1.bf16.msra.mxu0 0
    %2192 = vmatprep.subr.bf16.mxu0 0
    %2193 = vmatpush1.bf16.msra.mxu0 0
    %2194 = vmatprep.subr.bf16.mxu0 0
    %2195 = vmatpush1.bf16.msra.mxu0 0
    %2196 = vmatprep.subr.bf16.mxu0 0
    %2197 = vmatpush1.bf16.msra.mxu0 0
    %2198 = vmatprep.subr.bf16.mxu0 0
    %2199 = vmatpush1.bf16.msra.mxu0 0
    %2200 = vmatprep.subr.bf16.mxu0 0
    %2201 = vmatpush1.bf16.msra.mxu0 0
    %2202 = vmatprep.subr.bf16.mxu0 0
    %2203 = vmatpush1.bf16.msra.mxu0 0
    %2204 = vmatprep.mubr.bf16.mxu0 0
    %2205 = vmatmul.mubr.bf16.gmra.mrb[0].mxu0 %v2170
    %v2206 = vpop.f32.mrb[0].mxu0
    %v2207 = vadd.f32 0.0, %v2206
    %v2208 = vpop.f32.mrb[0].mxu0
    %v2209 = vadd.f32 0.0, %v2208
    %v2210 = vpop.f32.mrb[0].mxu0
    %v2211 = vpop.f32.mrb[0].mxu0
    %2212 = vdwg.mxu0
    %2213 = vmatprep.subr.bf16.mxu0 %v1060
    %2214 = vmatpush1.bf16.msra.mxu0 %v1059
    %2215 = vmatprep.subr.bf16.mxu0 %v1064
    %2216 = vmatpush1.bf16.msra.mxu0 %v1063
    %2217 = vmatprep.subr.bf16.mxu0 %v1068
    %2218 = vmatpush1.bf16.msra.mxu0 %v1067
    %2219 = vmatprep.subr.bf16.mxu0 %v1072
    %2220 = vmatpush1.bf16.msra.mxu0 %v1071
    %2221 = vmatprep.subr.bf16.mxu0 %v1076
    %2222 = vmatpush1.bf16.msra.mxu0 %v1075
    %2223 = vmatprep.subr.bf16.mxu0 %v1080
    %2224 = vmatpush1.bf16.msra.mxu0 %v1079
    %2225 = vmatprep.subr.bf16.mxu0 %v1084
    %2226 = vmatpush1.bf16.msra.mxu0 %v1083
    %2227 = vmatprep.subr.bf16.mxu0 %v1088
    %2228 = vmatpush1.bf16.msra.mxu0 %v1087
    %2229 = vmatprep.subr.bf16.mxu0 0
    %2230 = vmatpush1.bf16.msra.mxu0 0
    %2231 = vmatprep.subr.bf16.mxu0 0
    %2232 = vmatpush1.bf16.msra.mxu0 0
    %2233 = vmatprep.subr.bf16.mxu0 0
    %2234 = vmatpush1.bf16.msra.mxu0 0
    %2235 = vmatprep.subr.bf16.mxu0 0
    %2236 = vmatpush1.bf16.msra.mxu0 0
    %2237 = vmatprep.subr.bf16.mxu0 0
    %2238 = vmatpush1.bf16.msra.mxu0 0
    %2239 = vmatprep.subr.bf16.mxu0 0
    %2240 = vmatpush1.bf16.msra.mxu0 0
    %2241 = vmatprep.subr.bf16.mxu0 0
    %2242 = vmatpush1.bf16.msra.mxu0 0
    %2243 = vmatprep.subr.bf16.mxu0 0
    %2244 = vmatpush1.bf16.msra.mxu0 0
    %2245 = vmatprep.mubr.bf16.mxu0 0
    %2246 = vmatmul.mubr.bf16.gmra.mrb[0].mxu0 %v2170
    %v2247 = vpop.f32.mrb[0].mxu0
    %v2248 = vadd.f32 0.0, %v2247
    %v2249 = vpop.f32.mrb[0].mxu0
    %v2250 = vadd.f32 0.0, %v2249
    %v2251 = vpop.f32.mrb[0].mxu0
    %v2252 = vpop.f32.mrb[0].mxu0
    %2253 = vdwg.mxu0
    %v2258 = vcombine.low %v2207, %v2209
    %v2259 = vcombine.low %v2248, %v2250
    %v2261 = vunpack.c.l.s4 1966171168
    %v2262 = vunpack.c.0.s8 %v2261
    %v2263 = vlaneseq
    %v2264 = vshrl.u32 %v2263, 7
    %v2265 = vsub.s32 %v2262, %v2264
    %v2266 = vrot.slane %v2258, %v2265
    %v2268 = vunpack.c.l.s4 1966171168
    %v2269 = vunpack.c.0.s8 %v2268
    %v2270 = vlaneseq
    %v2271 = vshrl.u32 %v2270, 7
    %v2272 = vsub.s32 %v2269, %v2271
    %v2273 = vrot.slane %v2259, %v2272
    %v2274 = vcombine.low %v2266, %v2273
    %v2275 = vcombine.high %v2266, %v2273
    %v2277 = vunpack.c.l.s4 1966171168
    %v2278 = vunpack.c.0.s8 %v2277
    %v2279 = vlaneseq
    %v2280 = vshrl.u32 %v2279, 7
    %v2281 = vsub.s32 %v2278, %v2280
    %v2282 = vrot.slane %v2274, %v2281
    %v2284 = vunpack.c.l.s4 1966171168
    %v2285 = vunpack.c.0.s8 %v2284
    %v2286 = vlaneseq
    %v2287 = vshrl.u32 %v2286, 7
    %v2288 = vsub.s32 %v2285, %v2287
    %v2289 = vrot.slane %v2275, %v2288
    %v2292 = vadd.f32 %v2161, %v2282
    %v2293 = vadd.f32 %v2163, %v2289
    %v2294 = vmul.f32 %v2292, 0.5
    %v2295 = vmul.f32 %v2293, 0.5
    %v2296 = vtanh.pop %v2294
    %v2297 = vtanh.pop %v2295
    %v2298 = vmul.f32 %v2296, 0.5
    %v2299 = vmul.f32 %v2297, 0.5
    %v2300 = vadd.f32 %v2298, 0.5
    %v2301 = vadd.f32 %v2299, 0.5
    %v2304 = vrot.slane %v2292, 1
    %v2305 = vrot.slane %v2293, 1
    %v2308 = vmul.f32 %v2304, 0.5
    %v2309 = vmul.f32 %v2305, 0.5
    %v2310 = vtanh.pop %v2308
    %v2311 = vtanh.pop %v2309
    %v2312 = vmul.f32 %v2310, 0.5
    %v2313 = vmul.f32 %v2311, 0.5
    %v2314 = vadd.f32 %v2312, 0.5
    %v2315 = vadd.f32 %v2313, 0.5
    %v2316 = vrot.slane %v2292, 2
    %v2317 = vrot.slane %v2293, 2
    %v2320 = vtanh.pop %v2316
    %v2321 = vtanh.pop %v2317
    %v2322 = vrot.slane %v2292, 3
    %v2323 = vrot.slane %v2293, 3
    %v2326 = vmul.f32 %v2322, 0.5
    %v2327 = vmul.f32 %v2323, 0.5
    %v2328 = vtanh.pop %v2326
    %v2329 = vtanh.pop %v2327
    %v2330 = vmul.f32 %v2328, 0.5
    %v2331 = vmul.f32 %v2329, 0.5
    %v2332 = vadd.f32 %v2330, 0.5
    %v2333 = vadd.f32 %v2331, 0.5
    %v2334 = vmul.f32 %v2314, %v2133
    %v2335 = vmul.f32 %v2315, %v2134
    %v2336 = vmul.f32 %v2300, %v2320
    %v2337 = vmul.f32 %v2301, %v2321
    %v2338 = vadd.f32 %v2334, %v2336
    %v2339 = vadd.f32 %v2335, %v2337
    %v2340 = vtanh.pop %v2338
    %v2341 = vtanh.pop %v2339
    %v2342 = vmul.f32 %v2332, %v2340
    %v2343 = vmul.f32 %v2333, %v2341
    %v2346 = vcombine.low %v2342, %v2343
    %v2348 = vunpack.c.l.s4 1966171168
    %v2349 = vunpack.c.0.s8 %v2348
    %v2350 = vlaneseq
    %v2351 = vshrl.u32 %v2350, 7
    %v2352 = vsub.s32 %v2349, %v2351
    %v2353 = vrot.slane %v2346, %v2352
    %v2355 = vunpack.c.l.s4 1966171168
    %v2356 = vunpack.c.0.s8 %v2355
    %v2357 = vlaneseq
    %v2358 = vshrl.u32 %v2357, 7
    %v2359 = vsub.s32 %v2356, %v2358
    %v2360 = vrot.slane %v2353, %v2359
    %v2362 = vmax.f32 %v2157, %v2360
    %v2363 = vpack.c.bf16 %v2342, %v2342
    %v2364 = vpack.c.bf16 %v2343, %v2343
    %s2365 = scalar_lea.vmem [#allocation2], 6
    %v2366 = vld [vmem:[%s2365] ss:$8 sm:$0xf]
    %s2367 = scalar_lea.vmem [#allocation2], 38
    %v2368 = vld [vmem:[%s2367] ss:$8 sm:$0xf]
    %v2371 = vunpack.c.l.b16 %v2363
    %v2372 = vunpack.c.l.b16 %v2364
    %v2373 = vrot.slane %v2372, 7
    %v2374 = vsel %vm1348, %v2373, %v2371
    %v2375 = vpack.c.b16 %v2374, %v2374
    %2377 = vmatprep.subr.bf16.mxu0 %v1058
    %2378 = vmatpush1.bf16.msra.mxu0 %v1057
    %2379 = vmatprep.subr.bf16.mxu0 %v1062
    %2380 = vmatpush1.bf16.msra.mxu0 %v1061
    %2381 = vmatprep.subr.bf16.mxu0 %v1066
    %2382 = vmatpush1.bf16.msra.mxu0 %v1065
    %2383 = vmatprep.subr.bf16.mxu0 %v1070
    %2384 = vmatpush1.bf16.msra.mxu0 %v1069
    %2385 = vmatprep.subr.bf16.mxu0 %v1074
    %2386 = vmatpush1.bf16.msra.mxu0 %v1073
    %2387 = vmatprep.subr.bf16.mxu0 %v1078
    %2388 = vmatpush1.bf16.msra.mxu0 %v1077
    %2389 = vmatprep.subr.bf16.mxu0 %v1082
    %2390 = vmatpush1.bf16.msra.mxu0 %v1081
    %2391 = vmatprep.subr.bf16.mxu0 %v1086
    %2392 = vmatpush1.bf16.msra.mxu0 %v1085
    %2393 = vmatprep.subr.bf16.mxu0 0
    %2394 = vmatpush1.bf16.msra.mxu0 0
    %2395 = vmatprep.subr.bf16.mxu0 0
    %2396 = vmatpush1.bf16.msra.mxu0 0
    %2397 = vmatprep.subr.bf16.mxu0 0
    %2398 = vmatpush1.bf16.msra.mxu0 0
    %2399 = vmatprep.subr.bf16.mxu0 0
    %2400 = vmatpush1.bf16.msra.mxu0 0
    %2401 = vmatprep.subr.bf16.mxu0 0
    %2402 = vmatpush1.bf16.msra.mxu0 0
    %2403 = vmatprep.subr.bf16.mxu0 0
    %2404 = vmatpush1.bf16.msra.mxu0 0
    %2405 = vmatprep.subr.bf16.mxu0 0
    %2406 = vmatpush1.bf16.msra.mxu0 0
    %2407 = vmatprep.subr.bf16.mxu0 0
    %2408 = vmatpush1.bf16.msra.mxu0 0
    %2409 = vmatprep.mubr.bf16.mxu0 0
    %2410 = vmatmul.mubr.bf16.gmra.mrb[0].mxu0 %v2375
    %v2411 = vpop.f32.mrb[0].mxu0
    %v2412 = vadd.f32 0.0, %v2411
    %v2413 = vpop.f32.mrb[0].mxu0
    %v2414 = vadd.f32 0.0, %v2413
    %v2415 = vpop.f32.mrb[0].mxu0
    %v2416 = vpop.f32.mrb[0].mxu0
    %2417 = vdwg.mxu0
    %2418 = vmatprep.subr.bf16.mxu0 %v1060
    %2419 = vmatpush1.bf16.msra.mxu0 %v1059
    %2420 = vmatprep.subr.bf16.mxu0 %v1064
    %2421 = vmatpush1.bf16.msra.mxu0 %v1063
    %2422 = vmatprep.subr.bf16.mxu0 %v1068
    %2423 = vmatpush1.bf16.msra.mxu0 %v1067
    %2424 = vmatprep.subr.bf16.mxu0 %v1072
    %2425 = vmatpush1.bf16.msra.mxu0 %v1071
    %2426 = vmatprep.subr.bf16.mxu0 %v1076
    %2427 = vmatpush1.bf16.msra.mxu0 %v1075
    %2428 = vmatprep.subr.bf16.mxu0 %v1080
    %2429 = vmatpush1.bf16.msra.mxu0 %v1079
    %2430 = vmatprep.subr.bf16.mxu0 %v1084
    %2431 = vmatpush1.bf16.msra.mxu0 %v1083
    %2432 = vmatprep.subr.bf16.mxu0 %v1088
    %2433 = vmatpush1.bf16.msra.mxu0 %v1087
    %2434 = vmatprep.subr.bf16.mxu0 0
    %2435 = vmatpush1.bf16.msra.mxu0 0
    %2436 = vmatprep.subr.bf16.mxu0 0
    %2437 = vmatpush1.bf16.msra.mxu0 0
    %2438 = vmatprep.subr.bf16.mxu0 0
    %2439 = vmatpush1.bf16.msra.mxu0 0
    %2440 = vmatprep.subr.bf16.mxu0 0
    %2441 = vmatpush1.bf16.msra.mxu0 0
    %2442 = vmatprep.subr.bf16.mxu0 0
    %2443 = vmatpush1.bf16.msra.mxu0 0
    %2444 = vmatprep.subr.bf16.mxu0 0
    %2445 = vmatpush1.bf16.msra.mxu0 0
    %2446 = vmatprep.subr.bf16.mxu0 0
    %2447 = vmatpush1.bf16.msra.mxu0 0
    %2448 = vmatprep.subr.bf16.mxu0 0
    %2449 = vmatpush1.bf16.msra.mxu0 0
    %2450 = vmatprep.mubr.bf16.mxu0 0
    %2451 = vmatmul.mubr.bf16.gmra.mrb[0].mxu0 %v2375
    %v2452 = vpop.f32.mrb[0].mxu0
    %v2453 = vadd.f32 0.0, %v2452
    %v2454 = vpop.f32.mrb[0].mxu0
    %v2455 = vadd.f32 0.0, %v2454
    %v2456 = vpop.f32.mrb[0].mxu0
    %v2457 = vpop.f32.mrb[0].mxu0
    %2458 = vdwg.mxu0
    %v2463 = vcombine.low %v2412, %v2414
    %v2464 = vcombine.low %v2453, %v2455
    %v2466 = vunpack.c.l.s4 1966171168
    %v2467 = vunpack.c.0.s8 %v2466
    %v2468 = vlaneseq
    %v2469 = vshrl.u32 %v2468, 7
    %v2470 = vsub.s32 %v2467, %v2469
    %v2471 = vrot.slane %v2463, %v2470
    %v2473 = vunpack.c.l.s4 1966171168
    %v2474 = vunpack.c.0.s8 %v2473
    %v2475 = vlaneseq
    %v2476 = vshrl.u32 %v2475, 7
    %v2477 = vsub.s32 %v2474, %v2476
    %v2478 = vrot.slane %v2464, %v2477
    %v2479 = vcombine.low %v2471, %v2478
    %v2480 = vcombine.high %v2471, %v2478
    %v2482 = vunpack.c.l.s4 1966171168
    %v2483 = vunpack.c.0.s8 %v2482
    %v2484 = vlaneseq
    %v2485 = vshrl.u32 %v2484, 7
    %v2486 = vsub.s32 %v2483, %v2485
    %v2487 = vrot.slane %v2479, %v2486
    %v2489 = vunpack.c.l.s4 1966171168
    %v2490 = vunpack.c.0.s8 %v2489
    %v2491 = vlaneseq
    %v2492 = vshrl.u32 %v2491, 7
    %v2493 = vsub.s32 %v2490, %v2492
    %v2494 = vrot.slane %v2480, %v2493
    %v2497 = vadd.f32 %v2366, %v2487
    %v2498 = vadd.f32 %v2368, %v2494
    %v2499 = vmul.f32 %v2497, 0.5
    %v2500 = vmul.f32 %v2498, 0.5
    %v2501 = vtanh.pop %v2499
    %v2502 = vtanh.pop %v2500
    %v2503 = vmul.f32 %v2501, 0.5
    %v2504 = vmul.f32 %v2502, 0.5
    %v2505 = vadd.f32 %v2503, 0.5
    %v2506 = vadd.f32 %v2504, 0.5
    %v2509 = vrot.slane %v2497, 1
    %v2510 = vrot.slane %v2498, 1
    %v2513 = vmul.f32 %v2509, 0.5
    %v2514 = vmul.f32 %v2510, 0.5
    %v2515 = vtanh.pop %v2513
    %v2516 = vtanh.pop %v2514
    %v2517 = vmul.f32 %v2515, 0.5
    %v2518 = vmul.f32 %v2516, 0.5
    %v2519 = vadd.f32 %v2517, 0.5
    %v2520 = vadd.f32 %v2518, 0.5
    %v2521 = vrot.slane %v2497, 2
    %v2522 = vrot.slane %v2498, 2
    %v2525 = vtanh.pop %v2521
    %v2526 = vtanh.pop %v2522
    %v2527 = vrot.slane %v2497, 3
    %v2528 = vrot.slane %v2498, 3
    %v2531 = vmul.f32 %v2527, 0.5
    %v2532 = vmul.f32 %v2528, 0.5
    %v2533 = vtanh.pop %v2531
    %v2534 = vtanh.pop %v2532
    %v2535 = vmul.f32 %v2533, 0.5
    %v2536 = vmul.f32 %v2534, 0.5
    %v2537 = vadd.f32 %v2535, 0.5
    %v2538 = vadd.f32 %v2536, 0.5
    %v2539 = vmul.f32 %v2519, %v2338
    %v2540 = vmul.f32 %v2520, %v2339
    %v2541 = vmul.f32 %v2505, %v2525
    %v2542 = vmul.f32 %v2506, %v2526
    %v2543 = vadd.f32 %v2539, %v2541
    %v2544 = vadd.f32 %v2540, %v2542
    %v2545 = vtanh.pop %v2543
    %v2546 = vtanh.pop %v2544
    %v2547 = vmul.f32 %v2537, %v2545
    %v2548 = vmul.f32 %v2538, %v2546
    %v2551 = vcombine.low %v2547, %v2548
    %v2553 = vunpack.c.l.s4 1966171168
    %v2554 = vunpack.c.0.s8 %v2553
    %v2555 = vlaneseq
    %v2556 = vshrl.u32 %v2555, 7
    %v2557 = vsub.s32 %v2554, %v2556
    %v2558 = vrot.slane %v2551, %v2557
    %v2560 = vunpack.c.l.s4 1966171168
    %v2561 = vunpack.c.0.s8 %v2560
    %v2562 = vlaneseq
    %v2563 = vshrl.u32 %v2562, 7
    %v2564 = vsub.s32 %v2561, %v2563
    %v2565 = vrot.slane %v2558, %v2564
    %v2567 = vmax.f32 %v2362, %v2565
    %v2568 = vpack.c.bf16 %v2547, %v2547
    %v2569 = vpack.c.bf16 %v2548, %v2548
    %s2570 = scalar_lea.vmem [#allocation2], 7
    %v2571 = vld [vmem:[%s2570] ss:$8 sm:$0xf]
    %s2572 = scalar_lea.vmem [#allocation2], 39
    %v2573 = vld [vmem:[%s2572] ss:$8 sm:$0xf]
    %v2576 = vunpack.c.l.b16 %v2568
    %v2577 = vunpack.c.l.b16 %v2569
    %v2578 = vrot.slane %v2577, 7
    %v2579 = vsel %vm1348, %v2578, %v2576
    %v2580 = vpack.c.b16 %v2579, %v2579
    %2582 = vmatprep.subr.bf16.mxu0 %v1058
    %2583 = vmatpush1.bf16.msra.mxu0 %v1057
    %2584 = vmatprep.subr.bf16.mxu0 %v1062
    %2585 = vmatpush1.bf16.msra.mxu0 %v1061
    %2586 = vmatprep.subr.bf16.mxu0 %v1066
    %2587 = vmatpush1.bf16.msra.mxu0 %v1065
    %2588 = vmatprep.subr.bf16.mxu0 %v1070
    %2589 = vmatpush1.bf16.msra.mxu0 %v1069
    %2590 = vmatprep.subr.bf16.mxu0 %v1074
    %2591 = vmatpush1.bf16.msra.mxu0 %v1073
    %2592 = vmatprep.subr.bf16.mxu0 %v1078
    %2593 = vmatpush1.bf16.msra.mxu0 %v1077
    %2594 = vmatprep.subr.bf16.mxu0 %v1082
    %2595 = vmatpush1.bf16.msra.mxu0 %v1081
    %2596 = vmatprep.subr.bf16.mxu0 %v1086
    %2597 = vmatpush1.bf16.msra.mxu0 %v1085
    %2598 = vmatprep.subr.bf16.mxu0 0
    %2599 = vmatpush1.bf16.msra.mxu0 0
    %2600 = vmatprep.subr.bf16.mxu0 0
    %2601 = vmatpush1.bf16.msra.mxu0 0
    %2602 = vmatprep.subr.bf16.mxu0 0
    %2603 = vmatpush1.bf16.msra.mxu0 0
    %2604 = vmatprep.subr.bf16.mxu0 0
    %2605 = vmatpush1.bf16.msra.mxu0 0
    %2606 = vmatprep.subr.bf16.mxu0 0
    %2607 = vmatpush1.bf16.msra.mxu0 0
    %2608 = vmatprep.subr.bf16.mxu0 0
    %2609 = vmatpush1.bf16.msra.mxu0 0
    %2610 = vmatprep.subr.bf16.mxu0 0
    %2611 = vmatpush1.bf16.msra.mxu0 0
    %2612 = vmatprep.subr.bf16.mxu0 0
    %2613 = vmatpush1.bf16.msra.mxu0 0
    %2614 = vmatprep.mubr.bf16.mxu0 0
    %2615 = vmatmul.mubr.bf16.gmra.mrb[0].mxu0 %v2580
    %v2616 = vpop.f32.mrb[0].mxu0
    %v2617 = vadd.f32 0.0, %v2616
    %v2618 = vpop.f32.mrb[0].mxu0
    %v2619 = vadd.f32 0.0, %v2618
    %v2620 = vpop.f32.mrb[0].mxu0
    %v2621 = vpop.f32.mrb[0].mxu0
    %2622 = vdwg.mxu0
    %2623 = vmatprep.subr.bf16.mxu0 %v1060
    %2624 = vmatpush1.bf16.msra.mxu0 %v1059
    %2625 = vmatprep.subr.bf16.mxu0 %v1064
    %2626 = vmatpush1.bf16.msra.mxu0 %v1063
    %2627 = vmatprep.subr.bf16.mxu0 %v1068
    %2628 = vmatpush1.bf16.msra.mxu0 %v1067
    %2629 = vmatprep.subr.bf16.mxu0 %v1072
    %2630 = vmatpush1.bf16.msra.mxu0 %v1071
    %2631 = vmatprep.subr.bf16.mxu0 %v1076
    %2632 = vmatpush1.bf16.msra.mxu0 %v1075
    %2633 = vmatprep.subr.bf16.mxu0 %v1080
    %2634 = vmatpush1.bf16.msra.mxu0 %v1079
    %2635 = vmatprep.subr.bf16.mxu0 %v1084
    %2636 = vmatpush1.bf16.msra.mxu0 %v1083
    %2637 = vmatprep.subr.bf16.mxu0 %v1088
    %2638 = vmatpush1.bf16.msra.mxu0 %v1087
    %2639 = vmatprep.subr.bf16.mxu0 0
    %2640 = vmatpush1.bf16.msra.mxu0 0
    %2641 = vmatprep.subr.bf16.mxu0 0
    %2642 = vmatpush1.bf16.msra.mxu0 0
    %2643 = vmatprep.subr.bf16.mxu0 0
    %2644 = vmatpush1.bf16.msra.mxu0 0
    %2645 = vmatprep.subr.bf16.mxu0 0
    %2646 = vmatpush1.bf16.msra.mxu0 0
    %2647 = vmatprep.subr.bf16.mxu0 0
    %2648 = vmatpush1.bf16.msra.mxu0 0
    %2649 = vmatprep.subr.bf16.mxu0 0
    %2650 = vmatpush1.bf16.msra.mxu0 0
    %2651 = vmatprep.subr.bf16.mxu0 0
    %2652 = vmatpush1.bf16.msra.mxu0 0
    %2653 = vmatprep.subr.bf16.mxu0 0
    %2654 = vmatpush1.bf16.msra.mxu0 0
    %2655 = vmatprep.mubr.bf16.mxu0 0
    %2656 = vmatmul.mubr.bf16.gmra.mrb[0].mxu0 %v2580
    %v2657 = vpop.f32.mrb[0].mxu0
    %v2658 = vadd.f32 0.0, %v2657
    %v2659 = vpop.f32.mrb[0].mxu0
    %v2660 = vadd.f32 0.0, %v2659
    %v2661 = vpop.f32.mrb[0].mxu0
    %v2662 = vpop.f32.mrb[0].mxu0
    %2663 = vdwg.mxu0
    %v2668 = vcombine.low %v2617, %v2619
    %v2669 = vcombine.low %v2658, %v2660
    %v2671 = vunpack.c.l.s4 1966171168
    %v2672 = vunpack.c.0.s8 %v2671
    %v2673 = vlaneseq
    %v2674 = vshrl.u32 %v2673, 7
    %v2675 = vsub.s32 %v2672, %v2674
    %v2676 = vrot.slane %v2668, %v2675
    %v2678 = vunpack.c.l.s4 1966171168
    %v2679 = vunpack.c.0.s8 %v2678
    %v2680 = vlaneseq
    %v2681 = vshrl.u32 %v2680, 7
    %v2682 = vsub.s32 %v2679, %v2681
    %v2683 = vrot.slane %v2669, %v2682
    %v2684 = vcombine.low %v2676, %v2683
    %v2685 = vcombine.high %v2676, %v2683
    %v2687 = vunpack.c.l.s4 1966171168
    %v2688 = vunpack.c.0.s8 %v2687
    %v2689 = vlaneseq
    %v2690 = vshrl.u32 %v2689, 7
    %v2691 = vsub.s32 %v2688, %v2690
    %v2692 = vrot.slane %v2684, %v2691
    %v2694 = vunpack.c.l.s4 1966171168
    %v2695 = vunpack.c.0.s8 %v2694
    %v2696 = vlaneseq
    %v2697 = vshrl.u32 %v2696, 7
    %v2698 = vsub.s32 %v2695, %v2697
    %v2699 = vrot.slane %v2685, %v2698
    %v2702 = vadd.f32 %v2571, %v2692
    %v2703 = vadd.f32 %v2573, %v2699
    %v2704 = vmul.f32 %v2702, 0.5
    %v2705 = vmul.f32 %v2703, 0.5
    %v2706 = vtanh.pop %v2704
    %v2707 = vtanh.pop %v2705
    %v2708 = vmul.f32 %v2706, 0.5
    %v2709 = vmul.f32 %v2707, 0.5
    %v2710 = vadd.f32 %v2708, 0.5
    %v2711 = vadd.f32 %v2709, 0.5
    %v2714 = vrot.slane %v2702, 1
    %v2715 = vrot.slane %v2703, 1
    %v2718 = vmul.f32 %v2714, 0.5
    %v2719 = vmul.f32 %v2715, 0.5
    %v2720 = vtanh.pop %v2718
    %v2721 = vtanh.pop %v2719
    %v2722 = vmul.f32 %v2720, 0.5
    %v2723 = vmul.f32 %v2721, 0.5
    %v2724 = vadd.f32 %v2722, 0.5
    %v2725 = vadd.f32 %v2723, 0.5
    %v2726 = vrot.slane %v2702, 2
    %v2727 = vrot.slane %v2703, 2
    %v2730 = vtanh.pop %v2726
    %v2731 = vtanh.pop %v2727
    %v2732 = vrot.slane %v2702, 3
    %v2733 = vrot.slane %v2703, 3
    %v2736 = vmul.f32 %v2732, 0.5
    %v2737 = vmul.f32 %v2733, 0.5
    %v2738 = vtanh.pop %v2736
    %v2739 = vtanh.pop %v2737
    %v2740 = vmul.f32 %v2738, 0.5
    %v2741 = vmul.f32 %v2739, 0.5
    %v2742 = vadd.f32 %v2740, 0.5
    %v2743 = vadd.f32 %v2741, 0.5
    %v2744 = vmul.f32 %v2724, %v2543
    %v2745 = vmul.f32 %v2725, %v2544
    %v2746 = vmul.f32 %v2710, %v2730
    %v2747 = vmul.f32 %v2711, %v2731
    %v2748 = vadd.f32 %v2744, %v2746
    %v2749 = vadd.f32 %v2745, %v2747
    %v2750 = vtanh.pop %v2748
    %v2751 = vtanh.pop %v2749
    %v2752 = vmul.f32 %v2742, %v2750
    %v2753 = vmul.f32 %v2743, %v2751
    %v2756 = vcombine.low %v2752, %v2753
    %v2758 = vunpack.c.l.s4 1966171168
    %v2759 = vunpack.c.0.s8 %v2758
    %v2760 = vlaneseq
    %v2761 = vshrl.u32 %v2760, 7
    %v2762 = vsub.s32 %v2759, %v2761
    %v2763 = vrot.slane %v2756, %v2762
    %v2765 = vunpack.c.l.s4 1966171168
    %v2766 = vunpack.c.0.s8 %v2765
    %v2767 = vlaneseq
    %v2768 = vshrl.u32 %v2767, 7
    %v2769 = vsub.s32 %v2766, %v2768
    %v2770 = vrot.slane %v2763, %v2769
    %v2772 = vmax.f32 %v2567, %v2770
    %v2773 = vpack.c.bf16 %v2752, %v2752
    %v2774 = vpack.c.bf16 %v2753, %v2753
    %v2778 = vunpack.c.l.s4 1966171168
    %v2779 = vunpack.c.0.s8 %v2778
    %v2780 = vlaneseq
    %v2781 = vshrl.u32 %v2780, 7
    %v2782 = vsub.s32 %v2779, %v2781
    %v2783 = vrot.slane %v2773, %v2782
    %v2785 = vunpack.c.l.s4 1966171168
    %v2786 = vunpack.c.0.s8 %v2785
    %v2787 = vlaneseq
    %v2788 = vshrl.u32 %v2787, 7
    %v2789 = vsub.s32 %v2786, %v2788
    %v2790 = vrot.slane %v2783, %v2789
    %v2792 = vunpack.c.l.s4 1966171168
    %v2793 = vunpack.c.0.s8 %v2792
    %v2794 = vlaneseq
    %v2795 = vshrl.u32 %v2794, 7
    %v2796 = vsub.s32 %v2793, %v2795
    %v2797 = vrot.slane %v2774, %v2796
    %v2799 = vunpack.c.l.s4 1966171168
    %v2800 = vunpack.c.0.s8 %v2799
    %v2801 = vlaneseq
    %v2802 = vshrl.u32 %v2801, 7
    %v2803 = vsub.s32 %v2800, %v2802
    %v2804 = vrot.slane %v2797, %v2803
    %v2806 = vunpack.c.l.s4 1935823168
    %v2807 = vunpack.c.0.s8 %v2806
    %v2808 = vlaneseq
    %v2809 = vshrl.u32 %v2808, 7
    %v2810 = vsub.s32 %v2807, %v2809
    %v2811 = vrot.slane %v2790, %v2810
    %v2813 = vunpack.c.l.s4 1935823168
    %v2814 = vunpack.c.0.s8 %v2813
    %v2815 = vlaneseq
    %v2816 = vshrl.u32 %v2815, 7
    %v2817 = vsub.s32 %v2814, %v2816
    %v2818 = vrot.slane %v2811, %v2817
    %v2820 = vunpack.c.l.s4 1935823168
    %v2821 = vunpack.c.0.s8 %v2820
    %v2822 = vlaneseq
    %v2823 = vshrl.u32 %v2822, 7
    %v2824 = vsub.s32 %v2821, %v2823
    %v2825 = vrot.slane %v2804, %v2824
    %v2827 = vunpack.c.l.s4 1935823168
    %v2828 = vunpack.c.0.s8 %v2827
    %v2829 = vlaneseq
    %v2830 = vshrl.u32 %v2829, 7
    %v2831 = vsub.s32 %v2828, %v2830
    %v2832 = vrot.slane %v2825, %v2831
    %v2833 = vunpack.c.l.b16 %v2818
    %v2834 = vunpack.c.l.b16 %v2832
    %v2835 = vrot.slane %v2834, 7
    %v2836 = vsel %vm1348, %v2835, %v2833
    %v2837 = vpack.c.b16 %v2836, %v2836
    %v2839 = vunpack.c.l.s4 1966171168
    %v2840 = vunpack.c.0.s8 %v2839
    %v2841 = vlaneseq
    %v2842 = vshrl.u32 %v2841, 7
    %v2843 = vsub.s32 %v2840, %v2842
    %v2844 = vrot.slane %v2837, %v2843
    %v2846 = vunpack.c.l.s4 1966171168
    %v2847 = vunpack.c.0.s8 %v2846
    %v2848 = vlaneseq
    %v2849 = vshrl.u32 %v2848, 7
    %v2850 = vsub.s32 %v2847, %v2849
    %v2851 = vrot.slane %v2844, %v2850
    %2853 = vst [vmem:[#allocation3] sm:$0x1] %v2851
    %v2856 = vcombine.low %v2748, %v2749
    %v2858 = vunpack.c.l.s4 1966171168
    %v2859 = vunpack.c.0.s8 %v2858
    %v2860 = vlaneseq
    %v2861 = vshrl.u32 %v2860, 7
    %v2862 = vsub.s32 %v2859, %v2861
    %v2863 = vrot.slane %v2856, %v2862
    %v2865 = vunpack.c.l.s4 1966171168
    %v2866 = vunpack.c.0.s8 %v2865
    %v2867 = vlaneseq
    %v2868 = vshrl.u32 %v2867, 7
    %v2869 = vsub.s32 %v2866, %v2868
    %v2870 = vrot.slane %v2863, %v2869
    %2872 = vst [vmem:[#allocation4] sm:$0x3] %v2870
    %2873 = vst [vmem:[#allocation5] sm:$0x3] %v2772
    // Predicated region
    $region38: #{entity_classification_forward.1} parent=1 // pred_check
      %p2874 = pneg %p31
    $region39: #{entity_classification_forward.1} parent=1 // pred_check_branch
      %2876 = sbr.rel (%p2874) target = $region41
    $region40: #{entity_classification_forward.1} parent=1 // pred_region
      %v2877 = vld [vmem:[#allocation5] sm:$0x3]
      %v2878 = vld [vmem:[%s6] sm:$0xff]
      %v2879 = vld [vmem:[%s6 + $0x8] sm:$0xff]
      %v2880 = vld [vmem:[%s6 + $0x10] sm:$0xff]
      %v2881 = vld [vmem:[%s6 + $0x18] sm:$0xff]
      %v2882 = vld [vmem:[%s6 + $0x20] sm:$0xff]
      %v2883 = vld [vmem:[%s6 + $0x28] sm:$0xff]
      %v2884 = vld [vmem:[%s6 + $0x30] sm:$0xff]
      %v2885 = vld [vmem:[%s6 + $0x38] sm:$0xff]
      %v2886 = vld [vmem:[%s6 + $0x40] sm:$0xff]
      %v2887 = vld [vmem:[%s6 + $0x48] sm:$0xff]
      %v2888 = vld [vmem:[%s6 + $0x50] sm:$0xff]
      %v2889 = vld [vmem:[%s6 + $0x58] sm:$0xff]
      %v2890 = vld [vmem:[%s6 + $0x60] sm:$0xff]
      %v2891 = vld [vmem:[%s6 + $0x68] sm:$0xff]
      %v2892 = vld [vmem:[%s6 + $0x70] sm:$0xff]
      %v2893 = vld [vmem:[%s6 + $0x78] sm:$0xff]
      %v2894 = vld [vmem:[%s7] sm:$0x1]
      %v2896 = vlaneseq
      %v2897 = vshrl.u32 %v2896, 7
      %v2898 = vsub.s32 0, %v2897
      %v2899 = vrot.slane %v2894, %v2898
      %2901 = vmatprep.subr.mxu0 0.0
      %2902 = vmatpush1.msra.mxu0 %v2878
      %2903 = vmatprep.subr.mxu0 0.0
      %2904 = vmatpush1.msra.mxu0 %v2879
      %2905 = vmatprep.subr.mxu0 0.0
      %2906 = vmatpush1.msra.mxu0 %v2880
      %2907 = vmatprep.subr.mxu0 0.0
      %2908 = vmatpush1.msra.mxu0 %v2881
      %2909 = vmatprep.subr.mxu0 0.0
      %2910 = vmatpush1.msra.mxu0 %v2882
      %2911 = vmatprep.subr.mxu0 0.0
      %2912 = vmatpush1.msra.mxu0 %v2883
      %2913 = vmatprep.subr.mxu0 0.0
      %2914 = vmatpush1.msra.mxu0 %v2884
      %2915 = vmatprep.subr.mxu0 0.0
      %2916 = vmatpush1.msra.mxu0 %v2885
      %2917 = vmatprep.subr.mxu0 0.0
      %2918 = vmatpush1.msra.mxu0 %v2886
      %2919 = vmatprep.subr.mxu0 0.0
      %2920 = vmatpush1.msra.mxu0 %v2887
      %2921 = vmatprep.subr.mxu0 0.0
      %2922 = vmatpush1.msra.mxu0 %v2888
      %2923 = vmatprep.subr.mxu0 0.0
      %2924 = vmatpush1.msra.mxu0 %v2889
      %2925 = vmatprep.subr.mxu0 0.0
      %2926 = vmatpush1.msra.mxu0 %v2890
      %2927 = vmatprep.subr.mxu0 0.0
      %2928 = vmatpush1.msra.mxu0 %v2891
      %2929 = vmatprep.subr.mxu0 0.0
      %2930 = vmatpush1.msra.mxu0 %v2892
      %2931 = vmatprep.subr.mxu0 0.0
      %2932 = vmatpush1.msra.mxu0 %v2893
      %2933 = vmatprep.subr.mxu0 0.0
      %2934 = vmatpush1.msra.mxu0 0.0
      %2935 = vmatprep.subr.mxu0 0.0
      %2936 = vmatpush1.msra.mxu0 0.0
      %2937 = vmatprep.subr.mxu0 0.0
      %2938 = vmatpush1.msra.mxu0 0.0
      %2939 = vmatprep.subr.mxu0 0.0
      %2940 = vmatpush1.msra.mxu0 0.0
      %2941 = vmatprep.subr.mxu0 0.0
      %2942 = vmatpush1.msra.mxu0 0.0
      %2943 = vmatprep.subr.mxu0 0.0
      %2944 = vmatpush1.msra.mxu0 0.0
      %2945 = vmatprep.subr.mxu0 0.0
      %2946 = vmatpush1.msra.mxu0 0.0
      %2947 = vmatprep.subr.mxu0 0.0
      %2948 = vmatpush1.msra.mxu0 0.0
      %2949 = vmatprep.subr.mxu0 0.0
      %2950 = vmatpush1.msra.mxu0 0.0
      %2951 = vmatprep.subr.mxu0 0.0
      %2952 = vmatpush1.msra.mxu0 0.0
      %2953 = vmatprep.subr.mxu0 0.0
      %2954 = vmatpush1.msra.mxu0 0.0
      %2955 = vmatprep.subr.mxu0 0.0
      %2956 = vmatpush1.msra.mxu0 0.0
      %2957 = vmatprep.subr.mxu0 0.0
      %2958 = vmatpush1.msra.mxu0 0.0
      %2959 = vmatprep.subr.mxu0 0.0
      %2960 = vmatpush1.msra.mxu0 0.0
      %2961 = vmatprep.subr.mxu0 0.0
      %2962 = vmatpush1.msra.mxu0 0.0
      %2963 = vmatprep.subr.mxu0 0.0
      %2964 = vmatpush1.msra.mxu0 0.0
      %2965 = vmatprep.mubr.f32.mxu0 0.0
      %2966 = vmatmul.mubr.f32.gmra.mrb[0].mxu0 %v2877
      %v2967 = vpop.f32.mrb[0].mxu0
      %v2968 = vadd.f32 %v2899, %v2967
      %v2969 = vpop.f32.mrb[0].mxu0
      %2970 = vdwg.mxu0
      %vm2971 = vcmask 1041408
      %v2972 = vsel %vm2971, %v2968, -inf
      %2973 = vmax.xlane.f32.xlu0 %v2972
      %v2974 = vpop.xlane.xlu0 %2973
      %v2975 = vsub.f32 %v2968, %v2974
      %v2976 = vmul.f32 %v2975, 1.442695
      %v2977 = vpow.pop %v2976
      %v2978 = vsel %vm2971, %v2977, 0.0
      %2979 = vadd.xlane.f32.xlu0 %v2978
      %v2980 = vpop.xlane.xlu0 %2979
      %v2981 = vrcp.pop %v2980
      %v2982 = vmul.f32 %v2977, %v2981
      %2983 = vst [vmem:[#allocation6] sm:$0x3] %v2982
    $region41: #{entity_classification_forward.1} parent=1 // pred_fallthru
      _
    // Predicated region
    $region42: #{entity_classification_forward.1} parent=1 // pred_check
      _
    $region43: #{entity_classification_forward.1} parent=1 // pred_check_branch
      %2985 = sbr.rel (0) target = $region45
    $region44: #{entity_classification_forward.1} parent=1 // pred_region
      %s2987 = ssub.s32 32, 32
      %2988 = vsyncadd [#allocation7], %s2987
      %s2990 = sshll.u32 [#allocation6], 4
      %s2991 = int_to_ptr.vmem [resolvable:$true] %s2990
      %2993 = dma.vmem_to_hbm [thread:$0]  %s2991, 32, %s8, [#allocation7]
    $region45: #{entity_classification_forward.1} parent=1 // pred_fallthru
      _
    // Predicated region
    $region46: #{entity_classification_forward.1} parent=1 // pred_check
      _
    $region47: #{entity_classification_forward.1} parent=1 // pred_check_branch
      %2995 = sbr.rel (0) target = $region49
    $region48: #{entity_classification_forward.1} parent=1 // pred_region
      %2996 = dma.done [#allocation7], 32
    $region49: #{entity_classification_forward.1} parent=1 // pred_fallthru
      _
    %2997 = vsyncpa [#allocation7], 1

</llo_original>
